<compile_context>
chip_gen: v5e
topology: v5e:2x2
jax: 0.10.0
libtpu: 0.0.40
codegen_flags: <defaults>
</compile_context>

<pallas_src>
import jax
import jax.numpy as jnp
from jax.experimental import pallas as pl
from jax.experimental.pallas import tpu as pltpu

IN_FEATURES = 4096 + 1
HIDDEN1 = 1024
HIDDEN2 = 256
HIDDEN3 = 64
TILE_N1 = 256                     # W1 column-tile width == W2 row-tile height
NUM_TILES = HIDDEN1 // TILE_N1    # 4 grid steps


def _mlp_softmax_kernel(x_ref, w1_ref, b1_ref, w2_ref, b2_ref,
                        w3_ref, b3_ref, w4_ref, b4_ref, o_ref, h2_acc):
    """Grid axis streams (W1 column tile, W2 row tile) pairs.

    Per step: h1_tile = relu(x @ W1[:, tile] + b1[tile])   (fp32 acc, bf16 carry)
              h2_acc += h1_tile @ W2[tile, :]               (fp32 accumulator in VMEM)
    Last step: bias+ReLU, layers 3-4, softmax, store output.
    """
    j = pl.program_id(0)

    @pl.when(j == 0)
    def _():
        h2_acc[...] = jnp.zeros_like(h2_acc)

    # Layer 1 (tile of the 1024-wide output) -- MXU, fp32 accumulation.
    h1_tile = jnp.dot(x_ref[...], w1_ref[...],
                      preferred_element_type=jnp.float32) + b1_ref[...]
    h1_tile = jnp.maximum(h1_tile, 0.0).astype(jnp.bfloat16)

    # Partial layer 2 contribution from this tile of h1.
    h2_acc[...] += jnp.dot(h1_tile, w2_ref[...],
                           preferred_element_type=jnp.float32)

    @pl.when(j == pl.num_programs(0) - 1)
    def _():
        h2 = jnp.maximum(h2_acc[...] + b2_ref[...], 0.0).astype(jnp.bfloat16)

        h3 = jnp.dot(h2, w3_ref[...], preferred_element_type=jnp.float32) + b3_ref[...]
        h3 = jnp.maximum(h3, 0.0).astype(jnp.bfloat16)

        logits = jnp.dot(h3, w4_ref[...],
                         preferred_element_type=jnp.float32) + b4_ref[...]

        # Softmax over last axis (matches nn.Softmax(dim=-1)); all fp32.
        m = jnp.max(logits, axis=-1, keepdims=True)
        e = jnp.exp(logits - m)
        denom = jnp.sum(e, axis=-1, keepdims=True)
        o_ref[...] = (e * pl.reciprocal(denom, approx=False)).astype(o_ref.dtype)


def policy_net_forward(x, params):
    """x: (B, 4097) -> probs (B, num_actions) float32. Weights are bf16, biases fp32."""
    (w1, b1), (w2, b2), (w3, b3), (w4, b4) = params
    B, D = x.shape
    A = w4.shape[1]

    x = x.astype(jnp.bfloat16)

    grid_spec = pltpu.PrefetchScalarGridSpec(
        num_scalar_prefetch=0,
        grid=(NUM_TILES,),
        in_specs=[
            pl.BlockSpec((B, D), lambda j: (0, 0)),                    # x (resident)
            pl.BlockSpec((IN_FEATURES, TILE_N1), lambda j: (0, j)),    # W1 column tile
            pl.BlockSpec((1, TILE_N1), lambda j: (0, j)),              # b1 tile
            pl.BlockSpec((TILE_N1, HIDDEN2), lambda j: (j, 0)),        # W2 row tile
            pl.BlockSpec((1, HIDDEN2), lambda j: (0, 0)),              # b2 (resident)
            pl.BlockSpec((HIDDEN2, HIDDEN3), lambda j: (0, 0)),        # W3 (resident)
            pl.BlockSpec((1, HIDDEN3), lambda j: (0, 0)),              # b3 (resident)
            pl.BlockSpec((HIDDEN3, A), lambda j: (0, 0)),              # W4 (resident)
            pl.BlockSpec((1, A), lambda j: (0, 0)),                    # b4 (resident)
        ],
        out_specs=pl.BlockSpec((B, A), lambda j: (0, 0)),
        scratch_shapes=[pltpu.VMEM((B, HIDDEN2), jnp.float32)],        # layer-2 accumulator
    )

    weight_bytes = 2 * (w1.size + w2.size + w3.size + w4.size)
    bias_bytes = 4 * (b1.size + b2.size + b3.size + b4.size)
    cost = pl.CostEstimate(
        flops=2 * B * (IN_FEATURES * HIDDEN1 + HIDDEN1 * HIDDEN2
                       + HIDDEN2 * HIDDEN3 + HIDDEN3 * A),
        transcendentals=B * A,
        bytes_accessed=weight_bytes + bias_bytes + 2 * x.size + 4 * B * A,
    )

    kernel = pl.pallas_call(
        _mlp_softmax_kernel,
        out_shape=jax.ShapeDtypeStruct((B, A), jnp.float32),
        grid_spec=grid_spec,
        compiler_params=pltpu.CompilerParams(
            dimension_semantics=("arbitrary",),   # sequential: W2 accumulation axis
            vmem_limit_bytes=32 << 20,            # fits v7x's 64 MiB physical VMEM
        ),
        cost_estimate=cost,
    )
    return kernel(x, w1, b1, w2, b2, w3, b3, w4, b4)


def init_params(key, num_actions):
    """Init mimicking torch.nn.Linear defaults: W, b ~ U(-1/sqrt(fan_in), 1/sqrt(fan_in)).
    Weights stored (in, out) as bfloat16 (streamed from HBM); biases fp32."""
    dims = [IN_FEATURES, HIDDEN1, HIDDEN2, HIDDEN3, num_actions]
    params = []
    for i in range(4):
        fan_in, fan_out = dims[i], dims[i + 1]
        key, kw, kb = jax.random.split(key, 3)
        bound = 1.0 / jnp.sqrt(jnp.float32(fan_in))
        w = jax.random.uniform(kw, (fan_in, fan_out), jnp.float32, -bound, bound)
        b = jax.random.uniform(kb, (1, fan_out), jnp.float32, -bound, bound)
        params.append((w.astype(jnp.bfloat16), b))
    return params


def reference_forward(x, params):
    """Pure-JAX reference at matching precision (bf16 weights/activations, fp32 acc)."""
    (w1, b1), (w2, b2), (w3, b3), (w4, b4) = params
    h = x.astype(jnp.bfloat16)
    h = jnp.maximum(jnp.dot(h, w1, preferred_element_type=jnp.float32) + b1, 0.0)
    h = jnp.maximum(jnp.dot(h.astype(jnp.bfloat16), w2,
                            preferred_element_type=jnp.float32) + b2, 0.0)
    h = jnp.maximum(jnp.dot(h.astype(jnp.bfloat16), w3,
                            preferred_element_type=jnp.float32) + b3, 0.0)
    logits = jnp.dot(h.astype(jnp.bfloat16), w4,
                     preferred_element_type=jnp.float32) + b4
    logits = logits - jnp.max(logits, axis=-1, keepdims=True)
    e = jnp.exp(logits)
    return e / jnp.sum(e, axis=-1, keepdims=True)


if __name__ == "__main__":
    ACTIONS = ["LEFT", "RIGHT", "NONE"]  # num_actions = 3
    num_actions = len(ACTIONS)

    key = jax.random.PRNGKey(0)
    key, kparams, kfeat, kpov = jax.random.split(key, 4)

    params = init_params(kparams, num_actions)

    # Input state = concat(vgg19-feature(4096), point_of_view(1)) per sample.
    batch = 2
    vgg_feat = jax.random.normal(kfeat, (batch, 4096), jnp.float32)
    point_of_view = jax.random.uniform(kpov, (batch, 1), jnp.float32)
    x = jnp.concatenate([vgg_feat, point_of_view], axis=-1)  # (2, 4097)

    probs = policy_net_forward(x, params)
    probs = jax.block_until_ready(probs)

    ref = reference_forward(x, params)
    assert probs.shape == (batch, num_actions)
    assert jnp.allclose(jnp.sum(probs, axis=-1), 1.0, atol=1e-5)
    # Compare against the matching bf16-weight / fp32-accumulation reference
    # (tiny differences possible from the split-K accumulation order in layer 2).
    assert jnp.allclose(probs, ref, atol=1e-3, rtol=1e-3)

    print("KERNEL_OK")
</pallas_src>

<mosaic_0001>
module attributes {stable_mosaic.version = 11 : i64} {
  func.func @_mlp_softmax_kernel(%arg0: i32, %arg1: memref<2x4097xbf16, #tpu.memory_space<vmem>>, %arg2: memref<4097x256xbf16, #tpu.memory_space<vmem>>, %arg3: memref<1x256xf32, #tpu.memory_space<vmem>>, %arg4: memref<256x256xbf16, #tpu.memory_space<vmem>>, %arg5: memref<1x256xf32, #tpu.memory_space<vmem>>, %arg6: memref<256x64xbf16, #tpu.memory_space<vmem>>, %arg7: memref<1x64xf32, #tpu.memory_space<vmem>>, %arg8: memref<64x3xbf16, #tpu.memory_space<vmem>>, %arg9: memref<1x3xf32, #tpu.memory_space<vmem>>, %arg10: memref<2x3xf32, #tpu.memory_space<vmem>>, %arg11: memref<2x256xf32, #tpu.memory_space<vmem>>) attributes {dimension_semantics = [#tpu.dimension_semantics<arbitrary>], iteration_bounds = array<i64: 4>, scalar_prefetch = 0 : i64, scratch_operands = 1 : i64, tpu.core_type = #tpu.core_type<tc>, window_params = [{pipeline_mode = #tpu.pipeline_mode<synchronous>, transform_indices = @transform_0, window_bounds = array<i64: 2, 4097>}, {transform_indices = @transform_1, window_bounds = array<i64: 4097, 256>}, {transform_indices = @transform_2, window_bounds = array<i64: 1, 256>}, {transform_indices = @transform_3, window_bounds = array<i64: 256, 256>}, {pipeline_mode = #tpu.pipeline_mode<synchronous>, transform_indices = @transform_4, window_bounds = array<i64: 1, 256>}, {pipeline_mode = #tpu.pipeline_mode<synchronous>, transform_indices = @transform_5, window_bounds = array<i64: 256, 64>}, {pipeline_mode = #tpu.pipeline_mode<synchronous>, transform_indices = @transform_6, window_bounds = array<i64: 1, 64>}, {pipeline_mode = #tpu.pipeline_mode<synchronous>, transform_indices = @transform_7, window_bounds = array<i64: 64, 3>}, {pipeline_mode = #tpu.pipeline_mode<synchronous>, transform_indices = @transform_8, window_bounds = array<i64: 1, 3>}, {pipeline_mode = #tpu.pipeline_mode<synchronous>, transform_indices = @transform_9, window_bounds = array<i64: 2, 3>}]} {
    %c0_i32 = arith.constant 0 : i32
    %0 = arith.cmpi eq, %arg0, %c0_i32 : i32
    %1 = arith.extui %0 : i1 to i32
    %c0_i32_0 = arith.constant 0 : i32
    %2 = arith.cmpi ne, %1, %c0_i32_0 : i32
    scf.if %2 {
      %cst_15 = arith.constant 0.000000e+00 : f32
      %20 = vector.broadcast %cst_15 : f32 to vector<2x256xf32>
      %c0_16 = arith.constant 0 : index
      %c0_17 = arith.constant 0 : index
      %21 = vector.load %arg11[%c0_16, %c0_17] : memref<2x256xf32, #tpu.memory_space<vmem>>, vector<2x256xf32>
      tpu.vector_store %arg11[%c0_16, %c0_17], %20 {strides = array<i32>} : memref<2x256xf32, #tpu.memory_space<vmem>>, vector<2x256xf32>,
    } else {
    }
    %c0 = arith.constant 0 : index
    %c0_1 = arith.constant 0 : index
    %3 = vector.load %arg1[%c0, %c0_1] : memref<2x4097xbf16, #tpu.memory_space<vmem>>, vector<2x4097xbf16>
    %c0_2 = arith.constant 0 : index
    %c0_3 = arith.constant 0 : index
    %4 = vector.load %arg2[%c0_2, %c0_3] : memref<4097x256xbf16, #tpu.memory_space<vmem>>, vector<4097x256xbf16>
    %cst = arith.constant dense<0.000000e+00> : vector<2x256xf32>
    %5 = tpu.matmul %3, %4, %cst {dimension_numbers = #tpu.dot_dimension_numbers<[1], [0], [0], [1], [0, 0, 1, 1], [], []>} : vector<2x4097xbf16>, vector<4097x256xbf16>, vector<2x256xf32> -> vector<2x256xf32>
    %c0_4 = arith.constant 0 : index
    %c0_5 = arith.constant 0 : index
    %6 = vector.load %arg3[%c0_4, %c0_5] : memref<1x256xf32, #tpu.memory_space<vmem>>, vector<1x256xf32>
    %7 = vector.broadcast %6 : vector<1x256xf32> to vector<2x256xf32>
    %8 = arith.addf %5, %7 : vector<2x256xf32>
    %cst_6 = arith.constant 0.000000e+00 : f32
    %9 = vector.broadcast %cst_6 : f32 to vector<2x256xf32>
    %10 = arith.maximumf %8, %9 : vector<2x256xf32>
    %11 = arith.truncf %10 : vector<2x256xf32> to vector<2x256xbf16>
    %c0_7 = arith.constant 0 : index
    %c0_8 = arith.constant 0 : index
    %12 = vector.load %arg11[%c0_7, %c0_8] : memref<2x256xf32, #tpu.memory_space<vmem>>, vector<2x256xf32>
    %c0_9 = arith.constant 0 : index
    %c0_10 = arith.constant 0 : index
    %13 = vector.load %arg4[%c0_9, %c0_10] : memref<256x256xbf16, #tpu.memory_space<vmem>>, vector<256x256xbf16>
    %cst_11 = arith.constant dense<0.000000e+00> : vector<2x256xf32>
    %14 = tpu.matmul %11, %13, %cst_11 {dimension_numbers = #tpu.dot_dimension_numbers<[1], [0], [0], [1], [0, 0, 1, 1], [], []>} : vector<2x256xbf16>, vector<256x256xbf16>, vector<2x256xf32> -> vector<2x256xf32>
    %15 = arith.addf %12, %14 : vector<2x256xf32>
    %c0_12 = arith.constant 0 : index
    %c0_13 = arith.constant 0 : index
    %16 = vector.load %arg11[%c0_12, %c0_13] : memref<2x256xf32, #tpu.memory_space<vmem>>, vector<2x256xf32>
    tpu.vector_store %arg11[%c0_12, %c0_13], %15 {strides = array<i32>} : memref<2x256xf32, #tpu.memory_space<vmem>>, vector<2x256xf32>,
    %c3_i32 = arith.constant 3 : i32
    %17 = arith.cmpi eq, %arg0, %c3_i32 : i32
    %18 = arith.extui %17 : i1 to i32
    %c0_i32_14 = arith.constant 0 : i32
    %19 = arith.cmpi ne, %18, %c0_i32_14 : i32
    scf.if %19 {
      %c0_15 = arith.constant 0 : index
      %c0_16 = arith.constant 0 : index
      %20 = vector.load %arg11[%c0_15, %c0_16] : memref<2x256xf32, #tpu.memory_space<vmem>>, vector<2x256xf32>
      %c0_17 = arith.constant 0 : index
      %c0_18 = arith.constant 0 : index
      %21 = vector.load %arg5[%c0_17, %c0_18] : memref<1x256xf32, #tpu.memory_space<vmem>>, vector<1x256xf32>
      %22 = vector.broadcast %21 : vector<1x256xf32> to vector<2x256xf32>
      %23 = arith.addf %20, %22 : vector<2x256xf32>
      %cst_19 = arith.constant 0.000000e+00 : f32
      %24 = vector.broadcast %cst_19 : f32 to vector<2x256xf32>
      %25 = arith.maximumf %23, %24 : vector<2x256xf32>
      %26 = arith.truncf %25 : vector<2x256xf32> to vector<2x256xbf16>
      %c0_20 = arith.constant 0 : index
      %c0_21 = arith.constant 0 : index
      %27 = vector.load %arg6[%c0_20, %c0_21] : memref<256x64xbf16, #tpu.memory_space<vmem>>, vector<256x64xbf16>
      %cst_22 = arith.constant dense<0.000000e+00> : vector<2x64xf32>
      %28 = tpu.matmul %26, %27, %cst_22 {dimension_numbers = #tpu.dot_dimension_numbers<[1], [0], [0], [1], [0, 0, 1, 1], [], []>} : vector<2x256xbf16>, vector<256x64xbf16>, vector<2x64xf32> -> vector<2x64xf32>
      %c0_23 = arith.constant 0 : index
      %c0_24 = arith.constant 0 : index
      %29 = vector.load %arg7[%c0_23, %c0_24] : memref<1x64xf32, #tpu.memory_space<vmem>>, vector<1x64xf32>
      %30 = vector.broadcast %29 : vector<1x64xf32> to vector<2x64xf32>
      %31 = arith.addf %28, %30 : vector<2x64xf32>
      %cst_25 = arith.constant 0.000000e+00 : f32
      %32 = vector.broadcast %cst_25 : f32 to vector<2x64xf32>
      %33 = arith.maximumf %31, %32 : vector<2x64xf32>
      %34 = arith.truncf %33 : vector<2x64xf32> to vector<2x64xbf16>
      %c0_26 = arith.constant 0 : index
      %c0_27 = arith.constant 0 : index
      %35 = vector.load %arg8[%c0_26, %c0_27] : memref<64x3xbf16, #tpu.memory_space<vmem>>, vector<64x3xbf16>
      %cst_28 = arith.constant dense<0.000000e+00> : vector<2x3xf32>
      %36 = tpu.matmul %34, %35, %cst_28 {dimension_numbers = #tpu.dot_dimension_numbers<[1], [0], [0], [1], [0, 0, 1, 1], [], []>} : vector<2x64xbf16>, vector<64x3xbf16>, vector<2x3xf32> -> vector<2x3xf32>
      %c0_29 = arith.constant 0 : index
      %c0_30 = arith.constant 0 : index
      %37 = vector.load %arg9[%c0_29, %c0_30] : memref<1x3xf32, #tpu.memory_space<vmem>>, vector<1x3xf32>
      %38 = vector.broadcast %37 : vector<1x3xf32> to vector<2x3xf32>
      %39 = arith.addf %36, %38 : vector<2x3xf32>
      %cst_31 = arith.constant dense<0xFF800000> : vector<2xf32>
      %40 = vector.multi_reduction <maximumf>, %39, %cst_31 [1] : vector<2x3xf32> to vector<2xf32>
      %41 = vector.shape_cast %40 : vector<2xf32> to vector<2x1xf32>
      %42 = vector.broadcast %41 : vector<2x1xf32> to vector<2x3xf32>
      %43 = arith.subf %39, %42 : vector<2x3xf32>
      %44 = math.exp %43 : vector<2x3xf32>
      %cst_32 = arith.constant dense<0.000000e+00> : vector<2xf32>
      %45 = vector.multi_reduction <add>, %44, %cst_32 [1] : vector<2x3xf32> to vector<2xf32>
      %46 = vector.shape_cast %45 : vector<2xf32> to vector<2x1xf32>
      %47 = tpu.reciprocal %46 : vector<2x1xf32> -> vector<2x1xf32>
      %48 = vector.broadcast %47 : vector<2x1xf32> to vector<2x3xf32>
      %49 = arith.mulf %44, %48 : vector<2x3xf32>
      %c0_33 = arith.constant 0 : index
      %c0_34 = arith.constant 0 : index
      %50 = vector.load %arg10[%c0_33, %c0_34] : memref<2x3xf32, #tpu.memory_space<vmem>>, vector<2x3xf32>
      tpu.vector_store %arg10[%c0_33, %c0_34], %49 {strides = array<i32>} : memref<2x3xf32, #tpu.memory_space<vmem>>, vector<2x3xf32>,
    } else {
    }
    return
  }
  func.func @transform_0(%arg0: i32) -> (i32, i32) {
    %c0_i32 = arith.constant 0 : i32
    %c0_i32_0 = arith.constant 0 : i32
    %c0_i32_1 = arith.constant 0 : i32
    return %c0_i32, %c0_i32_0 : i32, i32
  }
  func.func @transform_1(%arg0: i32) -> (i32, i32) {
    %c0_i32 = arith.constant 0 : i32
    %c0_i32_0 = arith.constant 0 : i32
    return %c0_i32, %arg0 : i32, i32
  }
  func.func @transform_2(%arg0: i32) -> (i32, i32) {
    %c0_i32 = arith.constant 0 : i32
    %c0_i32_0 = arith.constant 0 : i32
    return %c0_i32, %arg0 : i32, i32
  }
  func.func @transform_3(%arg0: i32) -> (i32, i32) {
    %c0_i32 = arith.constant 0 : i32
    %c0_i32_0 = arith.constant 0 : i32
    return %arg0, %c0_i32 : i32, i32
  }
  func.func @transform_4(%arg0: i32) -> (i32, i32) {
    %c0_i32 = arith.constant 0 : i32
    %c0_i32_0 = arith.constant 0 : i32
    %c0_i32_1 = arith.constant 0 : i32
    return %c0_i32, %c0_i32_0 : i32, i32
  }
  func.func @transform_5(%arg0: i32) -> (i32, i32) {
    %c0_i32 = arith.constant 0 : i32
    %c0_i32_0 = arith.constant 0 : i32
    %c0_i32_1 = arith.constant 0 : i32
    return %c0_i32, %c0_i32_0 : i32, i32
  }
  func.func @transform_6(%arg0: i32) -> (i32, i32) {
    %c0_i32 = arith.constant 0 : i32
    %c0_i32_0 = arith.constant 0 : i32
    %c0_i32_1 = arith.constant 0 : i32
    return %c0_i32, %c0_i32_0 : i32, i32
  }
  func.func @transform_7(%arg0: i32) -> (i32, i32) {
    %c0_i32 = arith.constant 0 : i32
    %c0_i32_0 = arith.constant 0 : i32
    %c0_i32_1 = arith.constant 0 : i32
    return %c0_i32, %c0_i32_0 : i32, i32
  }
  func.func @transform_8(%arg0: i32) -> (i32, i32) {
    %c0_i32 = arith.constant 0 : i32
    %c0_i32_0 = arith.constant 0 : i32
    %c0_i32_1 = arith.constant 0 : i32
    return %c0_i32, %c0_i32_0 : i32, i32
  }
  func.func @transform_9(%arg0: i32) -> (i32, i32) {
    %c0_i32 = arith.constant 0 : i32
    %c0_i32_0 = arith.constant 0 : i32
    %c0_i32_1 = arith.constant 0 : i32
    return %c0_i32, %c0_i32_0 : i32, i32
  }
}

</mosaic_0001>

<llo_original>
// kernel: tpu_custom_call.1
$region0: #{tpu_custom_call.1}
  #allocation0 [shape = 'u32[]', space=smem, size = 0x4, offset = 0x4, fixed_abs, tag = 'smem constant byte address 0x4 - core index']
  #allocation1 [shape = 'u32[72,128]{1,0:T(1,128)}', space=vmem, size = 0x9000, scoped, tag = 'internal scratch']
  #allocation2 [shape = 'f32[2,256]{1,0:T(2,128)}', space=vmem, size = 0x800, scoped, tag = 'scratch operand']
  %s0 = inlined_call_operand.hbm [shape: bf16[2,4097], index: 0, kind: input, shape index: {}]
  %s1 = inlined_call_operand.hbm [shape: bf16[4097,1024], index: 1, kind: input, shape index: {}]
  %s2 = inlined_call_operand.hbm [shape: f32[1,1024], index: 2, kind: input, shape index: {}]
  %s3 = inlined_call_operand.hbm [shape: bf16[1024,256], index: 3, kind: input, shape index: {}]
  %s4 = inlined_call_operand.hbm [shape: f32[1,256], index: 4, kind: input, shape index: {}]
  %s5 = inlined_call_operand.vmem [shape: bf16[256,64], index: 5, kind: input, shape index: {}]
  %s6 = inlined_call_operand.hbm [shape: f32[1,64], index: 6, kind: input, shape index: {}]
  %s7 = inlined_call_operand.vmem [shape: bf16[64,3], index: 7, kind: input, shape index: {}]
  %s8 = inlined_call_operand.hbm [shape: f32[1,3], index: 8, kind: input, shape index: {}]
  %s9 = inlined_call_operand.hbm [shape: f32[2,3], index: 9, kind: output, shape index: {}]
  %s10 = sld [smem:[#allocation0]]
  $region105: #{tpu_custom_call.1} parent=0
    _
  %s12 = ssub.s32 1, %s10
  %s13 = scalar_select 0, %s12, %s10
  $region1: #{tpu_custom_call.1} parent=0
    #allocation3 [shape = 'u8[16896]{0}', space=vmem, size = 0x4400, scoped, tag = 'input window, operand 0, single buffered']
    #allocation4 [shape = 's32[2]{0}', space=sflag, size = 0x8, scoped, tag = 'scoped memory for tpu_custom_call.1']
    #allocation5 [shape = 's32[2]{0}', space=sflag, size = 0x8, scoped, tag = 'scoped memory for tpu_custom_call.1']
    #allocation6 [shape = 'u8[4202496]{0}', space=vmem, size = 0x402000, scoped, tag = 'input window, operand 1']
    #allocation7 [shape = 's32[2]{0}', space=sflag, size = 0x8, scoped, tag = 'scoped memory for tpu_custom_call.1']
    #allocation8 [shape = 'u8[2048]{0}', space=vmem, size = 0x800, scoped, tag = 'input window, operand 2']
    #allocation9 [shape = 'u8[262144]{0}', space=vmem, size = 0x40000, scoped, tag = 'input window, operand 3']
    #allocation10 [shape = 's32[2]{0}', space=sflag, size = 0x8, scoped, tag = 'scoped memory for tpu_custom_call.1']
    #allocation11 [shape = 'u8[1024]{0}', space=vmem, size = 0x400, scoped, tag = 'input window, operand 4, single buffered']
    #allocation12 [shape = 'u8[512]{0}', space=vmem, size = 0x400, scoped, tag = 'input window, operand 6, single buffered']
    #allocation13 [shape = 's32[1]{0}', space=sflag, size = 0x4, scoped, tag = 'scoped memory for tpu_custom_call.1']
    #allocation14 [shape = 'u8[512]{0}', space=vmem, size = 0x400, scoped, tag = 'input window, operand 8, single buffered']
    #allocation15 [shape = 'u8[1024]{0}', space=vmem, size = 0x400, scoped, tag = 'output window, operand 0, single buffered']
    %14 = vsyncpa [#allocation4], 0
    %15 = vsyncpa [#allocation7], 0
    %s16 = scalar_lea.sflag [#allocation7], 1
    %17 = vsyncpa %s16, 0
    %18 = vsyncpa [#allocation10], 0
    %s19 = scalar_lea.sflag [#allocation10], 1
    %20 = vsyncpa %s19, 0
    %21 = vsyncpa [#allocation13], 0
    %22 = vsyncpa [#allocation5], 0
    loop: start=0, step=1, limit=6
    $region2: #{tpu_custom_call.1} parent=1 // loop_pre_header
      _
    $region3: #{tpu_custom_call.1} parent=1 // loop_header
      %s24 = sphi 0, %s28
      %p25 = scmp.ge.s32.totalorder %s24, 6
      %s32 = sphi 0, %s32
      %s34 = sphi 0, %s32
      %s35 = sphi 0, %s34
      %s49 = sphi 0, %s35
      %s55 = sphi 0, %s57
      %s58 = sphi 0, %s55
      %s59 = sphi 0, %s58
      %s75 = sphi 0, %s59
      %s81 = sphi 0, %s83
      %s84 = sphi 0, %s81
      %s85 = sphi 0, %s84
      %s101 = sphi 0, %s85
      %s107 = sphi 0, %s109
      %s110 = sphi 0, %s107
      %s111 = sphi 0, %s110
      %s127 = sphi 0, %s111
      %s131 = sphi 0, %s131
      %s133 = sphi 0, %s131
      %s134 = sphi 0, %s133
      %s148 = sphi 0, %s134
      %s152 = sphi 0, %s152
      %s154 = sphi 0, %s152
      %s155 = sphi 0, %s154
      %s169 = sphi 0, %s155
      %s173 = sphi 0, %s173
      %s175 = sphi 0, %s173
      %s176 = sphi 0, %s175
      %s190 = sphi 0, %s176
      %s194 = sphi 0, %s194
      %s196 = sphi 0, %s194
      %s197 = sphi 0, %s196
      %s211 = sphi 0, %s197
      %s215 = sphi 0, %s215
      %s217 = sphi 0, %s215
      %s218 = sphi 0, %s217
      %s232 = sphi 0, %s218
      %s236 = sphi 0, %s236
      %s238 = sphi 0, %s236
      %s239 = sphi 0, %s238
      %s253 = sphi 0, %s239
    $region4: #{tpu_custom_call.1} parent=1 // loop_header_branch
      %27 = sbr.rel (%p25) target = $region8
    $region5: #{tpu_custom_call.1} parent=1 // loop_body
      %s29 = ssub.s32 %s24, 1
      %s30 = ssub.s32 %s24, 2
      %s31 = sadd.s32 %s24, 1
      %s33 = sadd.s32 %s32, 1
      %p36 = scmp.eq.s32.totalorder %s24, 3
      %p37 = scmp.ne.s32.totalorder %s32, %s34
      %p38 = scmp.eq.s32.totalorder %s24, 0
      %p39 = por %p37, %p38
      %p40 = scmp.ne.s32.totalorder %s32, %s34
      %p41 = scmp.eq.s32.totalorder %s29, 3
      %p42 = por %p40, %p41
      %p43 = scmp.ne.s32.totalorder %s34, %s35
      %p44 = scmp.eq.s32.totalorder %s29, 0
      %p45 = por %p43, %p44
      %p46 = scmp.ne.s32.totalorder %s34, %s35
      %p47 = scmp.eq.s32.totalorder %s30, 3
      %p48 = por %p46, %p47
      %p50 = scmp.ne.s32.totalorder %s35, %s49
      %p51 = scmp.eq.s32.totalorder %s30, 0
      %p52 = por %p50, %p51
      %s53 = ssub.s32 %s24, %s31
      %p54 = scmp.eq.s32.totalorder %s53, 0
      %s56 = sadd.s32 %s55, 1
      %s57 = scalar_select %p54, %s55, %s56
      %p60 = pneg %p54
      %p61 = scmp.eq.s32.totalorder %s24, 3
      %p62 = por %p60, %p61
      %p63 = scmp.ne.s32.totalorder %s55, %s58
      %p64 = scmp.eq.s32.totalorder %s24, 0
      %p65 = por %p63, %p64
      %p66 = scmp.ne.s32.totalorder %s55, %s58
      %p67 = scmp.eq.s32.totalorder %s29, 3
      %p68 = por %p66, %p67
      %p69 = scmp.ne.s32.totalorder %s58, %s59
      %p70 = scmp.eq.s32.totalorder %s29, 0
      %p71 = por %p69, %p70
      %p72 = scmp.ne.s32.totalorder %s58, %s59
      %p73 = scmp.eq.s32.totalorder %s30, 3
      %p74 = por %p72, %p73
      %p76 = scmp.ne.s32.totalorder %s59, %s75
      %p77 = scmp.eq.s32.totalorder %s30, 0
      %p78 = por %p76, %p77
      %s79 = ssub.s32 %s24, %s31
      %p80 = scmp.eq.s32.totalorder %s79, 0
      %s82 = sadd.s32 %s81, 1
      %s83 = scalar_select %p80, %s81, %s82
      %p86 = pneg %p80
      %p87 = scmp.eq.s32.totalorder %s24, 3
      %p88 = por %p86, %p87
      %p89 = scmp.ne.s32.totalorder %s81, %s84
      %p90 = scmp.eq.s32.totalorder %s24, 0
      %p91 = por %p89, %p90
      %p92 = scmp.ne.s32.totalorder %s81, %s84
      %p93 = scmp.eq.s32.totalorder %s29, 3
      %p94 = por %p92, %p93
      %p95 = scmp.ne.s32.totalorder %s84, %s85
      %p96 = scmp.eq.s32.totalorder %s29, 0
      %p97 = por %p95, %p96
      %p98 = scmp.ne.s32.totalorder %s84, %s85
      %p99 = scmp.eq.s32.totalorder %s30, 3
      %p100 = por %p98, %p99
      %p102 = scmp.ne.s32.totalorder %s85, %s101
      %p103 = scmp.eq.s32.totalorder %s30, 0
      %p104 = por %p102, %p103
      %s105 = ssub.s32 %s24, %s31
      %p106 = scmp.eq.s32.totalorder %s105, 0
      %s108 = sadd.s32 %s107, 1
      %s109 = scalar_select %p106, %s107, %s108
      %p112 = pneg %p106
      %p113 = scmp.eq.s32.totalorder %s24, 3
      %p114 = por %p112, %p113
      %p115 = scmp.ne.s32.totalorder %s107, %s110
      %p116 = scmp.eq.s32.totalorder %s24, 0
      %p117 = por %p115, %p116
      %p118 = scmp.ne.s32.totalorder %s107, %s110
      %p119 = scmp.eq.s32.totalorder %s29, 3
      %p120 = por %p118, %p119
      %p121 = scmp.ne.s32.totalorder %s110, %s111
      %p122 = scmp.eq.s32.totalorder %s29, 0
      %p123 = por %p121, %p122
      %p124 = scmp.ne.s32.totalorder %s110, %s111
      %p125 = scmp.eq.s32.totalorder %s30, 3
      %p126 = por %p124, %p125
      %p128 = scmp.ne.s32.totalorder %s111, %s127
      %p129 = scmp.eq.s32.totalorder %s30, 0
      %p130 = por %p128, %p129
      %s132 = sadd.s32 %s131, 1
      %p135 = scmp.eq.s32.totalorder %s24, 3
      %p136 = scmp.ne.s32.totalorder %s131, %s133
      %p137 = scmp.eq.s32.totalorder %s24, 0
      %p138 = por %p136, %p137
      %p139 = scmp.ne.s32.totalorder %s131, %s133
      %p140 = scmp.eq.s32.totalorder %s29, 3
      %p141 = por %p139, %p140
      %p142 = scmp.ne.s32.totalorder %s133, %s134
      %p143 = scmp.eq.s32.totalorder %s29, 0
      %p144 = por %p142, %p143
      %p145 = scmp.ne.s32.totalorder %s133, %s134
      %p146 = scmp.eq.s32.totalorder %s30, 3
      %p147 = por %p145, %p146
      %p149 = scmp.ne.s32.totalorder %s134, %s148
      %p150 = scmp.eq.s32.totalorder %s30, 0
      %p151 = por %p149, %p150
      %s153 = sadd.s32 %s152, 1
      %p156 = scmp.eq.s32.totalorder %s24, 3
      %p157 = scmp.ne.s32.totalorder %s152, %s154
      %p158 = scmp.eq.s32.totalorder %s24, 0
      %p159 = por %p157, %p158
      %p160 = scmp.ne.s32.totalorder %s152, %s154
      %p161 = scmp.eq.s32.totalorder %s29, 3
      %p162 = por %p160, %p161
      %p163 = scmp.ne.s32.totalorder %s154, %s155
      %p164 = scmp.eq.s32.totalorder %s29, 0
      %p165 = por %p163, %p164
      %p166 = scmp.ne.s32.totalorder %s154, %s155
      %p167 = scmp.eq.s32.totalorder %s30, 3
      %p168 = por %p166, %p167
      %p170 = scmp.ne.s32.totalorder %s155, %s169
      %p171 = scmp.eq.s32.totalorder %s30, 0
      %p172 = por %p170, %p171
      %s174 = sadd.s32 %s173, 1
      %p177 = scmp.eq.s32.totalorder %s24, 3
      %p178 = scmp.ne.s32.totalorder %s173, %s175
      %p179 = scmp.eq.s32.totalorder %s24, 0
      %p180 = por %p178, %p179
      %p181 = scmp.ne.s32.totalorder %s173, %s175
      %p182 = scmp.eq.s32.totalorder %s29, 3
      %p183 = por %p181, %p182
      %p184 = scmp.ne.s32.totalorder %s175, %s176
      %p185 = scmp.eq.s32.totalorder %s29, 0
      %p186 = por %p184, %p185
      %p187 = scmp.ne.s32.totalorder %s175, %s176
      %p188 = scmp.eq.s32.totalorder %s30, 3
      %p189 = por %p187, %p188
      %p191 = scmp.ne.s32.totalorder %s176, %s190
      %p192 = scmp.eq.s32.totalorder %s30, 0
      %p193 = por %p191, %p192
      %s195 = sadd.s32 %s194, 1
      %p198 = scmp.eq.s32.totalorder %s24, 3
      %p199 = scmp.ne.s32.totalorder %s194, %s196
      %p200 = scmp.eq.s32.totalorder %s24, 0
      %p201 = por %p199, %p200
      %p202 = scmp.ne.s32.totalorder %s194, %s196
      %p203 = scmp.eq.s32.totalorder %s29, 3
      %p204 = por %p202, %p203
      %p205 = scmp.ne.s32.totalorder %s196, %s197
      %p206 = scmp.eq.s32.totalorder %s29, 0
      %p207 = por %p205, %p206
      %p208 = scmp.ne.s32.totalorder %s196, %s197
      %p209 = scmp.eq.s32.totalorder %s30, 3
      %p210 = por %p208, %p209
      %p212 = scmp.ne.s32.totalorder %s197, %s211
      %p213 = scmp.eq.s32.totalorder %s30, 0
      %p214 = por %p212, %p213
      %s216 = sadd.s32 %s215, 1
      %p219 = scmp.eq.s32.totalorder %s24, 3
      %p220 = scmp.ne.s32.totalorder %s215, %s217
      %p221 = scmp.eq.s32.totalorder %s24, 0
      %p222 = por %p220, %p221
      %p223 = scmp.ne.s32.totalorder %s215, %s217
      %p224 = scmp.eq.s32.totalorder %s29, 3
      %p225 = por %p223, %p224
      %p226 = scmp.ne.s32.totalorder %s217, %s218
      %p227 = scmp.eq.s32.totalorder %s29, 0
      %p228 = por %p226, %p227
      %p229 = scmp.ne.s32.totalorder %s217, %s218
      %p230 = scmp.eq.s32.totalorder %s30, 3
      %p231 = por %p229, %p230
      %p233 = scmp.ne.s32.totalorder %s218, %s232
      %p234 = scmp.eq.s32.totalorder %s30, 0
      %p235 = por %p233, %p234
      %s237 = sadd.s32 %s236, 1
      %p240 = scmp.eq.s32.totalorder %s24, 3
      %p241 = scmp.ne.s32.totalorder %s236, %s238
      %p242 = scmp.eq.s32.totalorder %s24, 0
      %p243 = por %p241, %p242
      %p244 = scmp.ne.s32.totalorder %s236, %s238
      %p245 = scmp.eq.s32.totalorder %s29, 3
      %p246 = por %p244, %p245
      %p247 = scmp.ne.s32.totalorder %s238, %s239
      %p248 = scmp.eq.s32.totalorder %s29, 0
      %p249 = por %p247, %p248
      %p250 = scmp.ne.s32.totalorder %s238, %s239
      %p251 = scmp.eq.s32.totalorder %s30, 3
      %p252 = por %p250, %p251
      %p254 = scmp.ne.s32.totalorder %s239, %s253
      %p255 = scmp.eq.s32.totalorder %s30, 0
      %p256 = por %p254, %p255
      %p257 = scmp.le.s32.totalorder 1, %s24
      %p258 = scmp.lt.s32.totalorder %s24, 5
      %p259 = pnand %p257, %p258
      %p260 = pneg %p259
      // Predicated region
      $region9: #{tpu_custom_call.1} parent=5 // pred_check
        _
      $region10: #{tpu_custom_call.1} parent=5 // pred_check_branch
        %262 = sbr.rel (%p259) target = $region12
      $region11: #{tpu_custom_call.1} parent=5 // pred_region
        %s263 = ssub.s32 %s24, 1
        // Predicated region
        $region13: #{tpu_custom_call.1} parent=11 // pred_check
          %p264 = pneg %p45
        $region14: #{tpu_custom_call.1} parent=11 // pred_check_branch
          %266 = sbr.rel (%p264) target = $region16
        $region15: #{tpu_custom_call.1} parent=11 // pred_region
          %268 = vsyncadd [#allocation4], 0
          %s270 = sshll.u32 %s0, 4
          %s271 = int_to_ptr.hbm [resolvable:$true] %s270
          %s272 = sshll.u32 [#allocation3], 4
          %s273 = int_to_ptr.vmem [resolvable:$true] %s272
          %275 = dma.hbm_to_vmem [thread:$0]  %s271, 528, %s273, [#allocation4]
        $region16: #{tpu_custom_call.1} parent=11 // pred_fallthru
          _
        // Predicated region
        $region17: #{tpu_custom_call.1} parent=11 // pred_check
          %p276 = pneg %p144
        $region18: #{tpu_custom_call.1} parent=11 // pred_check_branch
          %278 = sbr.rel (%p276) target = $region20
        $region19: #{tpu_custom_call.1} parent=11 // pred_region
          %280 = vsyncadd [#allocation10], 0
          %s282 = sshll.u32 %s4, 4
          %s283 = int_to_ptr.hbm [resolvable:$true] %s282
          %s284 = sshll.u32 [#allocation11], 4
          %s285 = int_to_ptr.vmem [resolvable:$true] %s284
          %287 = dma.hbm_to_vmem [thread:$0]  %s283, 32, %s285, [#allocation10]
        $region20: #{tpu_custom_call.1} parent=11 // pred_fallthru
          _
        // Predicated region
        $region21: #{tpu_custom_call.1} parent=11 // pred_check
          %p288 = pneg %p165
        $region22: #{tpu_custom_call.1} parent=11 // pred_check_branch
          %290 = sbr.rel (%p288) target = $region24
        $region23: #{tpu_custom_call.1} parent=11 // pred_region
          _
        $region24: #{tpu_custom_call.1} parent=11 // pred_fallthru
          _
        // Predicated region
        $region25: #{tpu_custom_call.1} parent=11 // pred_check
          %p291 = pneg %p186
        $region26: #{tpu_custom_call.1} parent=11 // pred_check_branch
          %293 = sbr.rel (%p291) target = $region28
        $region27: #{tpu_custom_call.1} parent=11 // pred_region
          %295 = vsyncadd [#allocation13], 0
          %s297 = sshll.u32 %s6, 4
          %s298 = int_to_ptr.hbm [resolvable:$true] %s297
          %s299 = sshll.u32 [#allocation12], 4
          %s300 = int_to_ptr.vmem [resolvable:$true] %s299
          %302 = dma.hbm_to_vmem [thread:$0]  %s298, 16, %s300, [#allocation13]
        $region28: #{tpu_custom_call.1} parent=11 // pred_fallthru
          _
        // Predicated region
        $region29: #{tpu_custom_call.1} parent=11 // pred_check
          %p303 = pneg %p207
        $region30: #{tpu_custom_call.1} parent=11 // pred_check_branch
          %305 = sbr.rel (%p303) target = $region32
        $region31: #{tpu_custom_call.1} parent=11 // pred_region
          _
        $region32: #{tpu_custom_call.1} parent=11 // pred_fallthru
          _
        // Predicated region
        $region33: #{tpu_custom_call.1} parent=11 // pred_check
          %p306 = pneg %p228
        $region34: #{tpu_custom_call.1} parent=11 // pred_check_branch
          %308 = sbr.rel (%p306) target = $region36
        $region35: #{tpu_custom_call.1} parent=11 // pred_region
          %310 = vsyncadd [#allocation13], 0
          %s312 = sshll.u32 %s8, 4
          %s313 = int_to_ptr.hbm [resolvable:$true] %s312
          %s314 = sshll.u32 [#allocation14], 4
          %s315 = int_to_ptr.vmem [resolvable:$true] %s314
          %317 = dma.hbm_to_vmem [thread:$0]  %s313, 16, %s315, [#allocation13]
        $region36: #{tpu_custom_call.1} parent=11 // pred_fallthru
          _
      $region12: #{tpu_custom_call.1} parent=5 // pred_fallthru
        _
      %p318 = scmp.lt.s32.totalorder %s24, 4
      // Predicated region
      $region37: #{tpu_custom_call.1} parent=5 // pred_check
        %p319 = pneg %p318
      $region38: #{tpu_custom_call.1} parent=5 // pred_check_branch
        %321 = sbr.rel (%p319) target = $region40
      $region39: #{tpu_custom_call.1} parent=5 // pred_region
        // Predicated region
        $region41: #{tpu_custom_call.1} parent=39 // pred_check
          %p322 = pneg %p65
        $region42: #{tpu_custom_call.1} parent=39 // pred_check_branch
          %324 = sbr.rel (%p322) target = $region44
        $region43: #{tpu_custom_call.1} parent=39 // pred_region
          %s325 = sand.u32 %s24, 1
          %s326 = scalar_lea.sflag [#allocation7], %s325
          %s327 = sand.u32 %s55, 1
          %s328 = smul.addr %s327, 4104
          %s329 = scalar_lea.vmem [#allocation6], %s328
          %s330 = smul.u32 2, %s24
          %332 = vsyncadd %s326, 0
          %s333 = smul.addr %s330, 4
          %s334 = scalar_lea.hbm %s1, %s333
          %s335 = sshll.u32 %s334, 4
          %s336 = int_to_ptr.hbm [resolvable:$true] %s335
          %s337 = sshll.u32 %s329, 4
          %s338 = int_to_ptr.vmem [resolvable:$true] %s337
          %343 = dma.hbm_to_vmem [thread:$0]  %s336, 65664, %s338, %s326, 512, 128, 8
        $region44: #{tpu_custom_call.1} parent=39 // pred_fallthru
          _
        // Predicated region
        $region45: #{tpu_custom_call.1} parent=39 // pred_check
          %p344 = pneg %p91
        $region46: #{tpu_custom_call.1} parent=39 // pred_check_branch
          %346 = sbr.rel (%p344) target = $region48
        $region47: #{tpu_custom_call.1} parent=39 // pred_region
          %s347 = sand.u32 %s24, 1
          %s348 = scalar_lea.sflag [#allocation7], %s347
          %s349 = sand.u32 %s81, 1
          %s350 = smul.addr %s349, 2
          %s351 = scalar_lea.vmem [#allocation8], %s350
          %s352 = smul.u32 2, %s24
          %354 = vsyncadd %s348, 0
          %s355 = scalar_lea.hbm %s2, %s352
          %s357 = sshll.u32 %s355, 4
          %s358 = int_to_ptr.hbm [resolvable:$true] %s357
          %s359 = sshll.u32 %s351, 4
          %s360 = int_to_ptr.vmem [resolvable:$true] %s359
          %362 = dma.hbm_to_vmem [thread:$0]  %s358, 32, %s360, %s348
        $region48: #{tpu_custom_call.1} parent=39 // pred_fallthru
          _
        // Predicated region
        $region49: #{tpu_custom_call.1} parent=39 // pred_check
          %p363 = pneg %p117
        $region50: #{tpu_custom_call.1} parent=39 // pred_check_branch
          %365 = sbr.rel (%p363) target = $region52
        $region51: #{tpu_custom_call.1} parent=39 // pred_region
          %s366 = sand.u32 %s24, 1
          %s367 = scalar_lea.sflag [#allocation10], %s366
          %s368 = sand.u32 %s107, 1
          %s369 = smul.addr %s368, 256
          %s370 = scalar_lea.vmem [#allocation9], %s369
          %s371 = smul.u32 32, %s24
          %373 = vsyncadd %s367, 0
          %s374 = smul.addr %s371, 2
          %s375 = smul.addr %s374, 4
          %s376 = scalar_lea.hbm %s3, %s375
          %s377 = sshll.u32 %s376, 4
          %s378 = int_to_ptr.hbm [resolvable:$true] %s377
          %s379 = sshll.u32 %s370, 4
          %s380 = int_to_ptr.vmem [resolvable:$true] %s379
          %385 = dma.hbm_to_vmem [thread:$0]  %s378, 4096, %s380, %s367, 128, 128, 8
        $region52: #{tpu_custom_call.1} parent=39 // pred_fallthru
          _
      $region40: #{tpu_custom_call.1} parent=5 // pred_fallthru
        _
      %p386 = scmp.le.s32.totalorder 1, %s24
      %p387 = scmp.lt.s32.totalorder %s24, 5
      %p388 = pnand %p386, %p387
      %p389 = pneg %p388
      // Predicated region
      $region53: #{tpu_custom_call.1} parent=5 // pred_check
        _
      $region54: #{tpu_custom_call.1} parent=5 // pred_check_branch
        %391 = sbr.rel (%p388) target = $region56
      $region55: #{tpu_custom_call.1} parent=5 // pred_region
        %s392 = ssub.s32 %s24, 1
        // Predicated region
        $region57: #{tpu_custom_call.1} parent=55 // pred_check
          %p393 = pneg %p45
        $region58: #{tpu_custom_call.1} parent=55 // pred_check_branch
          %395 = sbr.rel (%p393) target = $region60
        $region59: #{tpu_custom_call.1} parent=55 // pred_region
          %397 = dma.done [#allocation4], 528
        $region60: #{tpu_custom_call.1} parent=55 // pred_fallthru
          _
        %s398 = sand.u32 %s29, 1
        %s399 = scalar_lea.sflag [#allocation7], %s398
        %s400 = sand.u32 %s58, 1
        %s401 = smul.addr %s400, 4104
        %s402 = scalar_lea.vmem [#allocation6], %s401
        // Predicated region
        $region61: #{tpu_custom_call.1} parent=55 // pred_check
          %p403 = pneg %p71
        $region62: #{tpu_custom_call.1} parent=55 // pred_check_branch
          %405 = sbr.rel (%p403) target = $region64
        $region63: #{tpu_custom_call.1} parent=55 // pred_region
          %407 = dma.done %s399, 65664
        $region64: #{tpu_custom_call.1} parent=55 // pred_fallthru
          _
        %s408 = sand.u32 %s29, 1
        %s409 = scalar_lea.sflag [#allocation7], %s408
        %s410 = sand.u32 %s84, 1
        %s411 = smul.addr %s410, 2
        %s412 = scalar_lea.vmem [#allocation8], %s411
        // Predicated region
        $region65: #{tpu_custom_call.1} parent=55 // pred_check
          %p413 = pneg %p97
        $region66: #{tpu_custom_call.1} parent=55 // pred_check_branch
          %415 = sbr.rel (%p413) target = $region68
        $region67: #{tpu_custom_call.1} parent=55 // pred_region
          %417 = dma.done %s409, 32
        $region68: #{tpu_custom_call.1} parent=55 // pred_fallthru
          _
        %s418 = sand.u32 %s29, 1
        %s419 = scalar_lea.sflag [#allocation10], %s418
        %s420 = sand.u32 %s110, 1
        %s421 = smul.addr %s420, 256
        %s422 = scalar_lea.vmem [#allocation9], %s421
        // Predicated region
        $region69: #{tpu_custom_call.1} parent=55 // pred_check
          %p423 = pneg %p123
        $region70: #{tpu_custom_call.1} parent=55 // pred_check_branch
          %425 = sbr.rel (%p423) target = $region72
        $region71: #{tpu_custom_call.1} parent=55 // pred_region
          %427 = dma.done %s419, 4096
        $region72: #{tpu_custom_call.1} parent=55 // pred_fallthru
          _
        // Predicated region
        $region73: #{tpu_custom_call.1} parent=55 // pred_check
          %p428 = pneg %p144
        $region74: #{tpu_custom_call.1} parent=55 // pred_check_branch
          %430 = sbr.rel (%p428) target = $region76
        $region75: #{tpu_custom_call.1} parent=55 // pred_region
          %432 = dma.done [#allocation10], 32
        $region76: #{tpu_custom_call.1} parent=55 // pred_fallthru
          _
        // Predicated region
        $region77: #{tpu_custom_call.1} parent=55 // pred_check
          %p433 = pneg %p186
        $region78: #{tpu_custom_call.1} parent=55 // pred_check_branch
          %435 = sbr.rel (%p433) target = $region80
        $region79: #{tpu_custom_call.1} parent=55 // pred_region
          %437 = dma.done [#allocation13], 16
        $region80: #{tpu_custom_call.1} parent=55 // pred_fallthru
          _
        // Predicated region
        $region81: #{tpu_custom_call.1} parent=55 // pred_check
          %p438 = pneg %p228
        $region82: #{tpu_custom_call.1} parent=55 // pred_check_branch
          %440 = sbr.rel (%p438) target = $region84
        $region83: #{tpu_custom_call.1} parent=55 // pred_region
          %442 = dma.done [#allocation13], 16
        $region84: #{tpu_custom_call.1} parent=55 // pred_fallthru
          _
        %p443 = pneg %p45
        %p444 = pneg %p42
        %s445 = sand.u32 %s29, 1
        %s446 = scalar_lea.sflag [#allocation7], %s445
        %s447 = sand.u32 %s58, 1
        %s448 = smul.addr %s447, 4104
        %s449 = scalar_lea.vmem [#allocation6], %s448
        %p450 = pneg %p71
        %p451 = pneg %p68
        %s452 = sand.u32 %s29, 1
        %s453 = scalar_lea.sflag [#allocation7], %s452
        %s454 = sand.u32 %s84, 1
        %s455 = smul.addr %s454, 2
        %s456 = scalar_lea.vmem [#allocation8], %s455
        %p457 = pneg %p97
        %p458 = pneg %p94
        %s459 = sand.u32 %s29, 1
        %s460 = scalar_lea.sflag [#allocation10], %s459
        %s461 = sand.u32 %s110, 1
        %s462 = smul.addr %s461, 256
        %s463 = scalar_lea.vmem [#allocation9], %s462
        %p464 = pneg %p123
        %p465 = pneg %p120
        %p466 = pneg %p144
        %p467 = pneg %p141
        %p468 = pneg %p165
        %p469 = pneg %p162
        %p470 = pneg %p186
        %p471 = pneg %p183
        %p472 = pneg %p207
        %p473 = pneg %p204
        %p474 = pneg %p228
        %p475 = pneg %p225
        %p476 = pneg %p249
        %p477 = pneg %p246
        %s478 = smul.u32 2, %s29
        %s479 = smul.u32 2, %s29
        %s480 = smul.u32 32, %s29
        %p482 = scmp.eq.s32.totalorder %s29, 0
        // Predicated region
        $region85: #{tpu_custom_call.1} parent=55 // pred_check
          %p483 = pneg %p482
        $region86: #{tpu_custom_call.1} parent=55 // pred_check_branch
          %485 = sbr.rel (%p483) target = $region88
        $region87: #{tpu_custom_call.1} parent=55 // pred_region
          %486 = vst [vmem:[#allocation2] sm:$0xf] 0.0
        $region88: #{tpu_custom_call.1} parent=55 // pred_fallthru
          _
        %v487 = vld [vmem:[#allocation3] sm:$0xff]
        %v488 = vld [vmem:[#allocation3 + $0x8] sm:$0xff]
        %v489 = vld [vmem:[#allocation3 + $0x10] sm:$0xff]
        %v490 = vld [vmem:[#allocation3 + $0x18] sm:$0xff]
        %v491 = vld [vmem:[#allocation3 + $0x20] sm:$0x1]
        %v492 = vld [vmem:[%s402] sm:$0xff]
        %v493 = vld [vmem:[%s402 + $0x8] sm:$0xff]
        %v494 = vld [vmem:[%s402 + $0x10] sm:$0xff]
        %v495 = vld [vmem:[%s402 + $0x18] sm:$0xff]
        %v496 = vld [vmem:[%s402 + $0x20] sm:$0xff]
        %v497 = vld [vmem:[%s402 + $0x28] sm:$0xff]
        %v498 = vld [vmem:[%s402 + $0x30] sm:$0xff]
        %v499 = vld [vmem:[%s402 + $0x38] sm:$0xff]
        %v500 = vld [vmem:[%s402 + $0x40] sm:$0xff]
        %v501 = vld [vmem:[%s402 + $0x48] sm:$0xff]
        %v502 = vld [vmem:[%s402 + $0x50] sm:$0xff]
        %v503 = vld [vmem:[%s402 + $0x58] sm:$0xff]
        %v504 = vld [vmem:[%s402 + $0x60] sm:$0xff]
        %v505 = vld [vmem:[%s402 + $0x68] sm:$0xff]
        %v506 = vld [vmem:[%s402 + $0x70] sm:$0xff]
        %v507 = vld [vmem:[%s402 + $0x78] sm:$0xff]
        %v508 = vld [vmem:[%s402 + $0x80] sm:$0xff]
        %v509 = vld [vmem:[%s402 + $0x88] sm:$0xff]
        %v510 = vld [vmem:[%s402 + $0x90] sm:$0xff]
        %v511 = vld [vmem:[%s402 + $0x98] sm:$0xff]
        %v512 = vld [vmem:[%s402 + $0xa0] sm:$0xff]
        %v513 = vld [vmem:[%s402 + $0xa8] sm:$0xff]
        %v514 = vld [vmem:[%s402 + $0xb0] sm:$0xff]
        %v515 = vld [vmem:[%s402 + $0xb8] sm:$0xff]
        %v516 = vld [vmem:[%s402 + $0xc0] sm:$0xff]
        %v517 = vld [vmem:[%s402 + $0xc8] sm:$0xff]
        %v518 = vld [vmem:[%s402 + $0xd0] sm:$0xff]
        %v519 = vld [vmem:[%s402 + $0xd8] sm:$0xff]
        %v520 = vld [vmem:[%s402 + $0xe0] sm:$0xff]
        %v521 = vld [vmem:[%s402 + $0xe8] sm:$0xff]
        %v522 = vld [vmem:[%s402 + $0xf0] sm:$0xff]
        %v523 = vld [vmem:[%s402 + $0xf8] sm:$0xff]
        %v524 = vld [vmem:[%s402 + $0x100] sm:$0xff]
        %v525 = vld [vmem:[%s402 + $0x108] sm:$0xff]
        %v526 = vld [vmem:[%s402 + $0x110] sm:$0xff]
        %v527 = vld [vmem:[%s402 + $0x118] sm:$0xff]
        %v528 = vld [vmem:[%s402 + $0x120] sm:$0xff]
        %v529 = vld [vmem:[%s402 + $0x128] sm:$0xff]
        %v530 = vld [vmem:[%s402 + $0x130] sm:$0xff]
        %v531 = vld [vmem:[%s402 + $0x138] sm:$0xff]
        %v532 = vld [vmem:[%s402 + $0x140] sm:$0xff]
        %v533 = vld [vmem:[%s402 + $0x148] sm:$0xff]
        %v534 = vld [vmem:[%s402 + $0x150] sm:$0xff]
        %v535 = vld [vmem:[%s402 + $0x158] sm:$0xff]
        %v536 = vld [vmem:[%s402 + $0x160] sm:$0xff]
        %v537 = vld [vmem:[%s402 + $0x168] sm:$0xff]
        %v538 = vld [vmem:[%s402 + $0x170] sm:$0xff]
        %v539 = vld [vmem:[%s402 + $0x178] sm:$0xff]
        %v540 = vld [vmem:[%s402 + $0x180] sm:$0xff]
        %v541 = vld [vmem:[%s402 + $0x188] sm:$0xff]
        %v542 = vld [vmem:[%s402 + $0x190] sm:$0xff]
        %v543 = vld [vmem:[%s402 + $0x198] sm:$0xff]
        %v544 = vld [vmem:[%s402 + $0x1a0] sm:$0xff]
        %v545 = vld [vmem:[%s402 + $0x1a8] sm:$0xff]
        %v546 = vld [vmem:[%s402 + $0x1b0] sm:$0xff]
        %v547 = vld [vmem:[%s402 + $0x1b8] sm:$0xff]
        %v548 = vld [vmem:[%s402 + $0x1c0] sm:$0xff]
        %v549 = vld [vmem:[%s402 + $0x1c8] sm:$0xff]
        %v550 = vld [vmem:[%s402 + $0x1d0] sm:$0xff]
        %v551 = vld [vmem:[%s402 + $0x1d8] sm:$0xff]
        %v552 = vld [vmem:[%s402 + $0x1e0] sm:$0xff]
        %v553 = vld [vmem:[%s402 + $0x1e8] sm:$0xff]
        %v554 = vld [vmem:[%s402 + $0x1f0] sm:$0xff]
        %v555 = vld [vmem:[%s402 + $0x1f8] sm:$0xff]
        %v556 = vld [vmem:[%s402 + $0x200] sm:$0xff]
        %v557 = vld [vmem:[%s402 + $0x208] sm:$0xff]
        %v558 = vld [vmem:[%s402 + $0x210] sm:$0xff]
        %v559 = vld [vmem:[%s402 + $0x218] sm:$0xff]
        %v560 = vld [vmem:[%s402 + $0x220] sm:$0xff]
        %v561 = vld [vmem:[%s402 + $0x228] sm:$0xff]
        %v562 = vld [vmem:[%s402 + $0x230] sm:$0xff]
        %v563 = vld [vmem:[%s402 + $0x238] sm:$0xff]
        %v564 = vld [vmem:[%s402 + $0x240] sm:$0xff]
        %v565 = vld [vmem:[%s402 + $0x248] sm:$0xff]
        %v566 = vld [vmem:[%s402 + $0x250] sm:$0xff]
        %v567 = vld [vmem:[%s402 + $0x258] sm:$0xff]
        %v568 = vld [vmem:[%s402 + $0x260] sm:$0xff]
        %v569 = vld [vmem:[%s402 + $0x268] sm:$0xff]
        %v570 = vld [vmem:[%s402 + $0x270] sm:$0xff]
        %v571 = vld [vmem:[%s402 + $0x278] sm:$0xff]
        %v572 = vld [vmem:[%s402 + $0x280] sm:$0xff]
        %v573 = vld [vmem:[%s402 + $0x288] sm:$0xff]
        %v574 = vld [vmem:[%s402 + $0x290] sm:$0xff]
        %v575 = vld [vmem:[%s402 + $0x298] sm:$0xff]
        %v576 = vld [vmem:[%s402 + $0x2a0] sm:$0xff]
        %v577 = vld [vmem:[%s402 + $0x2a8] sm:$0xff]
        %v578 = vld [vmem:[%s402 + $0x2b0] sm:$0xff]
        %v579 = vld [vmem:[%s402 + $0x2b8] sm:$0xff]
        %v580 = vld [vmem:[%s402 + $0x2c0] sm:$0xff]
        %v581 = vld [vmem:[%s402 + $0x2c8] sm:$0xff]
        %v582 = vld [vmem:[%s402 + $0x2d0] sm:$0xff]
        %v583 = vld [vmem:[%s402 + $0x2d8] sm:$0xff]
        %v584 = vld [vmem:[%s402 + $0x2e0] sm:$0xff]
        %v585 = vld [vmem:[%s402 + $0x2e8] sm:$0xff]
        %v586 = vld [vmem:[%s402 + $0x2f0] sm:$0xff]
        %v587 = vld [vmem:[%s402 + $0x2f8] sm:$0xff]
        %v588 = vld [vmem:[%s402 + $0x300] sm:$0xff]
        %v589 = vld [vmem:[%s402 + $0x308] sm:$0xff]
        %v590 = vld [vmem:[%s402 + $0x310] sm:$0xff]
        %v591 = vld [vmem:[%s402 + $0x318] sm:$0xff]
        %v592 = vld [vmem:[%s402 + $0x320] sm:$0xff]
        %v593 = vld [vmem:[%s402 + $0x328] sm:$0xff]
        %v594 = vld [vmem:[%s402 + $0x330] sm:$0xff]
        %v595 = vld [vmem:[%s402 + $0x338] sm:$0xff]
        %v596 = vld [vmem:[%s402 + $0x340] sm:$0xff]
        %v597 = vld [vmem:[%s402 + $0x348] sm:$0xff]
        %v598 = vld [vmem:[%s402 + $0x350] sm:$0xff]
        %v599 = vld [vmem:[%s402 + $0x358] sm:$0xff]
        %v600 = vld [vmem:[%s402 + $0x360] sm:$0xff]
        %v601 = vld [vmem:[%s402 + $0x368] sm:$0xff]
        %v602 = vld [vmem:[%s402 + $0x370] sm:$0xff]
        %v603 = vld [vmem:[%s402 + $0x378] sm:$0xff]
        %v604 = vld [vmem:[%s402 + $0x380] sm:$0xff]
        %v605 = vld [vmem:[%s402 + $0x388] sm:$0xff]
        %v606 = vld [vmem:[%s402 + $0x390] sm:$0xff]
        %v607 = vld [vmem:[%s402 + $0x398] sm:$0xff]
        %v608 = vld [vmem:[%s402 + $0x3a0] sm:$0xff]
        %v609 = vld [vmem:[%s402 + $0x3a8] sm:$0xff]
        %v610 = vld [vmem:[%s402 + $0x3b0] sm:$0xff]
        %v611 = vld [vmem:[%s402 + $0x3b8] sm:$0xff]
        %v612 = vld [vmem:[%s402 + $0x3c0] sm:$0xff]
        %v613 = vld [vmem:[%s402 + $0x3c8] sm:$0xff]
        %v614 = vld [vmem:[%s402 + $0x3d0] sm:$0xff]
        %v615 = vld [vmem:[%s402 + $0x3d8] sm:$0xff]
        %v616 = vld [vmem:[%s402 + $0x3e0] sm:$0xff]
        %v617 = vld [vmem:[%s402 + $0x3e8] sm:$0xff]
        %v618 = vld [vmem:[%s402 + $0x3f0] sm:$0xff]
        %v619 = vld [vmem:[%s402 + $0x3f8] sm:$0xff]
        %v620 = vld [vmem:[%s402 + $0x400] sm:$0xff]
        %v621 = vld [vmem:[%s402 + $0x408] sm:$0xff]
        %v622 = vld [vmem:[%s402 + $0x410] sm:$0xff]
        %v623 = vld [vmem:[%s402 + $0x418] sm:$0xff]
        %v624 = vld [vmem:[%s402 + $0x420] sm:$0xff]
        %v625 = vld [vmem:[%s402 + $0x428] sm:$0xff]
        %v626 = vld [vmem:[%s402 + $0x430] sm:$0xff]
        %v627 = vld [vmem:[%s402 + $0x438] sm:$0xff]
        %v628 = vld [vmem:[%s402 + $0x440] sm:$0xff]
        %v629 = vld [vmem:[%s402 + $0x448] sm:$0xff]
        %v630 = vld [vmem:[%s402 + $0x450] sm:$0xff]
        %v631 = vld [vmem:[%s402 + $0x458] sm:$0xff]
        %v632 = vld [vmem:[%s402 + $0x460] sm:$0xff]
        %v633 = vld [vmem:[%s402 + $0x468] sm:$0xff]
        %v634 = vld [vmem:[%s402 + $0x470] sm:$0xff]
        %v635 = vld [vmem:[%s402 + $0x478] sm:$0xff]
        %v636 = vld [vmem:[%s402 + $0x480] sm:$0xff]
        %v637 = vld [vmem:[%s402 + $0x488] sm:$0xff]
        %v638 = vld [vmem:[%s402 + $0x490] sm:$0xff]
        %v639 = vld [vmem:[%s402 + $0x498] sm:$0xff]
        %v640 = vld [vmem:[%s402 + $0x4a0] sm:$0xff]
        %v641 = vld [vmem:[%s402 + $0x4a8] sm:$0xff]
        %v642 = vld [vmem:[%s402 + $0x4b0] sm:$0xff]
        %v643 = vld [vmem:[%s402 + $0x4b8] sm:$0xff]
        %v644 = vld [vmem:[%s402 + $0x4c0] sm:$0xff]
        %v645 = vld [vmem:[%s402 + $0x4c8] sm:$0xff]
        %v646 = vld [vmem:[%s402 + $0x4d0] sm:$0xff]
        %v647 = vld [vmem:[%s402 + $0x4d8] sm:$0xff]
        %v648 = vld [vmem:[%s402 + $0x4e0] sm:$0xff]
        %v649 = vld [vmem:[%s402 + $0x4e8] sm:$0xff]
        %v650 = vld [vmem:[%s402 + $0x4f0] sm:$0xff]
        %v651 = vld [vmem:[%s402 + $0x4f8] sm:$0xff]
        %v652 = vld [vmem:[%s402 + $0x500] sm:$0xff]
        %v653 = vld [vmem:[%s402 + $0x508] sm:$0xff]
        %v654 = vld [vmem:[%s402 + $0x510] sm:$0xff]
        %v655 = vld [vmem:[%s402 + $0x518] sm:$0xff]
        %v656 = vld [vmem:[%s402 + $0x520] sm:$0xff]
        %v657 = vld [vmem:[%s402 + $0x528] sm:$0xff]
        %v658 = vld [vmem:[%s402 + $0x530] sm:$0xff]
        %v659 = vld [vmem:[%s402 + $0x538] sm:$0xff]
        %v660 = vld [vmem:[%s402 + $0x540] sm:$0xff]
        %v661 = vld [vmem:[%s402 + $0x548] sm:$0xff]
        %v662 = vld [vmem:[%s402 + $0x550] sm:$0xff]
        %v663 = vld [vmem:[%s402 + $0x558] sm:$0xff]
        %v664 = vld [vmem:[%s402 + $0x560] sm:$0xff]
        %v665 = vld [vmem:[%s402 + $0x568] sm:$0xff]
        %v666 = vld [vmem:[%s402 + $0x570] sm:$0xff]
        %v667 = vld [vmem:[%s402 + $0x578] sm:$0xff]
        %v668 = vld [vmem:[%s402 + $0x580] sm:$0xff]
        %v669 = vld [vmem:[%s402 + $0x588] sm:$0xff]
        %v670 = vld [vmem:[%s402 + $0x590] sm:$0xff]
        %v671 = vld [vmem:[%s402 + $0x598] sm:$0xff]
        %v672 = vld [vmem:[%s402 + $0x5a0] sm:$0xff]
        %v673 = vld [vmem:[%s402 + $0x5a8] sm:$0xff]
        %v674 = vld [vmem:[%s402 + $0x5b0] sm:$0xff]
        %v675 = vld [vmem:[%s402 + $0x5b8] sm:$0xff]
        %v676 = vld [vmem:[%s402 + $0x5c0] sm:$0xff]
        %v677 = vld [vmem:[%s402 + $0x5c8] sm:$0xff]
        %v678 = vld [vmem:[%s402 + $0x5d0] sm:$0xff]
        %v679 = vld [vmem:[%s402 + $0x5d8] sm:$0xff]
        %v680 = vld [vmem:[%s402 + $0x5e0] sm:$0xff]
        %v681 = vld [vmem:[%s402 + $0x5e8] sm:$0xff]
        %v682 = vld [vmem:[%s402 + $0x5f0] sm:$0xff]
        %v683 = vld [vmem:[%s402 + $0x5f8] sm:$0xff]
        %v684 = vld [vmem:[%s402 + $0x600] sm:$0xff]
        %v685 = vld [vmem:[%s402 + $0x608] sm:$0xff]
        %v686 = vld [vmem:[%s402 + $0x610] sm:$0xff]
        %v687 = vld [vmem:[%s402 + $0x618] sm:$0xff]
        %v688 = vld [vmem:[%s402 + $0x620] sm:$0xff]
        %v689 = vld [vmem:[%s402 + $0x628] sm:$0xff]
        %v690 = vld [vmem:[%s402 + $0x630] sm:$0xff]
        %v691 = vld [vmem:[%s402 + $0x638] sm:$0xff]
        %v692 = vld [vmem:[%s402 + $0x640] sm:$0xff]
        %v693 = vld [vmem:[%s402 + $0x648] sm:$0xff]
        %v694 = vld [vmem:[%s402 + $0x650] sm:$0xff]
        %v695 = vld [vmem:[%s402 + $0x658] sm:$0xff]
        %v696 = vld [vmem:[%s402 + $0x660] sm:$0xff]
        %v697 = vld [vmem:[%s402 + $0x668] sm:$0xff]
        %v698 = vld [vmem:[%s402 + $0x670] sm:$0xff]
        %v699 = vld [vmem:[%s402 + $0x678] sm:$0xff]
        %v700 = vld [vmem:[%s402 + $0x680] sm:$0xff]
        %v701 = vld [vmem:[%s402 + $0x688] sm:$0xff]
        %v702 = vld [vmem:[%s402 + $0x690] sm:$0xff]
        %v703 = vld [vmem:[%s402 + $0x698] sm:$0xff]
        %v704 = vld [vmem:[%s402 + $0x6a0] sm:$0xff]
        %v705 = vld [vmem:[%s402 + $0x6a8] sm:$0xff]
        %v706 = vld [vmem:[%s402 + $0x6b0] sm:$0xff]
        %v707 = vld [vmem:[%s402 + $0x6b8] sm:$0xff]
        %v708 = vld [vmem:[%s402 + $0x6c0] sm:$0xff]
        %v709 = vld [vmem:[%s402 + $0x6c8] sm:$0xff]
        %v710 = vld [vmem:[%s402 + $0x6d0] sm:$0xff]
        %v711 = vld [vmem:[%s402 + $0x6d8] sm:$0xff]
        %v712 = vld [vmem:[%s402 + $0x6e0] sm:$0xff]
        %v713 = vld [vmem:[%s402 + $0x6e8] sm:$0xff]
        %v714 = vld [vmem:[%s402 + $0x6f0] sm:$0xff]
        %v715 = vld [vmem:[%s402 + $0x6f8] sm:$0xff]
        %v716 = vld [vmem:[%s402 + $0x700] sm:$0xff]
        %v717 = vld [vmem:[%s402 + $0x708] sm:$0xff]
        %v718 = vld [vmem:[%s402 + $0x710] sm:$0xff]
        %v719 = vld [vmem:[%s402 + $0x718] sm:$0xff]
        %v720 = vld [vmem:[%s402 + $0x720] sm:$0xff]
        %v721 = vld [vmem:[%s402 + $0x728] sm:$0xff]
        %v722 = vld [vmem:[%s402 + $0x730] sm:$0xff]
        %v723 = vld [vmem:[%s402 + $0x738] sm:$0xff]
        %v724 = vld [vmem:[%s402 + $0x740] sm:$0xff]
        %v725 = vld [vmem:[%s402 + $0x748] sm:$0xff]
        %v726 = vld [vmem:[%s402 + $0x750] sm:$0xff]
        %v727 = vld [vmem:[%s402 + $0x758] sm:$0xff]
        %v728 = vld [vmem:[%s402 + $0x760] sm:$0xff]
        %v729 = vld [vmem:[%s402 + $0x768] sm:$0xff]
        %v730 = vld [vmem:[%s402 + $0x770] sm:$0xff]
        %v731 = vld [vmem:[%s402 + $0x778] sm:$0xff]
        %v732 = vld [vmem:[%s402 + $0x780] sm:$0xff]
        %v733 = vld [vmem:[%s402 + $0x788] sm:$0xff]
        %v734 = vld [vmem:[%s402 + $0x790] sm:$0xff]
        %v735 = vld [vmem:[%s402 + $0x798] sm:$0xff]
        %v736 = vld [vmem:[%s402 + $0x7a0] sm:$0xff]
        %v737 = vld [vmem:[%s402 + $0x7a8] sm:$0xff]
        %v738 = vld [vmem:[%s402 + $0x7b0] sm:$0xff]
        %v739 = vld [vmem:[%s402 + $0x7b8] sm:$0xff]
        %v740 = vld [vmem:[%s402 + $0x7c0] sm:$0xff]
        %v741 = vld [vmem:[%s402 + $0x7c8] sm:$0xff]
        %v742 = vld [vmem:[%s402 + $0x7d0] sm:$0xff]
        %v743 = vld [vmem:[%s402 + $0x7d8] sm:$0xff]
        %v744 = vld [vmem:[%s402 + $0x7e0] sm:$0xff]
        %v745 = vld [vmem:[%s402 + $0x7e8] sm:$0xff]
        %v746 = vld [vmem:[%s402 + $0x7f0] sm:$0xff]
        %v747 = vld [vmem:[%s402 + $0x7f8] sm:$0xff]
        %v748 = vld [vmem:[%s402 + $0x800] sm:$0xff]
        %v749 = vld [vmem:[%s402 + $0x808] sm:$0xff]
        %v750 = vld [vmem:[%s402 + $0x810] sm:$0xff]
        %v751 = vld [vmem:[%s402 + $0x818] sm:$0xff]
        %v752 = vld [vmem:[%s402 + $0x820] sm:$0xff]
        %v753 = vld [vmem:[%s402 + $0x828] sm:$0xff]
        %v754 = vld [vmem:[%s402 + $0x830] sm:$0xff]
        %v755 = vld [vmem:[%s402 + $0x838] sm:$0xff]
        %v756 = vld [vmem:[%s402 + $0x840] sm:$0xff]
        %v757 = vld [vmem:[%s402 + $0x848] sm:$0xff]
        %v758 = vld [vmem:[%s402 + $0x850] sm:$0xff]
        %v759 = vld [vmem:[%s402 + $0x858] sm:$0xff]
        %v760 = vld [vmem:[%s402 + $0x860] sm:$0xff]
        %v761 = vld [vmem:[%s402 + $0x868] sm:$0xff]
        %v762 = vld [vmem:[%s402 + $0x870] sm:$0xff]
        %v763 = vld [vmem:[%s402 + $0x878] sm:$0xff]
        %v764 = vld [vmem:[%s402 + $0x880] sm:$0xff]
        %v765 = vld [vmem:[%s402 + $0x888] sm:$0xff]
        %v766 = vld [vmem:[%s402 + $0x890] sm:$0xff]
        %v767 = vld [vmem:[%s402 + $0x898] sm:$0xff]
        %v768 = vld [vmem:[%s402 + $0x8a0] sm:$0xff]
        %v769 = vld [vmem:[%s402 + $0x8a8] sm:$0xff]
        %v770 = vld [vmem:[%s402 + $0x8b0] sm:$0xff]
        %v771 = vld [vmem:[%s402 + $0x8b8] sm:$0xff]
        %v772 = vld [vmem:[%s402 + $0x8c0] sm:$0xff]
        %v773 = vld [vmem:[%s402 + $0x8c8] sm:$0xff]
        %v774 = vld [vmem:[%s402 + $0x8d0] sm:$0xff]
        %v775 = vld [vmem:[%s402 + $0x8d8] sm:$0xff]
        %v776 = vld [vmem:[%s402 + $0x8e0] sm:$0xff]
        %v777 = vld [vmem:[%s402 + $0x8e8] sm:$0xff]
        %v778 = vld [vmem:[%s402 + $0x8f0] sm:$0xff]
        %v779 = vld [vmem:[%s402 + $0x8f8] sm:$0xff]
        %v780 = vld [vmem:[%s402 + $0x900] sm:$0xff]
        %v781 = vld [vmem:[%s402 + $0x908] sm:$0xff]
        %v782 = vld [vmem:[%s402 + $0x910] sm:$0xff]
        %v783 = vld [vmem:[%s402 + $0x918] sm:$0xff]
        %v784 = vld [vmem:[%s402 + $0x920] sm:$0xff]
        %v785 = vld [vmem:[%s402 + $0x928] sm:$0xff]
        %v786 = vld [vmem:[%s402 + $0x930] sm:$0xff]
        %v787 = vld [vmem:[%s402 + $0x938] sm:$0xff]
        %v788 = vld [vmem:[%s402 + $0x940] sm:$0xff]
        %v789 = vld [vmem:[%s402 + $0x948] sm:$0xff]
        %v790 = vld [vmem:[%s402 + $0x950] sm:$0xff]
        %v791 = vld [vmem:[%s402 + $0x958] sm:$0xff]
        %v792 = vld [vmem:[%s402 + $0x960] sm:$0xff]
        %v793 = vld [vmem:[%s402 + $0x968] sm:$0xff]
        %v794 = vld [vmem:[%s402 + $0x970] sm:$0xff]
        %v795 = vld [vmem:[%s402 + $0x978] sm:$0xff]
        %v796 = vld [vmem:[%s402 + $0x980] sm:$0xff]
        %v797 = vld [vmem:[%s402 + $0x988] sm:$0xff]
        %v798 = vld [vmem:[%s402 + $0x990] sm:$0xff]
        %v799 = vld [vmem:[%s402 + $0x998] sm:$0xff]
        %v800 = vld [vmem:[%s402 + $0x9a0] sm:$0xff]
        %v801 = vld [vmem:[%s402 + $0x9a8] sm:$0xff]
        %v802 = vld [vmem:[%s402 + $0x9b0] sm:$0xff]
        %v803 = vld [vmem:[%s402 + $0x9b8] sm:$0xff]
        %v804 = vld [vmem:[%s402 + $0x9c0] sm:$0xff]
        %v805 = vld [vmem:[%s402 + $0x9c8] sm:$0xff]
        %v806 = vld [vmem:[%s402 + $0x9d0] sm:$0xff]
        %v807 = vld [vmem:[%s402 + $0x9d8] sm:$0xff]
        %v808 = vld [vmem:[%s402 + $0x9e0] sm:$0xff]
        %v809 = vld [vmem:[%s402 + $0x9e8] sm:$0xff]
        %v810 = vld [vmem:[%s402 + $0x9f0] sm:$0xff]
        %v811 = vld [vmem:[%s402 + $0x9f8] sm:$0xff]
        %v812 = vld [vmem:[%s402 + $0xa00] sm:$0xff]
        %v813 = vld [vmem:[%s402 + $0xa08] sm:$0xff]
        %v814 = vld [vmem:[%s402 + $0xa10] sm:$0xff]
        %v815 = vld [vmem:[%s402 + $0xa18] sm:$0xff]
        %v816 = vld [vmem:[%s402 + $0xa20] sm:$0xff]
        %v817 = vld [vmem:[%s402 + $0xa28] sm:$0xff]
        %v818 = vld [vmem:[%s402 + $0xa30] sm:$0xff]
        %v819 = vld [vmem:[%s402 + $0xa38] sm:$0xff]
        %v820 = vld [vmem:[%s402 + $0xa40] sm:$0xff]
        %v821 = vld [vmem:[%s402 + $0xa48] sm:$0xff]
        %v822 = vld [vmem:[%s402 + $0xa50] sm:$0xff]
        %v823 = vld [vmem:[%s402 + $0xa58] sm:$0xff]
        %v824 = vld [vmem:[%s402 + $0xa60] sm:$0xff]
        %v825 = vld [vmem:[%s402 + $0xa68] sm:$0xff]
        %v826 = vld [vmem:[%s402 + $0xa70] sm:$0xff]
        %v827 = vld [vmem:[%s402 + $0xa78] sm:$0xff]
        %v828 = vld [vmem:[%s402 + $0xa80] sm:$0xff]
        %v829 = vld [vmem:[%s402 + $0xa88] sm:$0xff]
        %v830 = vld [vmem:[%s402 + $0xa90] sm:$0xff]
        %v831 = vld [vmem:[%s402 + $0xa98] sm:$0xff]
        %v832 = vld [vmem:[%s402 + $0xaa0] sm:$0xff]
        %v833 = vld [vmem:[%s402 + $0xaa8] sm:$0xff]
        %v834 = vld [vmem:[%s402 + $0xab0] sm:$0xff]
        %v835 = vld [vmem:[%s402 + $0xab8] sm:$0xff]
        %v836 = vld [vmem:[%s402 + $0xac0] sm:$0xff]
        %v837 = vld [vmem:[%s402 + $0xac8] sm:$0xff]
        %v838 = vld [vmem:[%s402 + $0xad0] sm:$0xff]
        %v839 = vld [vmem:[%s402 + $0xad8] sm:$0xff]
        %v840 = vld [vmem:[%s402 + $0xae0] sm:$0xff]
        %v841 = vld [vmem:[%s402 + $0xae8] sm:$0xff]
        %v842 = vld [vmem:[%s402 + $0xaf0] sm:$0xff]
        %v843 = vld [vmem:[%s402 + $0xaf8] sm:$0xff]
        %v844 = vld [vmem:[%s402 + $0xb00] sm:$0xff]
        %v845 = vld [vmem:[%s402 + $0xb08] sm:$0xff]
        %v846 = vld [vmem:[%s402 + $0xb10] sm:$0xff]
        %v847 = vld [vmem:[%s402 + $0xb18] sm:$0xff]
        %v848 = vld [vmem:[%s402 + $0xb20] sm:$0xff]
        %v849 = vld [vmem:[%s402 + $0xb28] sm:$0xff]
        %v850 = vld [vmem:[%s402 + $0xb30] sm:$0xff]
        %v851 = vld [vmem:[%s402 + $0xb38] sm:$0xff]
        %v852 = vld [vmem:[%s402 + $0xb40] sm:$0xff]
        %v853 = vld [vmem:[%s402 + $0xb48] sm:$0xff]
        %v854 = vld [vmem:[%s402 + $0xb50] sm:$0xff]
        %v855 = vld [vmem:[%s402 + $0xb58] sm:$0xff]
        %v856 = vld [vmem:[%s402 + $0xb60] sm:$0xff]
        %v857 = vld [vmem:[%s402 + $0xb68] sm:$0xff]
        %v858 = vld [vmem:[%s402 + $0xb70] sm:$0xff]
        %v859 = vld [vmem:[%s402 + $0xb78] sm:$0xff]
        %v860 = vld [vmem:[%s402 + $0xb80] sm:$0xff]
        %v861 = vld [vmem:[%s402 + $0xb88] sm:$0xff]
        %v862 = vld [vmem:[%s402 + $0xb90] sm:$0xff]
        %v863 = vld [vmem:[%s402 + $0xb98] sm:$0xff]
        %v864 = vld [vmem:[%s402 + $0xba0] sm:$0xff]
        %v865 = vld [vmem:[%s402 + $0xba8] sm:$0xff]
        %v866 = vld [vmem:[%s402 + $0xbb0] sm:$0xff]
        %v867 = vld [vmem:[%s402 + $0xbb8] sm:$0xff]
        %v868 = vld [vmem:[%s402 + $0xbc0] sm:$0xff]
        %v869 = vld [vmem:[%s402 + $0xbc8] sm:$0xff]
        %v870 = vld [vmem:[%s402 + $0xbd0] sm:$0xff]
        %v871 = vld [vmem:[%s402 + $0xbd8] sm:$0xff]
        %v872 = vld [vmem:[%s402 + $0xbe0] sm:$0xff]
        %v873 = vld [vmem:[%s402 + $0xbe8] sm:$0xff]
        %v874 = vld [vmem:[%s402 + $0xbf0] sm:$0xff]
        %v875 = vld [vmem:[%s402 + $0xbf8] sm:$0xff]
        %v876 = vld [vmem:[%s402 + $0xc00] sm:$0xff]
        %v877 = vld [vmem:[%s402 + $0xc08] sm:$0xff]
        %v878 = vld [vmem:[%s402 + $0xc10] sm:$0xff]
        %v879 = vld [vmem:[%s402 + $0xc18] sm:$0xff]
        %v880 = vld [vmem:[%s402 + $0xc20] sm:$0xff]
        %v881 = vld [vmem:[%s402 + $0xc28] sm:$0xff]
        %v882 = vld [vmem:[%s402 + $0xc30] sm:$0xff]
        %v883 = vld [vmem:[%s402 + $0xc38] sm:$0xff]
        %v884 = vld [vmem:[%s402 + $0xc40] sm:$0xff]
        %v885 = vld [vmem:[%s402 + $0xc48] sm:$0xff]
        %v886 = vld [vmem:[%s402 + $0xc50] sm:$0xff]
        %v887 = vld [vmem:[%s402 + $0xc58] sm:$0xff]
        %v888 = vld [vmem:[%s402 + $0xc60] sm:$0xff]
        %v889 = vld [vmem:[%s402 + $0xc68] sm:$0xff]
        %v890 = vld [vmem:[%s402 + $0xc70] sm:$0xff]
        %v891 = vld [vmem:[%s402 + $0xc78] sm:$0xff]
        %v892 = vld [vmem:[%s402 + $0xc80] sm:$0xff]
        %v893 = vld [vmem:[%s402 + $0xc88] sm:$0xff]
        %v894 = vld [vmem:[%s402 + $0xc90] sm:$0xff]
        %v895 = vld [vmem:[%s402 + $0xc98] sm:$0xff]
        %v896 = vld [vmem:[%s402 + $0xca0] sm:$0xff]
        %v897 = vld [vmem:[%s402 + $0xca8] sm:$0xff]
        %v898 = vld [vmem:[%s402 + $0xcb0] sm:$0xff]
        %v899 = vld [vmem:[%s402 + $0xcb8] sm:$0xff]
        %v900 = vld [vmem:[%s402 + $0xcc0] sm:$0xff]
        %v901 = vld [vmem:[%s402 + $0xcc8] sm:$0xff]
        %v902 = vld [vmem:[%s402 + $0xcd0] sm:$0xff]
        %v903 = vld [vmem:[%s402 + $0xcd8] sm:$0xff]
        %v904 = vld [vmem:[%s402 + $0xce0] sm:$0xff]
        %v905 = vld [vmem:[%s402 + $0xce8] sm:$0xff]
        %v906 = vld [vmem:[%s402 + $0xcf0] sm:$0xff]
        %v907 = vld [vmem:[%s402 + $0xcf8] sm:$0xff]
        %v908 = vld [vmem:[%s402 + $0xd00] sm:$0xff]
        %v909 = vld [vmem:[%s402 + $0xd08] sm:$0xff]
        %v910 = vld [vmem:[%s402 + $0xd10] sm:$0xff]
        %v911 = vld [vmem:[%s402 + $0xd18] sm:$0xff]
        %v912 = vld [vmem:[%s402 + $0xd20] sm:$0xff]
        %v913 = vld [vmem:[%s402 + $0xd28] sm:$0xff]
        %v914 = vld [vmem:[%s402 + $0xd30] sm:$0xff]
        %v915 = vld [vmem:[%s402 + $0xd38] sm:$0xff]
        %v916 = vld [vmem:[%s402 + $0xd40] sm:$0xff]
        %v917 = vld [vmem:[%s402 + $0xd48] sm:$0xff]
        %v918 = vld [vmem:[%s402 + $0xd50] sm:$0xff]
        %v919 = vld [vmem:[%s402 + $0xd58] sm:$0xff]
        %v920 = vld [vmem:[%s402 + $0xd60] sm:$0xff]
        %v921 = vld [vmem:[%s402 + $0xd68] sm:$0xff]
        %v922 = vld [vmem:[%s402 + $0xd70] sm:$0xff]
        %v923 = vld [vmem:[%s402 + $0xd78] sm:$0xff]
        %v924 = vld [vmem:[%s402 + $0xd80] sm:$0xff]
        %v925 = vld [vmem:[%s402 + $0xd88] sm:$0xff]
        %v926 = vld [vmem:[%s402 + $0xd90] sm:$0xff]
        %v927 = vld [vmem:[%s402 + $0xd98] sm:$0xff]
        %v928 = vld [vmem:[%s402 + $0xda0] sm:$0xff]
        %v929 = vld [vmem:[%s402 + $0xda8] sm:$0xff]
        %v930 = vld [vmem:[%s402 + $0xdb0] sm:$0xff]
        %v931 = vld [vmem:[%s402 + $0xdb8] sm:$0xff]
        %v932 = vld [vmem:[%s402 + $0xdc0] sm:$0xff]
        %v933 = vld [vmem:[%s402 + $0xdc8] sm:$0xff]
        %v934 = vld [vmem:[%s402 + $0xdd0] sm:$0xff]
        %v935 = vld [vmem:[%s402 + $0xdd8] sm:$0xff]
        %v936 = vld [vmem:[%s402 + $0xde0] sm:$0xff]
        %v937 = vld [vmem:[%s402 + $0xde8] sm:$0xff]
        %v938 = vld [vmem:[%s402 + $0xdf0] sm:$0xff]
        %v939 = vld [vmem:[%s402 + $0xdf8] sm:$0xff]
        %v940 = vld [vmem:[%s402 + $0xe00] sm:$0xff]
        %v941 = vld [vmem:[%s402 + $0xe08] sm:$0xff]
        %v942 = vld [vmem:[%s402 + $0xe10] sm:$0xff]
        %v943 = vld [vmem:[%s402 + $0xe18] sm:$0xff]
        %v944 = vld [vmem:[%s402 + $0xe20] sm:$0xff]
        %v945 = vld [vmem:[%s402 + $0xe28] sm:$0xff]
        %v946 = vld [vmem:[%s402 + $0xe30] sm:$0xff]
        %v947 = vld [vmem:[%s402 + $0xe38] sm:$0xff]
        %v948 = vld [vmem:[%s402 + $0xe40] sm:$0xff]
        %v949 = vld [vmem:[%s402 + $0xe48] sm:$0xff]
        %v950 = vld [vmem:[%s402 + $0xe50] sm:$0xff]
        %v951 = vld [vmem:[%s402 + $0xe58] sm:$0xff]
        %v952 = vld [vmem:[%s402 + $0xe60] sm:$0xff]
        %v953 = vld [vmem:[%s402 + $0xe68] sm:$0xff]
        %v954 = vld [vmem:[%s402 + $0xe70] sm:$0xff]
        %v955 = vld [vmem:[%s402 + $0xe78] sm:$0xff]
        %v956 = vld [vmem:[%s402 + $0xe80] sm:$0xff]
        %v957 = vld [vmem:[%s402 + $0xe88] sm:$0xff]
        %v958 = vld [vmem:[%s402 + $0xe90] sm:$0xff]
        %v959 = vld [vmem:[%s402 + $0xe98] sm:$0xff]
        %v960 = vld [vmem:[%s402 + $0xea0] sm:$0xff]
        %v961 = vld [vmem:[%s402 + $0xea8] sm:$0xff]
        %v962 = vld [vmem:[%s402 + $0xeb0] sm:$0xff]
        %v963 = vld [vmem:[%s402 + $0xeb8] sm:$0xff]
        %v964 = vld [vmem:[%s402 + $0xec0] sm:$0xff]
        %v965 = vld [vmem:[%s402 + $0xec8] sm:$0xff]
        %v966 = vld [vmem:[%s402 + $0xed0] sm:$0xff]
        %v967 = vld [vmem:[%s402 + $0xed8] sm:$0xff]
        %v968 = vld [vmem:[%s402 + $0xee0] sm:$0xff]
        %v969 = vld [vmem:[%s402 + $0xee8] sm:$0xff]
        %v970 = vld [vmem:[%s402 + $0xef0] sm:$0xff]
        %v971 = vld [vmem:[%s402 + $0xef8] sm:$0xff]
        %v972 = vld [vmem:[%s402 + $0xf00] sm:$0xff]
        %v973 = vld [vmem:[%s402 + $0xf08] sm:$0xff]
        %v974 = vld [vmem:[%s402 + $0xf10] sm:$0xff]
        %v975 = vld [vmem:[%s402 + $0xf18] sm:$0xff]
        %v976 = vld [vmem:[%s402 + $0xf20] sm:$0xff]
        %v977 = vld [vmem:[%s402 + $0xf28] sm:$0xff]
        %v978 = vld [vmem:[%s402 + $0xf30] sm:$0xff]
        %v979 = vld [vmem:[%s402 + $0xf38] sm:$0xff]
        %v980 = vld [vmem:[%s402 + $0xf40] sm:$0xff]
        %v981 = vld [vmem:[%s402 + $0xf48] sm:$0xff]
        %v982 = vld [vmem:[%s402 + $0xf50] sm:$0xff]
        %v983 = vld [vmem:[%s402 + $0xf58] sm:$0xff]
        %v984 = vld [vmem:[%s402 + $0xf60] sm:$0xff]
        %v985 = vld [vmem:[%s402 + $0xf68] sm:$0xff]
        %v986 = vld [vmem:[%s402 + $0xf70] sm:$0xff]
        %v987 = vld [vmem:[%s402 + $0xf78] sm:$0xff]
        %v988 = vld [vmem:[%s402 + $0xf80] sm:$0xff]
        %v989 = vld [vmem:[%s402 + $0xf88] sm:$0xff]
        %v990 = vld [vmem:[%s402 + $0xf90] sm:$0xff]
        %v991 = vld [vmem:[%s402 + $0xf98] sm:$0xff]
        %v992 = vld [vmem:[%s402 + $0xfa0] sm:$0xff]
        %v993 = vld [vmem:[%s402 + $0xfa8] sm:$0xff]
        %v994 = vld [vmem:[%s402 + $0xfb0] sm:$0xff]
        %v995 = vld [vmem:[%s402 + $0xfb8] sm:$0xff]
        %v996 = vld [vmem:[%s402 + $0xfc0] sm:$0xff]
        %v997 = vld [vmem:[%s402 + $0xfc8] sm:$0xff]
        %v998 = vld [vmem:[%s402 + $0xfd0] sm:$0xff]
        %v999 = vld [vmem:[%s402 + $0xfd8] sm:$0xff]
        %v1000 = vld [vmem:[%s402 + $0xfe0] sm:$0xff]
        %v1001 = vld [vmem:[%s402 + $0xfe8] sm:$0xff]
        %v1002 = vld [vmem:[%s402 + $0xff0] sm:$0xff]
        %v1003 = vld [vmem:[%s402 + $0xff8] sm:$0xff]
        %v1004 = vld [vmem:[%s402 + $0x1000] sm:$0x11]
        %v1005 = vld [vmem:[%s412] sm:$0x3]
        %v1007 = vperm.slane %v1005, 0
        %v1008 = vperm.slane %v1005, 1
        %1012 = vst [vmem:[#allocation1] ss:$9 sm:$0xff] %v487
        %v1013 = vld [vmem:[#allocation1] sm:$0xff]
        %v1014 = vld [vmem:[#allocation1 + $0x9] sm:$0xff]
        %v1015 = vld [vmem:[#allocation1 + $0x12] sm:$0xff]
        %v1016 = vld [vmem:[#allocation1 + $0x1b] sm:$0xff]
        %v1017 = vld [vmem:[#allocation1 + $0x24] sm:$0xff]
        %v1018 = vld [vmem:[#allocation1 + $0x2d] sm:$0xff]
        %v1019 = vld [vmem:[#allocation1 + $0x36] sm:$0xff]
        %v1020 = vld [vmem:[#allocation1 + $0x3f] sm:$0xff]
        %1022 = vst [vmem:[#allocation1] ss:$9 sm:$0xff] %v488
        %v1023 = vld [vmem:[#allocation1] sm:$0xff]
        %v1024 = vld [vmem:[#allocation1 + $0x9] sm:$0xff]
        %v1025 = vld [vmem:[#allocation1 + $0x12] sm:$0xff]
        %v1026 = vld [vmem:[#allocation1 + $0x1b] sm:$0xff]
        %v1027 = vld [vmem:[#allocation1 + $0x24] sm:$0xff]
        %v1028 = vld [vmem:[#allocation1 + $0x2d] sm:$0xff]
        %v1029 = vld [vmem:[#allocation1 + $0x36] sm:$0xff]
        %v1030 = vld [vmem:[#allocation1 + $0x3f] sm:$0xff]
        %1032 = vst [vmem:[#allocation1] ss:$9 sm:$0xff] %v489
        %v1033 = vld [vmem:[#allocation1] sm:$0xff]
        %v1034 = vld [vmem:[#allocation1 + $0x9] sm:$0xff]
        %v1035 = vld [vmem:[#allocation1 + $0x12] sm:$0xff]
        %v1036 = vld [vmem:[#allocation1 + $0x1b] sm:$0xff]
        %v1037 = vld [vmem:[#allocation1 + $0x24] sm:$0xff]
        %v1038 = vld [vmem:[#allocation1 + $0x2d] sm:$0xff]
        %v1039 = vld [vmem:[#allocation1 + $0x36] sm:$0xff]
        %v1040 = vld [vmem:[#allocation1 + $0x3f] sm:$0xff]
        %1042 = vst [vmem:[#allocation1] ss:$9 sm:$0xff] %v490
        %v1043 = vld [vmem:[#allocation1] sm:$0xff]
        %v1044 = vld [vmem:[#allocation1 + $0x9] sm:$0xff]
        %v1045 = vld [vmem:[#allocation1 + $0x12] sm:$0xff]
        %v1046 = vld [vmem:[#allocation1 + $0x1b] sm:$0xff]
        %v1047 = vld [vmem:[#allocation1 + $0x24] sm:$0xff]
        %v1048 = vld [vmem:[#allocation1 + $0x2d] sm:$0xff]
        %v1049 = vld [vmem:[#allocation1 + $0x36] sm:$0xff]
        %v1050 = vld [vmem:[#allocation1 + $0x3f] sm:$0xff]
        %1052 = vst [vmem:[#allocation1] ss:$9 sm:$0xff] %v491
        %v1053 = vld [vmem:[#allocation1] sm:$0xff]
        %v1599 = vunpack.c.l.b16 %v492
        %v1600 = vunpack.c.h.b16 %v492
        %v1601 = vunpack.c.l.b16 %v493
        %v1602 = vunpack.c.h.b16 %v493
        %v1603 = vunpack.c.l.b16 %v494
        %v1604 = vunpack.c.h.b16 %v494
        %v1605 = vunpack.c.l.b16 %v495
        %v1606 = vunpack.c.h.b16 %v495
        %v1607 = vunpack.c.l.b16 %v496
        %v1608 = vunpack.c.h.b16 %v496
        %v1609 = vunpack.c.l.b16 %v497
        %v1610 = vunpack.c.h.b16 %v497
        %v1611 = vunpack.c.l.b16 %v498
        %v1612 = vunpack.c.h.b16 %v498
        %v1613 = vunpack.c.l.b16 %v499
        %v1614 = vunpack.c.h.b16 %v499
        %v1615 = vunpack.c.l.b16 %v500
        %v1616 = vunpack.c.h.b16 %v500
        %v1617 = vunpack.c.l.b16 %v501
        %v1618 = vunpack.c.h.b16 %v501
        %v1619 = vunpack.c.l.b16 %v502
        %v1620 = vunpack.c.h.b16 %v502
        %v1621 = vunpack.c.l.b16 %v503
        %v1622 = vunpack.c.h.b16 %v503
        %v1623 = vunpack.c.l.b16 %v504
        %v1624 = vunpack.c.h.b16 %v504
        %v1625 = vunpack.c.l.b16 %v505
        %v1626 = vunpack.c.h.b16 %v505
        %v1627 = vunpack.c.l.b16 %v506
        %v1628 = vunpack.c.h.b16 %v506
        %v1629 = vunpack.c.l.b16 %v507
        %v1630 = vunpack.c.h.b16 %v507
        %v1631 = vunpack.c.l.b16 %v508
        %v1632 = vunpack.c.h.b16 %v508
        %v1633 = vunpack.c.l.b16 %v509
        %v1634 = vunpack.c.h.b16 %v509
        %v1635 = vunpack.c.l.b16 %v510
        %v1636 = vunpack.c.h.b16 %v510
        %v1637 = vunpack.c.l.b16 %v511
        %v1638 = vunpack.c.h.b16 %v511
        %v1639 = vunpack.c.l.b16 %v512
        %v1640 = vunpack.c.h.b16 %v512
        %v1641 = vunpack.c.l.b16 %v513
        %v1642 = vunpack.c.h.b16 %v513
        %v1643 = vunpack.c.l.b16 %v514
        %v1644 = vunpack.c.h.b16 %v514
        %v1645 = vunpack.c.l.b16 %v515
        %v1646 = vunpack.c.h.b16 %v515
        %v1647 = vunpack.c.l.b16 %v516
        %v1648 = vunpack.c.h.b16 %v516
        %v1649 = vunpack.c.l.b16 %v517
        %v1650 = vunpack.c.h.b16 %v517
        %v1651 = vunpack.c.l.b16 %v518
        %v1652 = vunpack.c.h.b16 %v518
        %v1653 = vunpack.c.l.b16 %v519
        %v1654 = vunpack.c.h.b16 %v519
        %v1655 = vunpack.c.l.b16 %v520
        %v1656 = vunpack.c.h.b16 %v520
        %v1657 = vunpack.c.l.b16 %v521
        %v1658 = vunpack.c.h.b16 %v521
        %v1659 = vunpack.c.l.b16 %v522
        %v1660 = vunpack.c.h.b16 %v522
        %v1661 = vunpack.c.l.b16 %v523
        %v1662 = vunpack.c.h.b16 %v523
        %v1663 = vunpack.c.l.b16 %v524
        %v1664 = vunpack.c.h.b16 %v524
        %v1665 = vunpack.c.l.b16 %v525
        %v1666 = vunpack.c.h.b16 %v525
        %v1667 = vunpack.c.l.b16 %v526
        %v1668 = vunpack.c.h.b16 %v526
        %v1669 = vunpack.c.l.b16 %v527
        %v1670 = vunpack.c.h.b16 %v527
        %v1671 = vunpack.c.l.b16 %v528
        %v1672 = vunpack.c.h.b16 %v528
        %v1673 = vunpack.c.l.b16 %v529
        %v1674 = vunpack.c.h.b16 %v529
        %v1675 = vunpack.c.l.b16 %v530
        %v1676 = vunpack.c.h.b16 %v530
        %v1677 = vunpack.c.l.b16 %v531
        %v1678 = vunpack.c.h.b16 %v531
        %v1679 = vunpack.c.l.b16 %v532
        %v1680 = vunpack.c.h.b16 %v532
        %v1681 = vunpack.c.l.b16 %v533
        %v1682 = vunpack.c.h.b16 %v533
        %v1683 = vunpack.c.l.b16 %v534
        %v1684 = vunpack.c.h.b16 %v534
        %v1685 = vunpack.c.l.b16 %v535
        %v1686 = vunpack.c.h.b16 %v535
        %v1687 = vunpack.c.l.b16 %v536
        %v1688 = vunpack.c.h.b16 %v536
        %v1689 = vunpack.c.l.b16 %v537
        %v1690 = vunpack.c.h.b16 %v537
        %v1691 = vunpack.c.l.b16 %v538
        %v1692 = vunpack.c.h.b16 %v538
        %v1693 = vunpack.c.l.b16 %v539
        %v1694 = vunpack.c.h.b16 %v539
        %v1695 = vunpack.c.l.b16 %v540
        %v1696 = vunpack.c.h.b16 %v540
        %v1697 = vunpack.c.l.b16 %v541
        %v1698 = vunpack.c.h.b16 %v541
        %v1699 = vunpack.c.l.b16 %v542
        %v1700 = vunpack.c.h.b16 %v542
        %v1701 = vunpack.c.l.b16 %v543
        %v1702 = vunpack.c.h.b16 %v543
        %v1703 = vunpack.c.l.b16 %v544
        %v1704 = vunpack.c.h.b16 %v544
        %v1705 = vunpack.c.l.b16 %v545
        %v1706 = vunpack.c.h.b16 %v545
        %v1707 = vunpack.c.l.b16 %v546
        %v1708 = vunpack.c.h.b16 %v546
        %v1709 = vunpack.c.l.b16 %v547
        %v1710 = vunpack.c.h.b16 %v547
        %v1711 = vunpack.c.l.b16 %v548
        %v1712 = vunpack.c.h.b16 %v548
        %v1713 = vunpack.c.l.b16 %v549
        %v1714 = vunpack.c.h.b16 %v549
        %v1715 = vunpack.c.l.b16 %v550
        %v1716 = vunpack.c.h.b16 %v550
        %v1717 = vunpack.c.l.b16 %v551
        %v1718 = vunpack.c.h.b16 %v551
        %v1719 = vunpack.c.l.b16 %v552
        %v1720 = vunpack.c.h.b16 %v552
        %v1721 = vunpack.c.l.b16 %v553
        %v1722 = vunpack.c.h.b16 %v553
        %v1723 = vunpack.c.l.b16 %v554
        %v1724 = vunpack.c.h.b16 %v554
        %v1725 = vunpack.c.l.b16 %v555
        %v1726 = vunpack.c.h.b16 %v555
        %v1727 = vunpack.c.l.b16 %v556
        %v1728 = vunpack.c.h.b16 %v556
        %v1729 = vunpack.c.l.b16 %v557
        %v1730 = vunpack.c.h.b16 %v557
        %v1731 = vunpack.c.l.b16 %v558
        %v1732 = vunpack.c.h.b16 %v558
        %v1733 = vunpack.c.l.b16 %v559
        %v1734 = vunpack.c.h.b16 %v559
        %v1735 = vunpack.c.l.b16 %v560
        %v1736 = vunpack.c.h.b16 %v560
        %v1737 = vunpack.c.l.b16 %v561
        %v1738 = vunpack.c.h.b16 %v561
        %v1739 = vunpack.c.l.b16 %v562
        %v1740 = vunpack.c.h.b16 %v562
        %v1741 = vunpack.c.l.b16 %v563
        %v1742 = vunpack.c.h.b16 %v563
        %v1743 = vunpack.c.l.b16 %v564
        %v1744 = vunpack.c.h.b16 %v564
        %v1745 = vunpack.c.l.b16 %v565
        %v1746 = vunpack.c.h.b16 %v565
        %v1747 = vunpack.c.l.b16 %v566
        %v1748 = vunpack.c.h.b16 %v566
        %v1749 = vunpack.c.l.b16 %v567
        %v1750 = vunpack.c.h.b16 %v567
        %v1751 = vunpack.c.l.b16 %v568
        %v1752 = vunpack.c.h.b16 %v568
        %v1753 = vunpack.c.l.b16 %v569
        %v1754 = vunpack.c.h.b16 %v569
        %v1755 = vunpack.c.l.b16 %v570
        %v1756 = vunpack.c.h.b16 %v570
        %v1757 = vunpack.c.l.b16 %v571
        %v1758 = vunpack.c.h.b16 %v571
        %v1759 = vunpack.c.l.b16 %v572
        %v1760 = vunpack.c.h.b16 %v572
        %v1761 = vunpack.c.l.b16 %v573
        %v1762 = vunpack.c.h.b16 %v573
        %v1763 = vunpack.c.l.b16 %v574
        %v1764 = vunpack.c.h.b16 %v574
        %v1765 = vunpack.c.l.b16 %v575
        %v1766 = vunpack.c.h.b16 %v575
        %v1767 = vunpack.c.l.b16 %v576
        %v1768 = vunpack.c.h.b16 %v576
        %v1769 = vunpack.c.l.b16 %v577
        %v1770 = vunpack.c.h.b16 %v577
        %v1771 = vunpack.c.l.b16 %v578
        %v1772 = vunpack.c.h.b16 %v578
        %v1773 = vunpack.c.l.b16 %v579
        %v1774 = vunpack.c.h.b16 %v579
        %v1775 = vunpack.c.l.b16 %v580
        %v1776 = vunpack.c.h.b16 %v580
        %v1777 = vunpack.c.l.b16 %v581
        %v1778 = vunpack.c.h.b16 %v581
        %v1779 = vunpack.c.l.b16 %v582
        %v1780 = vunpack.c.h.b16 %v582
        %v1781 = vunpack.c.l.b16 %v583
        %v1782 = vunpack.c.h.b16 %v583
        %v1783 = vunpack.c.l.b16 %v584
        %v1784 = vunpack.c.h.b16 %v584
        %v1785 = vunpack.c.l.b16 %v585
        %v1786 = vunpack.c.h.b16 %v585
        %v1787 = vunpack.c.l.b16 %v586
        %v1788 = vunpack.c.h.b16 %v586
        %v1789 = vunpack.c.l.b16 %v587
        %v1790 = vunpack.c.h.b16 %v587
        %v1791 = vunpack.c.l.b16 %v588
        %v1792 = vunpack.c.h.b16 %v588
        %v1793 = vunpack.c.l.b16 %v589
        %v1794 = vunpack.c.h.b16 %v589
        %v1795 = vunpack.c.l.b16 %v590
        %v1796 = vunpack.c.h.b16 %v590
        %v1797 = vunpack.c.l.b16 %v591
        %v1798 = vunpack.c.h.b16 %v591
        %v1799 = vunpack.c.l.b16 %v592
        %v1800 = vunpack.c.h.b16 %v592
        %v1801 = vunpack.c.l.b16 %v593
        %v1802 = vunpack.c.h.b16 %v593
        %v1803 = vunpack.c.l.b16 %v594
        %v1804 = vunpack.c.h.b16 %v594
        %v1805 = vunpack.c.l.b16 %v595
        %v1806 = vunpack.c.h.b16 %v595
        %v1807 = vunpack.c.l.b16 %v596
        %v1808 = vunpack.c.h.b16 %v596
        %v1809 = vunpack.c.l.b16 %v597
        %v1810 = vunpack.c.h.b16 %v597
        %v1811 = vunpack.c.l.b16 %v598
        %v1812 = vunpack.c.h.b16 %v598
        %v1813 = vunpack.c.l.b16 %v599
        %v1814 = vunpack.c.h.b16 %v599
        %v1815 = vunpack.c.l.b16 %v600
        %v1816 = vunpack.c.h.b16 %v600
        %v1817 = vunpack.c.l.b16 %v601
        %v1818 = vunpack.c.h.b16 %v601
        %v1819 = vunpack.c.l.b16 %v602
        %v1820 = vunpack.c.h.b16 %v602
        %v1821 = vunpack.c.l.b16 %v603
        %v1822 = vunpack.c.h.b16 %v603
        %v1823 = vunpack.c.l.b16 %v604
        %v1824 = vunpack.c.h.b16 %v604
        %v1825 = vunpack.c.l.b16 %v605
        %v1826 = vunpack.c.h.b16 %v605
        %v1827 = vunpack.c.l.b16 %v606
        %v1828 = vunpack.c.h.b16 %v606
        %v1829 = vunpack.c.l.b16 %v607
        %v1830 = vunpack.c.h.b16 %v607
        %v1831 = vunpack.c.l.b16 %v608
        %v1832 = vunpack.c.h.b16 %v608
        %v1833 = vunpack.c.l.b16 %v609
        %v1834 = vunpack.c.h.b16 %v609
        %v1835 = vunpack.c.l.b16 %v610
        %v1836 = vunpack.c.h.b16 %v610
        %v1837 = vunpack.c.l.b16 %v611
        %v1838 = vunpack.c.h.b16 %v611
        %v1839 = vunpack.c.l.b16 %v612
        %v1840 = vunpack.c.h.b16 %v612
        %v1841 = vunpack.c.l.b16 %v613
        %v1842 = vunpack.c.h.b16 %v613
        %v1843 = vunpack.c.l.b16 %v614
        %v1844 = vunpack.c.h.b16 %v614
        %v1845 = vunpack.c.l.b16 %v615
        %v1846 = vunpack.c.h.b16 %v615
        %v1847 = vunpack.c.l.b16 %v616
        %v1848 = vunpack.c.h.b16 %v616
        %v1849 = vunpack.c.l.b16 %v617
        %v1850 = vunpack.c.h.b16 %v617
        %v1851 = vunpack.c.l.b16 %v618
        %v1852 = vunpack.c.h.b16 %v618
        %v1853 = vunpack.c.l.b16 %v619
        %v1854 = vunpack.c.h.b16 %v619
        %v1855 = vunpack.c.l.b16 %v620
        %v1856 = vunpack.c.h.b16 %v620
        %v1857 = vunpack.c.l.b16 %v621
        %v1858 = vunpack.c.h.b16 %v621
        %v1859 = vunpack.c.l.b16 %v622
        %v1860 = vunpack.c.h.b16 %v622
        %v1861 = vunpack.c.l.b16 %v623
        %v1862 = vunpack.c.h.b16 %v623
        %v1863 = vunpack.c.l.b16 %v624
        %v1864 = vunpack.c.h.b16 %v624
        %v1865 = vunpack.c.l.b16 %v625
        %v1866 = vunpack.c.h.b16 %v625
        %v1867 = vunpack.c.l.b16 %v626
        %v1868 = vunpack.c.h.b16 %v626
        %v1869 = vunpack.c.l.b16 %v627
        %v1870 = vunpack.c.h.b16 %v627
        %v1871 = vunpack.c.l.b16 %v628
        %v1872 = vunpack.c.h.b16 %v628
        %v1873 = vunpack.c.l.b16 %v629
        %v1874 = vunpack.c.h.b16 %v629
        %v1875 = vunpack.c.l.b16 %v630
        %v1876 = vunpack.c.h.b16 %v630
        %v1877 = vunpack.c.l.b16 %v631
        %v1878 = vunpack.c.h.b16 %v631
        %v1879 = vunpack.c.l.b16 %v632
        %v1880 = vunpack.c.h.b16 %v632
        %v1881 = vunpack.c.l.b16 %v633
        %v1882 = vunpack.c.h.b16 %v633
        %v1883 = vunpack.c.l.b16 %v634
        %v1884 = vunpack.c.h.b16 %v634
        %v1885 = vunpack.c.l.b16 %v635
        %v1886 = vunpack.c.h.b16 %v635
        %v1887 = vunpack.c.l.b16 %v636
        %v1888 = vunpack.c.h.b16 %v636
        %v1889 = vunpack.c.l.b16 %v637
        %v1890 = vunpack.c.h.b16 %v637
        %v1891 = vunpack.c.l.b16 %v638
        %v1892 = vunpack.c.h.b16 %v638
        %v1893 = vunpack.c.l.b16 %v639
        %v1894 = vunpack.c.h.b16 %v639
        %v1895 = vunpack.c.l.b16 %v640
        %v1896 = vunpack.c.h.b16 %v640
        %v1897 = vunpack.c.l.b16 %v641
        %v1898 = vunpack.c.h.b16 %v641
        %v1899 = vunpack.c.l.b16 %v642
        %v1900 = vunpack.c.h.b16 %v642
        %v1901 = vunpack.c.l.b16 %v643
        %v1902 = vunpack.c.h.b16 %v643
        %v1903 = vunpack.c.l.b16 %v644
        %v1904 = vunpack.c.h.b16 %v644
        %v1905 = vunpack.c.l.b16 %v645
        %v1906 = vunpack.c.h.b16 %v645
        %v1907 = vunpack.c.l.b16 %v646
        %v1908 = vunpack.c.h.b16 %v646
        %v1909 = vunpack.c.l.b16 %v647
        %v1910 = vunpack.c.h.b16 %v647
        %v1911 = vunpack.c.l.b16 %v648
        %v1912 = vunpack.c.h.b16 %v648
        %v1913 = vunpack.c.l.b16 %v649
        %v1914 = vunpack.c.h.b16 %v649
        %v1915 = vunpack.c.l.b16 %v650
        %v1916 = vunpack.c.h.b16 %v650
        %v1917 = vunpack.c.l.b16 %v651
        %v1918 = vunpack.c.h.b16 %v651
        %v1919 = vunpack.c.l.b16 %v652
        %v1920 = vunpack.c.h.b16 %v652
        %v1921 = vunpack.c.l.b16 %v653
        %v1922 = vunpack.c.h.b16 %v653
        %v1923 = vunpack.c.l.b16 %v654
        %v1924 = vunpack.c.h.b16 %v654
        %v1925 = vunpack.c.l.b16 %v655
        %v1926 = vunpack.c.h.b16 %v655
        %v1927 = vunpack.c.l.b16 %v656
        %v1928 = vunpack.c.h.b16 %v656
        %v1929 = vunpack.c.l.b16 %v657
        %v1930 = vunpack.c.h.b16 %v657
        %v1931 = vunpack.c.l.b16 %v658
        %v1932 = vunpack.c.h.b16 %v658
        %v1933 = vunpack.c.l.b16 %v659
        %v1934 = vunpack.c.h.b16 %v659
        %v1935 = vunpack.c.l.b16 %v660
        %v1936 = vunpack.c.h.b16 %v660
        %v1937 = vunpack.c.l.b16 %v661
        %v1938 = vunpack.c.h.b16 %v661
        %v1939 = vunpack.c.l.b16 %v662
        %v1940 = vunpack.c.h.b16 %v662
        %v1941 = vunpack.c.l.b16 %v663
        %v1942 = vunpack.c.h.b16 %v663
        %v1943 = vunpack.c.l.b16 %v664
        %v1944 = vunpack.c.h.b16 %v664
        %v1945 = vunpack.c.l.b16 %v665
        %v1946 = vunpack.c.h.b16 %v665
        %v1947 = vunpack.c.l.b16 %v666
        %v1948 = vunpack.c.h.b16 %v666
        %v1949 = vunpack.c.l.b16 %v667
        %v1950 = vunpack.c.h.b16 %v667
        %v1951 = vunpack.c.l.b16 %v668
        %v1952 = vunpack.c.h.b16 %v668
        %v1953 = vunpack.c.l.b16 %v669
        %v1954 = vunpack.c.h.b16 %v669
        %v1955 = vunpack.c.l.b16 %v670
        %v1956 = vunpack.c.h.b16 %v670
        %v1957 = vunpack.c.l.b16 %v671
        %v1958 = vunpack.c.h.b16 %v671
        %v1959 = vunpack.c.l.b16 %v672
        %v1960 = vunpack.c.h.b16 %v672
        %v1961 = vunpack.c.l.b16 %v673
        %v1962 = vunpack.c.h.b16 %v673
        %v1963 = vunpack.c.l.b16 %v674
        %v1964 = vunpack.c.h.b16 %v674
        %v1965 = vunpack.c.l.b16 %v675
        %v1966 = vunpack.c.h.b16 %v675
        %v1967 = vunpack.c.l.b16 %v676
        %v1968 = vunpack.c.h.b16 %v676
        %v1969 = vunpack.c.l.b16 %v677
        %v1970 = vunpack.c.h.b16 %v677
        %v1971 = vunpack.c.l.b16 %v678
        %v1972 = vunpack.c.h.b16 %v678
        %v1973 = vunpack.c.l.b16 %v679
        %v1974 = vunpack.c.h.b16 %v679
        %v1975 = vunpack.c.l.b16 %v680
        %v1976 = vunpack.c.h.b16 %v680
        %v1977 = vunpack.c.l.b16 %v681
        %v1978 = vunpack.c.h.b16 %v681
        %v1979 = vunpack.c.l.b16 %v682
        %v1980 = vunpack.c.h.b16 %v682
        %v1981 = vunpack.c.l.b16 %v683
        %v1982 = vunpack.c.h.b16 %v683
        %v1983 = vunpack.c.l.b16 %v684
        %v1984 = vunpack.c.h.b16 %v684
        %v1985 = vunpack.c.l.b16 %v685
        %v1986 = vunpack.c.h.b16 %v685
        %v1987 = vunpack.c.l.b16 %v686
        %v1988 = vunpack.c.h.b16 %v686
        %v1989 = vunpack.c.l.b16 %v687
        %v1990 = vunpack.c.h.b16 %v687
        %v1991 = vunpack.c.l.b16 %v688
        %v1992 = vunpack.c.h.b16 %v688
        %v1993 = vunpack.c.l.b16 %v689
        %v1994 = vunpack.c.h.b16 %v689
        %v1995 = vunpack.c.l.b16 %v690
        %v1996 = vunpack.c.h.b16 %v690
        %v1997 = vunpack.c.l.b16 %v691
        %v1998 = vunpack.c.h.b16 %v691
        %v1999 = vunpack.c.l.b16 %v692
        %v2000 = vunpack.c.h.b16 %v692
        %v2001 = vunpack.c.l.b16 %v693
        %v2002 = vunpack.c.h.b16 %v693
        %v2003 = vunpack.c.l.b16 %v694
        %v2004 = vunpack.c.h.b16 %v694
        %v2005 = vunpack.c.l.b16 %v695
        %v2006 = vunpack.c.h.b16 %v695
        %v2007 = vunpack.c.l.b16 %v696
        %v2008 = vunpack.c.h.b16 %v696
        %v2009 = vunpack.c.l.b16 %v697
        %v2010 = vunpack.c.h.b16 %v697
        %v2011 = vunpack.c.l.b16 %v698
        %v2012 = vunpack.c.h.b16 %v698
        %v2013 = vunpack.c.l.b16 %v699
        %v2014 = vunpack.c.h.b16 %v699
        %v2015 = vunpack.c.l.b16 %v700
        %v2016 = vunpack.c.h.b16 %v700
        %v2017 = vunpack.c.l.b16 %v701
        %v2018 = vunpack.c.h.b16 %v701
        %v2019 = vunpack.c.l.b16 %v702
        %v2020 = vunpack.c.h.b16 %v702
        %v2021 = vunpack.c.l.b16 %v703
        %v2022 = vunpack.c.h.b16 %v703
        %v2023 = vunpack.c.l.b16 %v704
        %v2024 = vunpack.c.h.b16 %v704
        %v2025 = vunpack.c.l.b16 %v705
        %v2026 = vunpack.c.h.b16 %v705
        %v2027 = vunpack.c.l.b16 %v706
        %v2028 = vunpack.c.h.b16 %v706
        %v2029 = vunpack.c.l.b16 %v707
        %v2030 = vunpack.c.h.b16 %v707
        %v2031 = vunpack.c.l.b16 %v708
        %v2032 = vunpack.c.h.b16 %v708
        %v2033 = vunpack.c.l.b16 %v709
        %v2034 = vunpack.c.h.b16 %v709
        %v2035 = vunpack.c.l.b16 %v710
        %v2036 = vunpack.c.h.b16 %v710
        %v2037 = vunpack.c.l.b16 %v711
        %v2038 = vunpack.c.h.b16 %v711
        %v2039 = vunpack.c.l.b16 %v712
        %v2040 = vunpack.c.h.b16 %v712
        %v2041 = vunpack.c.l.b16 %v713
        %v2042 = vunpack.c.h.b16 %v713
        %v2043 = vunpack.c.l.b16 %v714
        %v2044 = vunpack.c.h.b16 %v714
        %v2045 = vunpack.c.l.b16 %v715
        %v2046 = vunpack.c.h.b16 %v715
        %v2047 = vunpack.c.l.b16 %v716
        %v2048 = vunpack.c.h.b16 %v716
        %v2049 = vunpack.c.l.b16 %v717
        %v2050 = vunpack.c.h.b16 %v717
        %v2051 = vunpack.c.l.b16 %v718
        %v2052 = vunpack.c.h.b16 %v718
        %v2053 = vunpack.c.l.b16 %v719
        %v2054 = vunpack.c.h.b16 %v719
        %v2055 = vunpack.c.l.b16 %v720
        %v2056 = vunpack.c.h.b16 %v720
        %v2057 = vunpack.c.l.b16 %v721
        %v2058 = vunpack.c.h.b16 %v721
        %v2059 = vunpack.c.l.b16 %v722
        %v2060 = vunpack.c.h.b16 %v722
        %v2061 = vunpack.c.l.b16 %v723
        %v2062 = vunpack.c.h.b16 %v723
        %v2063 = vunpack.c.l.b16 %v724
        %v2064 = vunpack.c.h.b16 %v724
        %v2065 = vunpack.c.l.b16 %v725
        %v2066 = vunpack.c.h.b16 %v725
        %v2067 = vunpack.c.l.b16 %v726
        %v2068 = vunpack.c.h.b16 %v726
        %v2069 = vunpack.c.l.b16 %v727
        %v2070 = vunpack.c.h.b16 %v727
        %v2071 = vunpack.c.l.b16 %v728
        %v2072 = vunpack.c.h.b16 %v728
        %v2073 = vunpack.c.l.b16 %v729
        %v2074 = vunpack.c.h.b16 %v729
        %v2075 = vunpack.c.l.b16 %v730
        %v2076 = vunpack.c.h.b16 %v730
        %v2077 = vunpack.c.l.b16 %v731
        %v2078 = vunpack.c.h.b16 %v731
        %v2079 = vunpack.c.l.b16 %v732
        %v2080 = vunpack.c.h.b16 %v732
        %v2081 = vunpack.c.l.b16 %v733
        %v2082 = vunpack.c.h.b16 %v733
        %v2083 = vunpack.c.l.b16 %v734
        %v2084 = vunpack.c.h.b16 %v734
        %v2085 = vunpack.c.l.b16 %v735
        %v2086 = vunpack.c.h.b16 %v735
        %v2087 = vunpack.c.l.b16 %v736
        %v2088 = vunpack.c.h.b16 %v736
        %v2089 = vunpack.c.l.b16 %v737
        %v2090 = vunpack.c.h.b16 %v737
        %v2091 = vunpack.c.l.b16 %v738
        %v2092 = vunpack.c.h.b16 %v738
        %v2093 = vunpack.c.l.b16 %v739
        %v2094 = vunpack.c.h.b16 %v739
        %v2095 = vunpack.c.l.b16 %v740
        %v2096 = vunpack.c.h.b16 %v740
        %v2097 = vunpack.c.l.b16 %v741
        %v2098 = vunpack.c.h.b16 %v741
        %v2099 = vunpack.c.l.b16 %v742
        %v2100 = vunpack.c.h.b16 %v742
        %v2101 = vunpack.c.l.b16 %v743
        %v2102 = vunpack.c.h.b16 %v743
        %v2103 = vunpack.c.l.b16 %v744
        %v2104 = vunpack.c.h.b16 %v744
        %v2105 = vunpack.c.l.b16 %v745
        %v2106 = vunpack.c.h.b16 %v745
        %v2107 = vunpack.c.l.b16 %v746
        %v2108 = vunpack.c.h.b16 %v746
        %v2109 = vunpack.c.l.b16 %v747
        %v2110 = vunpack.c.h.b16 %v747
        %v2111 = vunpack.c.l.b16 %v748
        %v2112 = vunpack.c.h.b16 %v748
        %v2113 = vunpack.c.l.b16 %v749
        %v2114 = vunpack.c.h.b16 %v749
        %v2115 = vunpack.c.l.b16 %v750
        %v2116 = vunpack.c.h.b16 %v750
        %v2117 = vunpack.c.l.b16 %v751
        %v2118 = vunpack.c.h.b16 %v751
        %v2119 = vunpack.c.l.b16 %v752
        %v2120 = vunpack.c.h.b16 %v752
        %v2121 = vunpack.c.l.b16 %v753
        %v2122 = vunpack.c.h.b16 %v753
        %v2123 = vunpack.c.l.b16 %v754
        %v2124 = vunpack.c.h.b16 %v754
        %v2125 = vunpack.c.l.b16 %v755
        %v2126 = vunpack.c.h.b16 %v755
        %v2127 = vunpack.c.l.b16 %v756
        %v2128 = vunpack.c.h.b16 %v756
        %v2129 = vunpack.c.l.b16 %v757
        %v2130 = vunpack.c.h.b16 %v757
        %v2131 = vunpack.c.l.b16 %v758
        %v2132 = vunpack.c.h.b16 %v758
        %v2133 = vunpack.c.l.b16 %v759
        %v2134 = vunpack.c.h.b16 %v759
        %v2135 = vunpack.c.l.b16 %v760
        %v2136 = vunpack.c.h.b16 %v760
        %v2137 = vunpack.c.l.b16 %v761
        %v2138 = vunpack.c.h.b16 %v761
        %v2139 = vunpack.c.l.b16 %v762
        %v2140 = vunpack.c.h.b16 %v762
        %v2141 = vunpack.c.l.b16 %v763
        %v2142 = vunpack.c.h.b16 %v763
        %v2143 = vunpack.c.l.b16 %v764
        %v2144 = vunpack.c.h.b16 %v764
        %v2145 = vunpack.c.l.b16 %v765
        %v2146 = vunpack.c.h.b16 %v765
        %v2147 = vunpack.c.l.b16 %v766
        %v2148 = vunpack.c.h.b16 %v766
        %v2149 = vunpack.c.l.b16 %v767
        %v2150 = vunpack.c.h.b16 %v767
        %v2151 = vunpack.c.l.b16 %v768
        %v2152 = vunpack.c.h.b16 %v768
        %v2153 = vunpack.c.l.b16 %v769
        %v2154 = vunpack.c.h.b16 %v769
        %v2155 = vunpack.c.l.b16 %v770
        %v2156 = vunpack.c.h.b16 %v770
        %v2157 = vunpack.c.l.b16 %v771
        %v2158 = vunpack.c.h.b16 %v771
        %v2159 = vunpack.c.l.b16 %v772
        %v2160 = vunpack.c.h.b16 %v772
        %v2161 = vunpack.c.l.b16 %v773
        %v2162 = vunpack.c.h.b16 %v773
        %v2163 = vunpack.c.l.b16 %v774
        %v2164 = vunpack.c.h.b16 %v774
        %v2165 = vunpack.c.l.b16 %v775
        %v2166 = vunpack.c.h.b16 %v775
        %v2167 = vunpack.c.l.b16 %v776
        %v2168 = vunpack.c.h.b16 %v776
        %v2169 = vunpack.c.l.b16 %v777
        %v2170 = vunpack.c.h.b16 %v777
        %v2171 = vunpack.c.l.b16 %v778
        %v2172 = vunpack.c.h.b16 %v778
        %v2173 = vunpack.c.l.b16 %v779
        %v2174 = vunpack.c.h.b16 %v779
        %v2175 = vunpack.c.l.b16 %v780
        %v2176 = vunpack.c.h.b16 %v780
        %v2177 = vunpack.c.l.b16 %v781
        %v2178 = vunpack.c.h.b16 %v781
        %v2179 = vunpack.c.l.b16 %v782
        %v2180 = vunpack.c.h.b16 %v782
        %v2181 = vunpack.c.l.b16 %v783
        %v2182 = vunpack.c.h.b16 %v783
        %v2183 = vunpack.c.l.b16 %v784
        %v2184 = vunpack.c.h.b16 %v784
        %v2185 = vunpack.c.l.b16 %v785
        %v2186 = vunpack.c.h.b16 %v785
        %v2187 = vunpack.c.l.b16 %v786
        %v2188 = vunpack.c.h.b16 %v786
        %v2189 = vunpack.c.l.b16 %v787
        %v2190 = vunpack.c.h.b16 %v787
        %v2191 = vunpack.c.l.b16 %v788
        %v2192 = vunpack.c.h.b16 %v788
        %v2193 = vunpack.c.l.b16 %v789
        %v2194 = vunpack.c.h.b16 %v789
        %v2195 = vunpack.c.l.b16 %v790
        %v2196 = vunpack.c.h.b16 %v790
        %v2197 = vunpack.c.l.b16 %v791
        %v2198 = vunpack.c.h.b16 %v791
        %v2199 = vunpack.c.l.b16 %v792
        %v2200 = vunpack.c.h.b16 %v792
        %v2201 = vunpack.c.l.b16 %v793
        %v2202 = vunpack.c.h.b16 %v793
        %v2203 = vunpack.c.l.b16 %v794
        %v2204 = vunpack.c.h.b16 %v794
        %v2205 = vunpack.c.l.b16 %v795
        %v2206 = vunpack.c.h.b16 %v795
        %v2207 = vunpack.c.l.b16 %v796
        %v2208 = vunpack.c.h.b16 %v796
        %v2209 = vunpack.c.l.b16 %v797
        %v2210 = vunpack.c.h.b16 %v797
        %v2211 = vunpack.c.l.b16 %v798
        %v2212 = vunpack.c.h.b16 %v798
        %v2213 = vunpack.c.l.b16 %v799
        %v2214 = vunpack.c.h.b16 %v799
        %v2215 = vunpack.c.l.b16 %v800
        %v2216 = vunpack.c.h.b16 %v800
        %v2217 = vunpack.c.l.b16 %v801
        %v2218 = vunpack.c.h.b16 %v801
        %v2219 = vunpack.c.l.b16 %v802
        %v2220 = vunpack.c.h.b16 %v802
        %v2221 = vunpack.c.l.b16 %v803
        %v2222 = vunpack.c.h.b16 %v803
        %v2223 = vunpack.c.l.b16 %v804
        %v2224 = vunpack.c.h.b16 %v804
        %v2225 = vunpack.c.l.b16 %v805
        %v2226 = vunpack.c.h.b16 %v805
        %v2227 = vunpack.c.l.b16 %v806
        %v2228 = vunpack.c.h.b16 %v806
        %v2229 = vunpack.c.l.b16 %v807
        %v2230 = vunpack.c.h.b16 %v807
        %v2231 = vunpack.c.l.b16 %v808
        %v2232 = vunpack.c.h.b16 %v808
        %v2233 = vunpack.c.l.b16 %v809
        %v2234 = vunpack.c.h.b16 %v809
        %v2235 = vunpack.c.l.b16 %v810
        %v2236 = vunpack.c.h.b16 %v810
        %v2237 = vunpack.c.l.b16 %v811
        %v2238 = vunpack.c.h.b16 %v811
        %v2239 = vunpack.c.l.b16 %v812
        %v2240 = vunpack.c.h.b16 %v812
        %v2241 = vunpack.c.l.b16 %v813
        %v2242 = vunpack.c.h.b16 %v813
        %v2243 = vunpack.c.l.b16 %v814
        %v2244 = vunpack.c.h.b16 %v814
        %v2245 = vunpack.c.l.b16 %v815
        %v2246 = vunpack.c.h.b16 %v815
        %v2247 = vunpack.c.l.b16 %v816
        %v2248 = vunpack.c.h.b16 %v816
        %v2249 = vunpack.c.l.b16 %v817
        %v2250 = vunpack.c.h.b16 %v817
        %v2251 = vunpack.c.l.b16 %v818
        %v2252 = vunpack.c.h.b16 %v818
        %v2253 = vunpack.c.l.b16 %v819
        %v2254 = vunpack.c.h.b16 %v819
        %v2255 = vunpack.c.l.b16 %v820
        %v2256 = vunpack.c.h.b16 %v820
        %v2257 = vunpack.c.l.b16 %v821
        %v2258 = vunpack.c.h.b16 %v821
        %v2259 = vunpack.c.l.b16 %v822
        %v2260 = vunpack.c.h.b16 %v822
        %v2261 = vunpack.c.l.b16 %v823
        %v2262 = vunpack.c.h.b16 %v823
        %v2263 = vunpack.c.l.b16 %v824
        %v2264 = vunpack.c.h.b16 %v824
        %v2265 = vunpack.c.l.b16 %v825
        %v2266 = vunpack.c.h.b16 %v825
        %v2267 = vunpack.c.l.b16 %v826
        %v2268 = vunpack.c.h.b16 %v826
        %v2269 = vunpack.c.l.b16 %v827
        %v2270 = vunpack.c.h.b16 %v827
        %v2271 = vunpack.c.l.b16 %v828
        %v2272 = vunpack.c.h.b16 %v828
        %v2273 = vunpack.c.l.b16 %v829
        %v2274 = vunpack.c.h.b16 %v829
        %v2275 = vunpack.c.l.b16 %v830
        %v2276 = vunpack.c.h.b16 %v830
        %v2277 = vunpack.c.l.b16 %v831
        %v2278 = vunpack.c.h.b16 %v831
        %v2279 = vunpack.c.l.b16 %v832
        %v2280 = vunpack.c.h.b16 %v832
        %v2281 = vunpack.c.l.b16 %v833
        %v2282 = vunpack.c.h.b16 %v833
        %v2283 = vunpack.c.l.b16 %v834
        %v2284 = vunpack.c.h.b16 %v834
        %v2285 = vunpack.c.l.b16 %v835
        %v2286 = vunpack.c.h.b16 %v835
        %v2287 = vunpack.c.l.b16 %v836
        %v2288 = vunpack.c.h.b16 %v836
        %v2289 = vunpack.c.l.b16 %v837
        %v2290 = vunpack.c.h.b16 %v837
        %v2291 = vunpack.c.l.b16 %v838
        %v2292 = vunpack.c.h.b16 %v838
        %v2293 = vunpack.c.l.b16 %v839
        %v2294 = vunpack.c.h.b16 %v839
        %v2295 = vunpack.c.l.b16 %v840
        %v2296 = vunpack.c.h.b16 %v840
        %v2297 = vunpack.c.l.b16 %v841
        %v2298 = vunpack.c.h.b16 %v841
        %v2299 = vunpack.c.l.b16 %v842
        %v2300 = vunpack.c.h.b16 %v842
        %v2301 = vunpack.c.l.b16 %v843
        %v2302 = vunpack.c.h.b16 %v843
        %v2303 = vunpack.c.l.b16 %v844
        %v2304 = vunpack.c.h.b16 %v844
        %v2305 = vunpack.c.l.b16 %v845
        %v2306 = vunpack.c.h.b16 %v845
        %v2307 = vunpack.c.l.b16 %v846
        %v2308 = vunpack.c.h.b16 %v846
        %v2309 = vunpack.c.l.b16 %v847
        %v2310 = vunpack.c.h.b16 %v847
        %v2311 = vunpack.c.l.b16 %v848
        %v2312 = vunpack.c.h.b16 %v848
        %v2313 = vunpack.c.l.b16 %v849
        %v2314 = vunpack.c.h.b16 %v849
        %v2315 = vunpack.c.l.b16 %v850
        %v2316 = vunpack.c.h.b16 %v850
        %v2317 = vunpack.c.l.b16 %v851
        %v2318 = vunpack.c.h.b16 %v851
        %v2319 = vunpack.c.l.b16 %v852
        %v2320 = vunpack.c.h.b16 %v852
        %v2321 = vunpack.c.l.b16 %v853
        %v2322 = vunpack.c.h.b16 %v853
        %v2323 = vunpack.c.l.b16 %v854
        %v2324 = vunpack.c.h.b16 %v854
        %v2325 = vunpack.c.l.b16 %v855
        %v2326 = vunpack.c.h.b16 %v855
        %v2327 = vunpack.c.l.b16 %v856
        %v2328 = vunpack.c.h.b16 %v856
        %v2329 = vunpack.c.l.b16 %v857
        %v2330 = vunpack.c.h.b16 %v857
        %v2331 = vunpack.c.l.b16 %v858
        %v2332 = vunpack.c.h.b16 %v858
        %v2333 = vunpack.c.l.b16 %v859
        %v2334 = vunpack.c.h.b16 %v859
        %v2335 = vunpack.c.l.b16 %v860
        %v2336 = vunpack.c.h.b16 %v860
        %v2337 = vunpack.c.l.b16 %v861
        %v2338 = vunpack.c.h.b16 %v861
        %v2339 = vunpack.c.l.b16 %v862
        %v2340 = vunpack.c.h.b16 %v862
        %v2341 = vunpack.c.l.b16 %v863
        %v2342 = vunpack.c.h.b16 %v863
        %v2343 = vunpack.c.l.b16 %v864
        %v2344 = vunpack.c.h.b16 %v864
        %v2345 = vunpack.c.l.b16 %v865
        %v2346 = vunpack.c.h.b16 %v865
        %v2347 = vunpack.c.l.b16 %v866
        %v2348 = vunpack.c.h.b16 %v866
        %v2349 = vunpack.c.l.b16 %v867
        %v2350 = vunpack.c.h.b16 %v867
        %v2351 = vunpack.c.l.b16 %v868
        %v2352 = vunpack.c.h.b16 %v868
        %v2353 = vunpack.c.l.b16 %v869
        %v2354 = vunpack.c.h.b16 %v869
        %v2355 = vunpack.c.l.b16 %v870
        %v2356 = vunpack.c.h.b16 %v870
        %v2357 = vunpack.c.l.b16 %v871
        %v2358 = vunpack.c.h.b16 %v871
        %v2359 = vunpack.c.l.b16 %v872
        %v2360 = vunpack.c.h.b16 %v872
        %v2361 = vunpack.c.l.b16 %v873
        %v2362 = vunpack.c.h.b16 %v873
        %v2363 = vunpack.c.l.b16 %v874
        %v2364 = vunpack.c.h.b16 %v874
        %v2365 = vunpack.c.l.b16 %v875
        %v2366 = vunpack.c.h.b16 %v875
        %v2367 = vunpack.c.l.b16 %v876
        %v2368 = vunpack.c.h.b16 %v876
        %v2369 = vunpack.c.l.b16 %v877
        %v2370 = vunpack.c.h.b16 %v877
        %v2371 = vunpack.c.l.b16 %v878
        %v2372 = vunpack.c.h.b16 %v878
        %v2373 = vunpack.c.l.b16 %v879
        %v2374 = vunpack.c.h.b16 %v879
        %v2375 = vunpack.c.l.b16 %v880
        %v2376 = vunpack.c.h.b16 %v880
        %v2377 = vunpack.c.l.b16 %v881
        %v2378 = vunpack.c.h.b16 %v881
        %v2379 = vunpack.c.l.b16 %v882
        %v2380 = vunpack.c.h.b16 %v882
        %v2381 = vunpack.c.l.b16 %v883
        %v2382 = vunpack.c.h.b16 %v883
        %v2383 = vunpack.c.l.b16 %v884
        %v2384 = vunpack.c.h.b16 %v884
        %v2385 = vunpack.c.l.b16 %v885
        %v2386 = vunpack.c.h.b16 %v885
        %v2387 = vunpack.c.l.b16 %v886
        %v2388 = vunpack.c.h.b16 %v886
        %v2389 = vunpack.c.l.b16 %v887
        %v2390 = vunpack.c.h.b16 %v887
        %v2391 = vunpack.c.l.b16 %v888
        %v2392 = vunpack.c.h.b16 %v888
        %v2393 = vunpack.c.l.b16 %v889
        %v2394 = vunpack.c.h.b16 %v889
        %v2395 = vunpack.c.l.b16 %v890
        %v2396 = vunpack.c.h.b16 %v890
        %v2397 = vunpack.c.l.b16 %v891
        %v2398 = vunpack.c.h.b16 %v891
        %v2399 = vunpack.c.l.b16 %v892
        %v2400 = vunpack.c.h.b16 %v892
        %v2401 = vunpack.c.l.b16 %v893
        %v2402 = vunpack.c.h.b16 %v893
        %v2403 = vunpack.c.l.b16 %v894
        %v2404 = vunpack.c.h.b16 %v894
        %v2405 = vunpack.c.l.b16 %v895
        %v2406 = vunpack.c.h.b16 %v895
        %v2407 = vunpack.c.l.b16 %v896
        %v2408 = vunpack.c.h.b16 %v896
        %v2409 = vunpack.c.l.b16 %v897
        %v2410 = vunpack.c.h.b16 %v897
        %v2411 = vunpack.c.l.b16 %v898
        %v2412 = vunpack.c.h.b16 %v898
        %v2413 = vunpack.c.l.b16 %v899
        %v2414 = vunpack.c.h.b16 %v899
        %v2415 = vunpack.c.l.b16 %v900
        %v2416 = vunpack.c.h.b16 %v900
        %v2417 = vunpack.c.l.b16 %v901
        %v2418 = vunpack.c.h.b16 %v901
        %v2419 = vunpack.c.l.b16 %v902
        %v2420 = vunpack.c.h.b16 %v902
        %v2421 = vunpack.c.l.b16 %v903
        %v2422 = vunpack.c.h.b16 %v903
        %v2423 = vunpack.c.l.b16 %v904
        %v2424 = vunpack.c.h.b16 %v904
        %v2425 = vunpack.c.l.b16 %v905
        %v2426 = vunpack.c.h.b16 %v905
        %v2427 = vunpack.c.l.b16 %v906
        %v2428 = vunpack.c.h.b16 %v906
        %v2429 = vunpack.c.l.b16 %v907
        %v2430 = vunpack.c.h.b16 %v907
        %v2431 = vunpack.c.l.b16 %v908
        %v2432 = vunpack.c.h.b16 %v908
        %v2433 = vunpack.c.l.b16 %v909
        %v2434 = vunpack.c.h.b16 %v909
        %v2435 = vunpack.c.l.b16 %v910
        %v2436 = vunpack.c.h.b16 %v910
        %v2437 = vunpack.c.l.b16 %v911
        %v2438 = vunpack.c.h.b16 %v911
        %v2439 = vunpack.c.l.b16 %v912
        %v2440 = vunpack.c.h.b16 %v912
        %v2441 = vunpack.c.l.b16 %v913
        %v2442 = vunpack.c.h.b16 %v913
        %v2443 = vunpack.c.l.b16 %v914
        %v2444 = vunpack.c.h.b16 %v914
        %v2445 = vunpack.c.l.b16 %v915
        %v2446 = vunpack.c.h.b16 %v915
        %v2447 = vunpack.c.l.b16 %v916
        %v2448 = vunpack.c.h.b16 %v916
        %v2449 = vunpack.c.l.b16 %v917
        %v2450 = vunpack.c.h.b16 %v917
        %v2451 = vunpack.c.l.b16 %v918
        %v2452 = vunpack.c.h.b16 %v918
        %v2453 = vunpack.c.l.b16 %v919
        %v2454 = vunpack.c.h.b16 %v919
        %v2455 = vunpack.c.l.b16 %v920
        %v2456 = vunpack.c.h.b16 %v920
        %v2457 = vunpack.c.l.b16 %v921
        %v2458 = vunpack.c.h.b16 %v921
        %v2459 = vunpack.c.l.b16 %v922
        %v2460 = vunpack.c.h.b16 %v922
        %v2461 = vunpack.c.l.b16 %v923
        %v2462 = vunpack.c.h.b16 %v923
        %v2463 = vunpack.c.l.b16 %v924
        %v2464 = vunpack.c.h.b16 %v924
        %v2465 = vunpack.c.l.b16 %v925
        %v2466 = vunpack.c.h.b16 %v925
        %v2467 = vunpack.c.l.b16 %v926
        %v2468 = vunpack.c.h.b16 %v926
        %v2469 = vunpack.c.l.b16 %v927
        %v2470 = vunpack.c.h.b16 %v927
        %v2471 = vunpack.c.l.b16 %v928
        %v2472 = vunpack.c.h.b16 %v928
        %v2473 = vunpack.c.l.b16 %v929
        %v2474 = vunpack.c.h.b16 %v929
        %v2475 = vunpack.c.l.b16 %v930
        %v2476 = vunpack.c.h.b16 %v930
        %v2477 = vunpack.c.l.b16 %v931
        %v2478 = vunpack.c.h.b16 %v931
        %v2479 = vunpack.c.l.b16 %v932
        %v2480 = vunpack.c.h.b16 %v932
        %v2481 = vunpack.c.l.b16 %v933
        %v2482 = vunpack.c.h.b16 %v933
        %v2483 = vunpack.c.l.b16 %v934
        %v2484 = vunpack.c.h.b16 %v934
        %v2485 = vunpack.c.l.b16 %v935
        %v2486 = vunpack.c.h.b16 %v935
        %v2487 = vunpack.c.l.b16 %v936
        %v2488 = vunpack.c.h.b16 %v936
        %v2489 = vunpack.c.l.b16 %v937
        %v2490 = vunpack.c.h.b16 %v937
        %v2491 = vunpack.c.l.b16 %v938
        %v2492 = vunpack.c.h.b16 %v938
        %v2493 = vunpack.c.l.b16 %v939
        %v2494 = vunpack.c.h.b16 %v939
        %v2495 = vunpack.c.l.b16 %v940
        %v2496 = vunpack.c.h.b16 %v940
        %v2497 = vunpack.c.l.b16 %v941
        %v2498 = vunpack.c.h.b16 %v941
        %v2499 = vunpack.c.l.b16 %v942
        %v2500 = vunpack.c.h.b16 %v942
        %v2501 = vunpack.c.l.b16 %v943
        %v2502 = vunpack.c.h.b16 %v943
        %v2503 = vunpack.c.l.b16 %v944
        %v2504 = vunpack.c.h.b16 %v944
        %v2505 = vunpack.c.l.b16 %v945
        %v2506 = vunpack.c.h.b16 %v945
        %v2507 = vunpack.c.l.b16 %v946
        %v2508 = vunpack.c.h.b16 %v946
        %v2509 = vunpack.c.l.b16 %v947
        %v2510 = vunpack.c.h.b16 %v947
        %v2511 = vunpack.c.l.b16 %v948
        %v2512 = vunpack.c.h.b16 %v948
        %v2513 = vunpack.c.l.b16 %v949
        %v2514 = vunpack.c.h.b16 %v949
        %v2515 = vunpack.c.l.b16 %v950
        %v2516 = vunpack.c.h.b16 %v950
        %v2517 = vunpack.c.l.b16 %v951
        %v2518 = vunpack.c.h.b16 %v951
        %v2519 = vunpack.c.l.b16 %v952
        %v2520 = vunpack.c.h.b16 %v952
        %v2521 = vunpack.c.l.b16 %v953
        %v2522 = vunpack.c.h.b16 %v953
        %v2523 = vunpack.c.l.b16 %v954
        %v2524 = vunpack.c.h.b16 %v954
        %v2525 = vunpack.c.l.b16 %v955
        %v2526 = vunpack.c.h.b16 %v955
        %v2527 = vunpack.c.l.b16 %v956
        %v2528 = vunpack.c.h.b16 %v956
        %v2529 = vunpack.c.l.b16 %v957
        %v2530 = vunpack.c.h.b16 %v957
        %v2531 = vunpack.c.l.b16 %v958
        %v2532 = vunpack.c.h.b16 %v958
        %v2533 = vunpack.c.l.b16 %v959
        %v2534 = vunpack.c.h.b16 %v959
        %v2535 = vunpack.c.l.b16 %v960
        %v2536 = vunpack.c.h.b16 %v960
        %v2537 = vunpack.c.l.b16 %v961
        %v2538 = vunpack.c.h.b16 %v961
        %v2539 = vunpack.c.l.b16 %v962
        %v2540 = vunpack.c.h.b16 %v962
        %v2541 = vunpack.c.l.b16 %v963
        %v2542 = vunpack.c.h.b16 %v963
        %v2543 = vunpack.c.l.b16 %v964
        %v2544 = vunpack.c.h.b16 %v964
        %v2545 = vunpack.c.l.b16 %v965
        %v2546 = vunpack.c.h.b16 %v965
        %v2547 = vunpack.c.l.b16 %v966
        %v2548 = vunpack.c.h.b16 %v966
        %v2549 = vunpack.c.l.b16 %v967
        %v2550 = vunpack.c.h.b16 %v967
        %v2551 = vunpack.c.l.b16 %v968
        %v2552 = vunpack.c.h.b16 %v968
        %v2553 = vunpack.c.l.b16 %v969
        %v2554 = vunpack.c.h.b16 %v969
        %v2555 = vunpack.c.l.b16 %v970
        %v2556 = vunpack.c.h.b16 %v970
        %v2557 = vunpack.c.l.b16 %v971
        %v2558 = vunpack.c.h.b16 %v971
        %v2559 = vunpack.c.l.b16 %v972
        %v2560 = vunpack.c.h.b16 %v972
        %v2561 = vunpack.c.l.b16 %v973
        %v2562 = vunpack.c.h.b16 %v973
        %v2563 = vunpack.c.l.b16 %v974
        %v2564 = vunpack.c.h.b16 %v974
        %v2565 = vunpack.c.l.b16 %v975
        %v2566 = vunpack.c.h.b16 %v975
        %v2567 = vunpack.c.l.b16 %v976
        %v2568 = vunpack.c.h.b16 %v976
        %v2569 = vunpack.c.l.b16 %v977
        %v2570 = vunpack.c.h.b16 %v977
        %v2571 = vunpack.c.l.b16 %v978
        %v2572 = vunpack.c.h.b16 %v978
        %v2573 = vunpack.c.l.b16 %v979
        %v2574 = vunpack.c.h.b16 %v979
        %v2575 = vunpack.c.l.b16 %v980
        %v2576 = vunpack.c.h.b16 %v980
        %v2577 = vunpack.c.l.b16 %v981
        %v2578 = vunpack.c.h.b16 %v981
        %v2579 = vunpack.c.l.b16 %v982
        %v2580 = vunpack.c.h.b16 %v982
        %v2581 = vunpack.c.l.b16 %v983
        %v2582 = vunpack.c.h.b16 %v983
        %v2583 = vunpack.c.l.b16 %v984
        %v2584 = vunpack.c.h.b16 %v984
        %v2585 = vunpack.c.l.b16 %v985
        %v2586 = vunpack.c.h.b16 %v985
        %v2587 = vunpack.c.l.b16 %v986
        %v2588 = vunpack.c.h.b16 %v986
        %v2589 = vunpack.c.l.b16 %v987
        %v2590 = vunpack.c.h.b16 %v987
        %v2591 = vunpack.c.l.b16 %v988
        %v2592 = vunpack.c.h.b16 %v988
        %v2593 = vunpack.c.l.b16 %v989
        %v2594 = vunpack.c.h.b16 %v989
        %v2595 = vunpack.c.l.b16 %v990
        %v2596 = vunpack.c.h.b16 %v990
        %v2597 = vunpack.c.l.b16 %v991
        %v2598 = vunpack.c.h.b16 %v991
        %v2599 = vunpack.c.l.b16 %v992
        %v2600 = vunpack.c.h.b16 %v992
        %v2601 = vunpack.c.l.b16 %v993
        %v2602 = vunpack.c.h.b16 %v993
        %v2603 = vunpack.c.l.b16 %v994
        %v2604 = vunpack.c.h.b16 %v994
        %v2605 = vunpack.c.l.b16 %v995
        %v2606 = vunpack.c.h.b16 %v995
        %v2607 = vunpack.c.l.b16 %v996
        %v2608 = vunpack.c.h.b16 %v996
        %v2609 = vunpack.c.l.b16 %v997
        %v2610 = vunpack.c.h.b16 %v997
        %v2611 = vunpack.c.l.b16 %v998
        %v2612 = vunpack.c.h.b16 %v998
        %v2613 = vunpack.c.l.b16 %v999
        %v2614 = vunpack.c.h.b16 %v999
        %v2615 = vunpack.c.l.b16 %v1000
        %v2616 = vunpack.c.h.b16 %v1000
        %v2617 = vunpack.c.l.b16 %v1001
        %v2618 = vunpack.c.h.b16 %v1001
        %v2619 = vunpack.c.l.b16 %v1002
        %v2620 = vunpack.c.h.b16 %v1002
        %v2621 = vunpack.c.l.b16 %v1003
        %v2622 = vunpack.c.h.b16 %v1003
        %v2623 = vunpack.c.l.b16 %v1004
        %v2624 = vunpack.c.h.b16 %v1004
        %v2625 = vpack.c.b16 %v1601, %v1599
        %v2626 = vpack.c.b16 %v1602, %v1600
        %v2627 = vpack.c.b16 %v1605, %v1603
        %v2628 = vpack.c.b16 %v1606, %v1604
        %v2629 = vpack.c.b16 %v1609, %v1607
        %v2630 = vpack.c.b16 %v1610, %v1608
        %v2631 = vpack.c.b16 %v1613, %v1611
        %v2632 = vpack.c.b16 %v1614, %v1612
        %v2633 = vpack.c.b16 %v1617, %v1615
        %v2634 = vpack.c.b16 %v1618, %v1616
        %v2635 = vpack.c.b16 %v1621, %v1619
        %v2636 = vpack.c.b16 %v1622, %v1620
        %v2637 = vpack.c.b16 %v1625, %v1623
        %v2638 = vpack.c.b16 %v1626, %v1624
        %v2639 = vpack.c.b16 %v1629, %v1627
        %v2640 = vpack.c.b16 %v1630, %v1628
        %v2641 = vpack.c.b16 %v1633, %v1631
        %v2642 = vpack.c.b16 %v1634, %v1632
        %v2643 = vpack.c.b16 %v1637, %v1635
        %v2644 = vpack.c.b16 %v1638, %v1636
        %v2645 = vpack.c.b16 %v1641, %v1639
        %v2646 = vpack.c.b16 %v1642, %v1640
        %v2647 = vpack.c.b16 %v1645, %v1643
        %v2648 = vpack.c.b16 %v1646, %v1644
        %v2649 = vpack.c.b16 %v1649, %v1647
        %v2650 = vpack.c.b16 %v1650, %v1648
        %v2651 = vpack.c.b16 %v1653, %v1651
        %v2652 = vpack.c.b16 %v1654, %v1652
        %v2653 = vpack.c.b16 %v1657, %v1655
        %v2654 = vpack.c.b16 %v1658, %v1656
        %v2655 = vpack.c.b16 %v1661, %v1659
        %v2656 = vpack.c.b16 %v1662, %v1660
        %v2657 = vpack.c.b16 %v1665, %v1663
        %v2658 = vpack.c.b16 %v1666, %v1664
        %v2659 = vpack.c.b16 %v1669, %v1667
        %v2660 = vpack.c.b16 %v1670, %v1668
        %v2661 = vpack.c.b16 %v1673, %v1671
        %v2662 = vpack.c.b16 %v1674, %v1672
        %v2663 = vpack.c.b16 %v1677, %v1675
        %v2664 = vpack.c.b16 %v1678, %v1676
        %v2665 = vpack.c.b16 %v1681, %v1679
        %v2666 = vpack.c.b16 %v1682, %v1680
        %v2667 = vpack.c.b16 %v1685, %v1683
        %v2668 = vpack.c.b16 %v1686, %v1684
        %v2669 = vpack.c.b16 %v1689, %v1687
        %v2670 = vpack.c.b16 %v1690, %v1688
        %v2671 = vpack.c.b16 %v1693, %v1691
        %v2672 = vpack.c.b16 %v1694, %v1692
        %v2673 = vpack.c.b16 %v1697, %v1695
        %v2674 = vpack.c.b16 %v1698, %v1696
        %v2675 = vpack.c.b16 %v1701, %v1699
        %v2676 = vpack.c.b16 %v1702, %v1700
        %v2677 = vpack.c.b16 %v1705, %v1703
        %v2678 = vpack.c.b16 %v1706, %v1704
        %v2679 = vpack.c.b16 %v1709, %v1707
        %v2680 = vpack.c.b16 %v1710, %v1708
        %v2681 = vpack.c.b16 %v1713, %v1711
        %v2682 = vpack.c.b16 %v1714, %v1712
        %v2683 = vpack.c.b16 %v1717, %v1715
        %v2684 = vpack.c.b16 %v1718, %v1716
        %v2685 = vpack.c.b16 %v1721, %v1719
        %v2686 = vpack.c.b16 %v1722, %v1720
        %v2687 = vpack.c.b16 %v1725, %v1723
        %v2688 = vpack.c.b16 %v1726, %v1724
        %v2689 = vpack.c.b16 %v1729, %v1727
        %v2690 = vpack.c.b16 %v1730, %v1728
        %v2691 = vpack.c.b16 %v1733, %v1731
        %v2692 = vpack.c.b16 %v1734, %v1732
        %v2693 = vpack.c.b16 %v1737, %v1735
        %v2694 = vpack.c.b16 %v1738, %v1736
        %v2695 = vpack.c.b16 %v1741, %v1739
        %v2696 = vpack.c.b16 %v1742, %v1740
        %v2697 = vpack.c.b16 %v1745, %v1743
        %v2698 = vpack.c.b16 %v1746, %v1744
        %v2699 = vpack.c.b16 %v1749, %v1747
        %v2700 = vpack.c.b16 %v1750, %v1748
        %v2701 = vpack.c.b16 %v1753, %v1751
        %v2702 = vpack.c.b16 %v1754, %v1752
        %v2703 = vpack.c.b16 %v1757, %v1755
        %v2704 = vpack.c.b16 %v1758, %v1756
        %v2705 = vpack.c.b16 %v1761, %v1759
        %v2706 = vpack.c.b16 %v1762, %v1760
        %v2707 = vpack.c.b16 %v1765, %v1763
        %v2708 = vpack.c.b16 %v1766, %v1764
        %v2709 = vpack.c.b16 %v1769, %v1767
        %v2710 = vpack.c.b16 %v1770, %v1768
        %v2711 = vpack.c.b16 %v1773, %v1771
        %v2712 = vpack.c.b16 %v1774, %v1772
        %v2713 = vpack.c.b16 %v1777, %v1775
        %v2714 = vpack.c.b16 %v1778, %v1776
        %v2715 = vpack.c.b16 %v1781, %v1779
        %v2716 = vpack.c.b16 %v1782, %v1780
        %v2717 = vpack.c.b16 %v1785, %v1783
        %v2718 = vpack.c.b16 %v1786, %v1784
        %v2719 = vpack.c.b16 %v1789, %v1787
        %v2720 = vpack.c.b16 %v1790, %v1788
        %v2721 = vpack.c.b16 %v1793, %v1791
        %v2722 = vpack.c.b16 %v1794, %v1792
        %v2723 = vpack.c.b16 %v1797, %v1795
        %v2724 = vpack.c.b16 %v1798, %v1796
        %v2725 = vpack.c.b16 %v1801, %v1799
        %v2726 = vpack.c.b16 %v1802, %v1800
        %v2727 = vpack.c.b16 %v1805, %v1803
        %v2728 = vpack.c.b16 %v1806, %v1804
        %v2729 = vpack.c.b16 %v1809, %v1807
        %v2730 = vpack.c.b16 %v1810, %v1808
        %v2731 = vpack.c.b16 %v1813, %v1811
        %v2732 = vpack.c.b16 %v1814, %v1812
        %v2733 = vpack.c.b16 %v1817, %v1815
        %v2734 = vpack.c.b16 %v1818, %v1816
        %v2735 = vpack.c.b16 %v1821, %v1819
        %v2736 = vpack.c.b16 %v1822, %v1820
        %v2737 = vpack.c.b16 %v1825, %v1823
        %v2738 = vpack.c.b16 %v1826, %v1824
        %v2739 = vpack.c.b16 %v1829, %v1827
        %v2740 = vpack.c.b16 %v1830, %v1828
        %v2741 = vpack.c.b16 %v1833, %v1831
        %v2742 = vpack.c.b16 %v1834, %v1832
        %v2743 = vpack.c.b16 %v1837, %v1835
        %v2744 = vpack.c.b16 %v1838, %v1836
        %v2745 = vpack.c.b16 %v1841, %v1839
        %v2746 = vpack.c.b16 %v1842, %v1840
        %v2747 = vpack.c.b16 %v1845, %v1843
        %v2748 = vpack.c.b16 %v1846, %v1844
        %v2749 = vpack.c.b16 %v1849, %v1847
        %v2750 = vpack.c.b16 %v1850, %v1848
        %v2751 = vpack.c.b16 %v1853, %v1851
        %v2752 = vpack.c.b16 %v1854, %v1852
        %v2753 = vpack.c.b16 %v1857, %v1855
        %v2754 = vpack.c.b16 %v1858, %v1856
        %v2755 = vpack.c.b16 %v1861, %v1859
        %v2756 = vpack.c.b16 %v1862, %v1860
        %v2757 = vpack.c.b16 %v1865, %v1863
        %v2758 = vpack.c.b16 %v1866, %v1864
        %v2759 = vpack.c.b16 %v1869, %v1867
        %v2760 = vpack.c.b16 %v1870, %v1868
        %v2761 = vpack.c.b16 %v1873, %v1871
        %v2762 = vpack.c.b16 %v1874, %v1872
        %v2763 = vpack.c.b16 %v1877, %v1875
        %v2764 = vpack.c.b16 %v1878, %v1876
        %v2765 = vpack.c.b16 %v1881, %v1879
        %v2766 = vpack.c.b16 %v1882, %v1880
        %v2767 = vpack.c.b16 %v1885, %v1883
        %v2768 = vpack.c.b16 %v1886, %v1884
        %v2769 = vpack.c.b16 %v1889, %v1887
        %v2770 = vpack.c.b16 %v1890, %v1888
        %v2771 = vpack.c.b16 %v1893, %v1891
        %v2772 = vpack.c.b16 %v1894, %v1892
        %v2773 = vpack.c.b16 %v1897, %v1895
        %v2774 = vpack.c.b16 %v1898, %v1896
        %v2775 = vpack.c.b16 %v1901, %v1899
        %v2776 = vpack.c.b16 %v1902, %v1900
        %v2777 = vpack.c.b16 %v1905, %v1903
        %v2778 = vpack.c.b16 %v1906, %v1904
        %v2779 = vpack.c.b16 %v1909, %v1907
        %v2780 = vpack.c.b16 %v1910, %v1908
        %v2781 = vpack.c.b16 %v1913, %v1911
        %v2782 = vpack.c.b16 %v1914, %v1912
        %v2783 = vpack.c.b16 %v1917, %v1915
        %v2784 = vpack.c.b16 %v1918, %v1916
        %v2785 = vpack.c.b16 %v1921, %v1919
        %v2786 = vpack.c.b16 %v1922, %v1920
        %v2787 = vpack.c.b16 %v1925, %v1923
        %v2788 = vpack.c.b16 %v1926, %v1924
        %v2789 = vpack.c.b16 %v1929, %v1927
        %v2790 = vpack.c.b16 %v1930, %v1928
        %v2791 = vpack.c.b16 %v1933, %v1931
        %v2792 = vpack.c.b16 %v1934, %v1932
        %v2793 = vpack.c.b16 %v1937, %v1935
        %v2794 = vpack.c.b16 %v1938, %v1936
        %v2795 = vpack.c.b16 %v1941, %v1939
        %v2796 = vpack.c.b16 %v1942, %v1940
        %v2797 = vpack.c.b16 %v1945, %v1943
        %v2798 = vpack.c.b16 %v1946, %v1944
        %v2799 = vpack.c.b16 %v1949, %v1947
        %v2800 = vpack.c.b16 %v1950, %v1948
        %v2801 = vpack.c.b16 %v1953, %v1951
        %v2802 = vpack.c.b16 %v1954, %v1952
        %v2803 = vpack.c.b16 %v1957, %v1955
        %v2804 = vpack.c.b16 %v1958, %v1956
        %v2805 = vpack.c.b16 %v1961, %v1959
        %v2806 = vpack.c.b16 %v1962, %v1960
        %v2807 = vpack.c.b16 %v1965, %v1963
        %v2808 = vpack.c.b16 %v1966, %v1964
        %v2809 = vpack.c.b16 %v1969, %v1967
        %v2810 = vpack.c.b16 %v1970, %v1968
        %v2811 = vpack.c.b16 %v1973, %v1971
        %v2812 = vpack.c.b16 %v1974, %v1972
        %v2813 = vpack.c.b16 %v1977, %v1975
        %v2814 = vpack.c.b16 %v1978, %v1976
        %v2815 = vpack.c.b16 %v1981, %v1979
        %v2816 = vpack.c.b16 %v1982, %v1980
        %v2817 = vpack.c.b16 %v1985, %v1983
        %v2818 = vpack.c.b16 %v1986, %v1984
        %v2819 = vpack.c.b16 %v1989, %v1987
        %v2820 = vpack.c.b16 %v1990, %v1988
        %v2821 = vpack.c.b16 %v1993, %v1991
        %v2822 = vpack.c.b16 %v1994, %v1992
        %v2823 = vpack.c.b16 %v1997, %v1995
        %v2824 = vpack.c.b16 %v1998, %v1996
        %v2825 = vpack.c.b16 %v2001, %v1999
        %v2826 = vpack.c.b16 %v2002, %v2000
        %v2827 = vpack.c.b16 %v2005, %v2003
        %v2828 = vpack.c.b16 %v2006, %v2004
        %v2829 = vpack.c.b16 %v2009, %v2007
        %v2830 = vpack.c.b16 %v2010, %v2008
        %v2831 = vpack.c.b16 %v2013, %v2011
        %v2832 = vpack.c.b16 %v2014, %v2012
        %v2833 = vpack.c.b16 %v2017, %v2015
        %v2834 = vpack.c.b16 %v2018, %v2016
        %v2835 = vpack.c.b16 %v2021, %v2019
        %v2836 = vpack.c.b16 %v2022, %v2020
        %v2837 = vpack.c.b16 %v2025, %v2023
        %v2838 = vpack.c.b16 %v2026, %v2024
        %v2839 = vpack.c.b16 %v2029, %v2027
        %v2840 = vpack.c.b16 %v2030, %v2028
        %v2841 = vpack.c.b16 %v2033, %v2031
        %v2842 = vpack.c.b16 %v2034, %v2032
        %v2843 = vpack.c.b16 %v2037, %v2035
        %v2844 = vpack.c.b16 %v2038, %v2036
        %v2845 = vpack.c.b16 %v2041, %v2039
        %v2846 = vpack.c.b16 %v2042, %v2040
        %v2847 = vpack.c.b16 %v2045, %v2043
        %v2848 = vpack.c.b16 %v2046, %v2044
        %v2849 = vpack.c.b16 %v2049, %v2047
        %v2850 = vpack.c.b16 %v2050, %v2048
        %v2851 = vpack.c.b16 %v2053, %v2051
        %v2852 = vpack.c.b16 %v2054, %v2052
        %v2853 = vpack.c.b16 %v2057, %v2055
        %v2854 = vpack.c.b16 %v2058, %v2056
        %v2855 = vpack.c.b16 %v2061, %v2059
        %v2856 = vpack.c.b16 %v2062, %v2060
        %v2857 = vpack.c.b16 %v2065, %v2063
        %v2858 = vpack.c.b16 %v2066, %v2064
        %v2859 = vpack.c.b16 %v2069, %v2067
        %v2860 = vpack.c.b16 %v2070, %v2068
        %v2861 = vpack.c.b16 %v2073, %v2071
        %v2862 = vpack.c.b16 %v2074, %v2072
        %v2863 = vpack.c.b16 %v2077, %v2075
        %v2864 = vpack.c.b16 %v2078, %v2076
        %v2865 = vpack.c.b16 %v2081, %v2079
        %v2866 = vpack.c.b16 %v2082, %v2080
        %v2867 = vpack.c.b16 %v2085, %v2083
        %v2868 = vpack.c.b16 %v2086, %v2084
        %v2869 = vpack.c.b16 %v2089, %v2087
        %v2870 = vpack.c.b16 %v2090, %v2088
        %v2871 = vpack.c.b16 %v2093, %v2091
        %v2872 = vpack.c.b16 %v2094, %v2092
        %v2873 = vpack.c.b16 %v2097, %v2095
        %v2874 = vpack.c.b16 %v2098, %v2096
        %v2875 = vpack.c.b16 %v2101, %v2099
        %v2876 = vpack.c.b16 %v2102, %v2100
        %v2877 = vpack.c.b16 %v2105, %v2103
        %v2878 = vpack.c.b16 %v2106, %v2104
        %v2879 = vpack.c.b16 %v2109, %v2107
        %v2880 = vpack.c.b16 %v2110, %v2108
        %v2881 = vpack.c.b16 %v2113, %v2111
        %v2882 = vpack.c.b16 %v2114, %v2112
        %v2883 = vpack.c.b16 %v2117, %v2115
        %v2884 = vpack.c.b16 %v2118, %v2116
        %v2885 = vpack.c.b16 %v2121, %v2119
        %v2886 = vpack.c.b16 %v2122, %v2120
        %v2887 = vpack.c.b16 %v2125, %v2123
        %v2888 = vpack.c.b16 %v2126, %v2124
        %v2889 = vpack.c.b16 %v2129, %v2127
        %v2890 = vpack.c.b16 %v2130, %v2128
        %v2891 = vpack.c.b16 %v2133, %v2131
        %v2892 = vpack.c.b16 %v2134, %v2132
        %v2893 = vpack.c.b16 %v2137, %v2135
        %v2894 = vpack.c.b16 %v2138, %v2136
        %v2895 = vpack.c.b16 %v2141, %v2139
        %v2896 = vpack.c.b16 %v2142, %v2140
        %v2897 = vpack.c.b16 %v2145, %v2143
        %v2898 = vpack.c.b16 %v2146, %v2144
        %v2899 = vpack.c.b16 %v2149, %v2147
        %v2900 = vpack.c.b16 %v2150, %v2148
        %v2901 = vpack.c.b16 %v2153, %v2151
        %v2902 = vpack.c.b16 %v2154, %v2152
        %v2903 = vpack.c.b16 %v2157, %v2155
        %v2904 = vpack.c.b16 %v2158, %v2156
        %v2905 = vpack.c.b16 %v2161, %v2159
        %v2906 = vpack.c.b16 %v2162, %v2160
        %v2907 = vpack.c.b16 %v2165, %v2163
        %v2908 = vpack.c.b16 %v2166, %v2164
        %v2909 = vpack.c.b16 %v2169, %v2167
        %v2910 = vpack.c.b16 %v2170, %v2168
        %v2911 = vpack.c.b16 %v2173, %v2171
        %v2912 = vpack.c.b16 %v2174, %v2172
        %v2913 = vpack.c.b16 %v2177, %v2175
        %v2914 = vpack.c.b16 %v2178, %v2176
        %v2915 = vpack.c.b16 %v2181, %v2179
        %v2916 = vpack.c.b16 %v2182, %v2180
        %v2917 = vpack.c.b16 %v2185, %v2183
        %v2918 = vpack.c.b16 %v2186, %v2184
        %v2919 = vpack.c.b16 %v2189, %v2187
        %v2920 = vpack.c.b16 %v2190, %v2188
        %v2921 = vpack.c.b16 %v2193, %v2191
        %v2922 = vpack.c.b16 %v2194, %v2192
        %v2923 = vpack.c.b16 %v2197, %v2195
        %v2924 = vpack.c.b16 %v2198, %v2196
        %v2925 = vpack.c.b16 %v2201, %v2199
        %v2926 = vpack.c.b16 %v2202, %v2200
        %v2927 = vpack.c.b16 %v2205, %v2203
        %v2928 = vpack.c.b16 %v2206, %v2204
        %v2929 = vpack.c.b16 %v2209, %v2207
        %v2930 = vpack.c.b16 %v2210, %v2208
        %v2931 = vpack.c.b16 %v2213, %v2211
        %v2932 = vpack.c.b16 %v2214, %v2212
        %v2933 = vpack.c.b16 %v2217, %v2215
        %v2934 = vpack.c.b16 %v2218, %v2216
        %v2935 = vpack.c.b16 %v2221, %v2219
        %v2936 = vpack.c.b16 %v2222, %v2220
        %v2937 = vpack.c.b16 %v2225, %v2223
        %v2938 = vpack.c.b16 %v2226, %v2224
        %v2939 = vpack.c.b16 %v2229, %v2227
        %v2940 = vpack.c.b16 %v2230, %v2228
        %v2941 = vpack.c.b16 %v2233, %v2231
        %v2942 = vpack.c.b16 %v2234, %v2232
        %v2943 = vpack.c.b16 %v2237, %v2235
        %v2944 = vpack.c.b16 %v2238, %v2236
        %v2945 = vpack.c.b16 %v2241, %v2239
        %v2946 = vpack.c.b16 %v2242, %v2240
        %v2947 = vpack.c.b16 %v2245, %v2243
        %v2948 = vpack.c.b16 %v2246, %v2244
        %v2949 = vpack.c.b16 %v2249, %v2247
        %v2950 = vpack.c.b16 %v2250, %v2248
        %v2951 = vpack.c.b16 %v2253, %v2251
        %v2952 = vpack.c.b16 %v2254, %v2252
        %v2953 = vpack.c.b16 %v2257, %v2255
        %v2954 = vpack.c.b16 %v2258, %v2256
        %v2955 = vpack.c.b16 %v2261, %v2259
        %v2956 = vpack.c.b16 %v2262, %v2260
        %v2957 = vpack.c.b16 %v2265, %v2263
        %v2958 = vpack.c.b16 %v2266, %v2264
        %v2959 = vpack.c.b16 %v2269, %v2267
        %v2960 = vpack.c.b16 %v2270, %v2268
        %v2961 = vpack.c.b16 %v2273, %v2271
        %v2962 = vpack.c.b16 %v2274, %v2272
        %v2963 = vpack.c.b16 %v2277, %v2275
        %v2964 = vpack.c.b16 %v2278, %v2276
        %v2965 = vpack.c.b16 %v2281, %v2279
        %v2966 = vpack.c.b16 %v2282, %v2280
        %v2967 = vpack.c.b16 %v2285, %v2283
        %v2968 = vpack.c.b16 %v2286, %v2284
        %v2969 = vpack.c.b16 %v2289, %v2287
        %v2970 = vpack.c.b16 %v2290, %v2288
        %v2971 = vpack.c.b16 %v2293, %v2291
        %v2972 = vpack.c.b16 %v2294, %v2292
        %v2973 = vpack.c.b16 %v2297, %v2295
        %v2974 = vpack.c.b16 %v2298, %v2296
        %v2975 = vpack.c.b16 %v2301, %v2299
        %v2976 = vpack.c.b16 %v2302, %v2300
        %v2977 = vpack.c.b16 %v2305, %v2303
        %v2978 = vpack.c.b16 %v2306, %v2304
        %v2979 = vpack.c.b16 %v2309, %v2307
        %v2980 = vpack.c.b16 %v2310, %v2308
        %v2981 = vpack.c.b16 %v2313, %v2311
        %v2982 = vpack.c.b16 %v2314, %v2312
        %v2983 = vpack.c.b16 %v2317, %v2315
        %v2984 = vpack.c.b16 %v2318, %v2316
        %v2985 = vpack.c.b16 %v2321, %v2319
        %v2986 = vpack.c.b16 %v2322, %v2320
        %v2987 = vpack.c.b16 %v2325, %v2323
        %v2988 = vpack.c.b16 %v2326, %v2324
        %v2989 = vpack.c.b16 %v2329, %v2327
        %v2990 = vpack.c.b16 %v2330, %v2328
        %v2991 = vpack.c.b16 %v2333, %v2331
        %v2992 = vpack.c.b16 %v2334, %v2332
        %v2993 = vpack.c.b16 %v2337, %v2335
        %v2994 = vpack.c.b16 %v2338, %v2336
        %v2995 = vpack.c.b16 %v2341, %v2339
        %v2996 = vpack.c.b16 %v2342, %v2340
        %v2997 = vpack.c.b16 %v2345, %v2343
        %v2998 = vpack.c.b16 %v2346, %v2344
        %v2999 = vpack.c.b16 %v2349, %v2347
        %v3000 = vpack.c.b16 %v2350, %v2348
        %v3001 = vpack.c.b16 %v2353, %v2351
        %v3002 = vpack.c.b16 %v2354, %v2352
        %v3003 = vpack.c.b16 %v2357, %v2355
        %v3004 = vpack.c.b16 %v2358, %v2356
        %v3005 = vpack.c.b16 %v2361, %v2359
        %v3006 = vpack.c.b16 %v2362, %v2360
        %v3007 = vpack.c.b16 %v2365, %v2363
        %v3008 = vpack.c.b16 %v2366, %v2364
        %v3009 = vpack.c.b16 %v2369, %v2367
        %v3010 = vpack.c.b16 %v2370, %v2368
        %v3011 = vpack.c.b16 %v2373, %v2371
        %v3012 = vpack.c.b16 %v2374, %v2372
        %v3013 = vpack.c.b16 %v2377, %v2375
        %v3014 = vpack.c.b16 %v2378, %v2376
        %v3015 = vpack.c.b16 %v2381, %v2379
        %v3016 = vpack.c.b16 %v2382, %v2380
        %v3017 = vpack.c.b16 %v2385, %v2383
        %v3018 = vpack.c.b16 %v2386, %v2384
        %v3019 = vpack.c.b16 %v2389, %v2387
        %v3020 = vpack.c.b16 %v2390, %v2388
        %v3021 = vpack.c.b16 %v2393, %v2391
        %v3022 = vpack.c.b16 %v2394, %v2392
        %v3023 = vpack.c.b16 %v2397, %v2395
        %v3024 = vpack.c.b16 %v2398, %v2396
        %v3025 = vpack.c.b16 %v2401, %v2399
        %v3026 = vpack.c.b16 %v2402, %v2400
        %v3027 = vpack.c.b16 %v2405, %v2403
        %v3028 = vpack.c.b16 %v2406, %v2404
        %v3029 = vpack.c.b16 %v2409, %v2407
        %v3030 = vpack.c.b16 %v2410, %v2408
        %v3031 = vpack.c.b16 %v2413, %v2411
        %v3032 = vpack.c.b16 %v2414, %v2412
        %v3033 = vpack.c.b16 %v2417, %v2415
        %v3034 = vpack.c.b16 %v2418, %v2416
        %v3035 = vpack.c.b16 %v2421, %v2419
        %v3036 = vpack.c.b16 %v2422, %v2420
        %v3037 = vpack.c.b16 %v2425, %v2423
        %v3038 = vpack.c.b16 %v2426, %v2424
        %v3039 = vpack.c.b16 %v2429, %v2427
        %v3040 = vpack.c.b16 %v2430, %v2428
        %v3041 = vpack.c.b16 %v2433, %v2431
        %v3042 = vpack.c.b16 %v2434, %v2432
        %v3043 = vpack.c.b16 %v2437, %v2435
        %v3044 = vpack.c.b16 %v2438, %v2436
        %v3045 = vpack.c.b16 %v2441, %v2439
        %v3046 = vpack.c.b16 %v2442, %v2440
        %v3047 = vpack.c.b16 %v2445, %v2443
        %v3048 = vpack.c.b16 %v2446, %v2444
        %v3049 = vpack.c.b16 %v2449, %v2447
        %v3050 = vpack.c.b16 %v2450, %v2448
        %v3051 = vpack.c.b16 %v2453, %v2451
        %v3052 = vpack.c.b16 %v2454, %v2452
        %v3053 = vpack.c.b16 %v2457, %v2455
        %v3054 = vpack.c.b16 %v2458, %v2456
        %v3055 = vpack.c.b16 %v2461, %v2459
        %v3056 = vpack.c.b16 %v2462, %v2460
        %v3057 = vpack.c.b16 %v2465, %v2463
        %v3058 = vpack.c.b16 %v2466, %v2464
        %v3059 = vpack.c.b16 %v2469, %v2467
        %v3060 = vpack.c.b16 %v2470, %v2468
        %v3061 = vpack.c.b16 %v2473, %v2471
        %v3062 = vpack.c.b16 %v2474, %v2472
        %v3063 = vpack.c.b16 %v2477, %v2475
        %v3064 = vpack.c.b16 %v2478, %v2476
        %v3065 = vpack.c.b16 %v2481, %v2479
        %v3066 = vpack.c.b16 %v2482, %v2480
        %v3067 = vpack.c.b16 %v2485, %v2483
        %v3068 = vpack.c.b16 %v2486, %v2484
        %v3069 = vpack.c.b16 %v2489, %v2487
        %v3070 = vpack.c.b16 %v2490, %v2488
        %v3071 = vpack.c.b16 %v2493, %v2491
        %v3072 = vpack.c.b16 %v2494, %v2492
        %v3073 = vpack.c.b16 %v2497, %v2495
        %v3074 = vpack.c.b16 %v2498, %v2496
        %v3075 = vpack.c.b16 %v2501, %v2499
        %v3076 = vpack.c.b16 %v2502, %v2500
        %v3077 = vpack.c.b16 %v2505, %v2503
        %v3078 = vpack.c.b16 %v2506, %v2504
        %v3079 = vpack.c.b16 %v2509, %v2507
        %v3080 = vpack.c.b16 %v2510, %v2508
        %v3081 = vpack.c.b16 %v2513, %v2511
        %v3082 = vpack.c.b16 %v2514, %v2512
        %v3083 = vpack.c.b16 %v2517, %v2515
        %v3084 = vpack.c.b16 %v2518, %v2516
        %v3085 = vpack.c.b16 %v2521, %v2519
        %v3086 = vpack.c.b16 %v2522, %v2520
        %v3087 = vpack.c.b16 %v2525, %v2523
        %v3088 = vpack.c.b16 %v2526, %v2524
        %v3089 = vpack.c.b16 %v2529, %v2527
        %v3090 = vpack.c.b16 %v2530, %v2528
        %v3091 = vpack.c.b16 %v2533, %v2531
        %v3092 = vpack.c.b16 %v2534, %v2532
        %v3093 = vpack.c.b16 %v2537, %v2535
        %v3094 = vpack.c.b16 %v2538, %v2536
        %v3095 = vpack.c.b16 %v2541, %v2539
        %v3096 = vpack.c.b16 %v2542, %v2540
        %v3097 = vpack.c.b16 %v2545, %v2543
        %v3098 = vpack.c.b16 %v2546, %v2544
        %v3099 = vpack.c.b16 %v2549, %v2547
        %v3100 = vpack.c.b16 %v2550, %v2548
        %v3101 = vpack.c.b16 %v2553, %v2551
        %v3102 = vpack.c.b16 %v2554, %v2552
        %v3103 = vpack.c.b16 %v2557, %v2555
        %v3104 = vpack.c.b16 %v2558, %v2556
        %v3105 = vpack.c.b16 %v2561, %v2559
        %v3106 = vpack.c.b16 %v2562, %v2560
        %v3107 = vpack.c.b16 %v2565, %v2563
        %v3108 = vpack.c.b16 %v2566, %v2564
        %v3109 = vpack.c.b16 %v2569, %v2567
        %v3110 = vpack.c.b16 %v2570, %v2568
        %v3111 = vpack.c.b16 %v2573, %v2571
        %v3112 = vpack.c.b16 %v2574, %v2572
        %v3113 = vpack.c.b16 %v2577, %v2575
        %v3114 = vpack.c.b16 %v2578, %v2576
        %v3115 = vpack.c.b16 %v2581, %v2579
        %v3116 = vpack.c.b16 %v2582, %v2580
        %v3117 = vpack.c.b16 %v2585, %v2583
        %v3118 = vpack.c.b16 %v2586, %v2584
        %v3119 = vpack.c.b16 %v2589, %v2587
        %v3120 = vpack.c.b16 %v2590, %v2588
        %v3121 = vpack.c.b16 %v2593, %v2591
        %v3122 = vpack.c.b16 %v2594, %v2592
        %v3123 = vpack.c.b16 %v2597, %v2595
        %v3124 = vpack.c.b16 %v2598, %v2596
        %v3125 = vpack.c.b16 %v2601, %v2599
        %v3126 = vpack.c.b16 %v2602, %v2600
        %v3127 = vpack.c.b16 %v2605, %v2603
        %v3128 = vpack.c.b16 %v2606, %v2604
        %v3129 = vpack.c.b16 %v2609, %v2607
        %v3130 = vpack.c.b16 %v2610, %v2608
        %v3131 = vpack.c.b16 %v2613, %v2611
        %v3132 = vpack.c.b16 %v2614, %v2612
        %v3133 = vpack.c.b16 %v2617, %v2615
        %v3134 = vpack.c.b16 %v2618, %v2616
        %v3135 = vpack.c.b16 %v2621, %v2619
        %v3136 = vpack.c.b16 %v2622, %v2620
        %v3137 = vpack.c.b16 %v2623, %v2623
        %v3138 = vpack.c.b16 %v2624, %v2624
        %vm3651 = vcmask 7168
        %v3652 = vsel %vm3651, %v1053, 0
        %vm3654 = vcmask 1040384
        %v3655 = vsel 0, 4294967295, 65535
        %v3656 = vsel %vm3654, %v3655, 0
        %v3658 = vand.u32 %v3137, %v3656
        %v3661 = vand.u32 %v3138, %v3656
        %3663 = vmatpush.bf16.msra.mxu0 %v2639
        %3664 = vmatpush.bf16.msra.mxu0 %v2637
        %3665 = vmatpush.bf16.msra.mxu0 %v2635
        %3666 = vmatpush.bf16.msra.mxu0 %v2633
        %3667 = vmatpush.bf16.msra.mxu0 %v2631
        %3668 = vmatpush.bf16.msra.mxu0 %v2629
        %3669 = vmatpush.bf16.msra.mxu0 %v2627
        %3670 = vmatpush.bf16.msra.mxu0 %v2625
        %3671 = vmatmul.bf16.gmra.mxu0 %v1013
        %v3672 = vpop.f32.mrf.mxu0
        %v3673 = vadd.f32 %v1007, %v3672
        %v3674 = vpop.f32.mrf.mxu0
        %3675 = vdwg.mxu0
        %3676 = vmatpush.bf16.msra.mxu0 %v2655
        %3677 = vmatpush.bf16.msra.mxu0 %v2653
        %3678 = vmatpush.bf16.msra.mxu0 %v2651
        %3679 = vmatpush.bf16.msra.mxu0 %v2649
        %3680 = vmatpush.bf16.msra.mxu0 %v2647
        %3681 = vmatpush.bf16.msra.mxu0 %v2645
        %3682 = vmatpush.bf16.msra.mxu0 %v2643
        %3683 = vmatpush.bf16.msra.mxu0 %v2641
        %3684 = vmatmul.bf16.gmra.mxu0 %v1014
        %v3685 = vpop.f32.mrf.mxu0
        %v3686 = vadd.f32 %v3673, %v3685
        %v3687 = vpop.f32.mrf.mxu0
        %3688 = vdwg.mxu0
        %3689 = vmatpush.bf16.msra.mxu0 %v2671
        %3690 = vmatpush.bf16.msra.mxu0 %v2669
        %3691 = vmatpush.bf16.msra.mxu0 %v2667
        %3692 = vmatpush.bf16.msra.mxu0 %v2665
        %3693 = vmatpush.bf16.msra.mxu0 %v2663
        %3694 = vmatpush.bf16.msra.mxu0 %v2661
        %3695 = vmatpush.bf16.msra.mxu0 %v2659
        %3696 = vmatpush.bf16.msra.mxu0 %v2657
        %3697 = vmatmul.bf16.gmra.mxu0 %v1015
        %v3698 = vpop.f32.mrf.mxu0
        %v3699 = vadd.f32 %v3686, %v3698
        %v3700 = vpop.f32.mrf.mxu0
        %3701 = vdwg.mxu0
        %3702 = vmatpush.bf16.msra.mxu0 %v2687
        %3703 = vmatpush.bf16.msra.mxu0 %v2685
        %3704 = vmatpush.bf16.msra.mxu0 %v2683
        %3705 = vmatpush.bf16.msra.mxu0 %v2681
        %3706 = vmatpush.bf16.msra.mxu0 %v2679
        %3707 = vmatpush.bf16.msra.mxu0 %v2677
        %3708 = vmatpush.bf16.msra.mxu0 %v2675
        %3709 = vmatpush.bf16.msra.mxu0 %v2673
        %3710 = vmatmul.bf16.gmra.mxu0 %v1016
        %v3711 = vpop.f32.mrf.mxu0
        %v3712 = vadd.f32 %v3699, %v3711
        %v3713 = vpop.f32.mrf.mxu0
        %3714 = vdwg.mxu0
        %3715 = vmatpush.bf16.msra.mxu0 %v2703
        %3716 = vmatpush.bf16.msra.mxu0 %v2701
        %3717 = vmatpush.bf16.msra.mxu0 %v2699
        %3718 = vmatpush.bf16.msra.mxu0 %v2697
        %3719 = vmatpush.bf16.msra.mxu0 %v2695
        %3720 = vmatpush.bf16.msra.mxu0 %v2693
        %3721 = vmatpush.bf16.msra.mxu0 %v2691
        %3722 = vmatpush.bf16.msra.mxu0 %v2689
        %3723 = vmatmul.bf16.gmra.mxu0 %v1017
        %v3724 = vpop.f32.mrf.mxu0
        %v3725 = vadd.f32 %v3712, %v3724
        %v3726 = vpop.f32.mrf.mxu0
        %3727 = vdwg.mxu0
        %3728 = vmatpush.bf16.msra.mxu0 %v2719
        %3729 = vmatpush.bf16.msra.mxu0 %v2717
        %3730 = vmatpush.bf16.msra.mxu0 %v2715
        %3731 = vmatpush.bf16.msra.mxu0 %v2713
        %3732 = vmatpush.bf16.msra.mxu0 %v2711
        %3733 = vmatpush.bf16.msra.mxu0 %v2709
        %3734 = vmatpush.bf16.msra.mxu0 %v2707
        %3735 = vmatpush.bf16.msra.mxu0 %v2705
        %3736 = vmatmul.bf16.gmra.mxu0 %v1018
        %v3737 = vpop.f32.mrf.mxu0
        %v3738 = vadd.f32 %v3725, %v3737
        %v3739 = vpop.f32.mrf.mxu0
        %3740 = vdwg.mxu0
        %3741 = vmatpush.bf16.msra.mxu0 %v2735
        %3742 = vmatpush.bf16.msra.mxu0 %v2733
        %3743 = vmatpush.bf16.msra.mxu0 %v2731
        %3744 = vmatpush.bf16.msra.mxu0 %v2729
        %3745 = vmatpush.bf16.msra.mxu0 %v2727
        %3746 = vmatpush.bf16.msra.mxu0 %v2725
        %3747 = vmatpush.bf16.msra.mxu0 %v2723
        %3748 = vmatpush.bf16.msra.mxu0 %v2721
        %3749 = vmatmul.bf16.gmra.mxu0 %v1019
        %v3750 = vpop.f32.mrf.mxu0
        %v3751 = vadd.f32 %v3738, %v3750
        %v3752 = vpop.f32.mrf.mxu0
        %3753 = vdwg.mxu0
        %3754 = vmatpush.bf16.msra.mxu0 %v2751
        %3755 = vmatpush.bf16.msra.mxu0 %v2749
        %3756 = vmatpush.bf16.msra.mxu0 %v2747
        %3757 = vmatpush.bf16.msra.mxu0 %v2745
        %3758 = vmatpush.bf16.msra.mxu0 %v2743
        %3759 = vmatpush.bf16.msra.mxu0 %v2741
        %3760 = vmatpush.bf16.msra.mxu0 %v2739
        %3761 = vmatpush.bf16.msra.mxu0 %v2737
        %3762 = vmatmul.bf16.gmra.mxu0 %v1020
        %v3763 = vpop.f32.mrf.mxu0
        %v3764 = vadd.f32 %v3751, %v3763
        %v3765 = vpop.f32.mrf.mxu0
        %3766 = vdwg.mxu0
        %3767 = vmatpush.bf16.msra.mxu0 %v2767
        %3768 = vmatpush.bf16.msra.mxu0 %v2765
        %3769 = vmatpush.bf16.msra.mxu0 %v2763
        %3770 = vmatpush.bf16.msra.mxu0 %v2761
        %3771 = vmatpush.bf16.msra.mxu0 %v2759
        %3772 = vmatpush.bf16.msra.mxu0 %v2757
        %3773 = vmatpush.bf16.msra.mxu0 %v2755
        %3774 = vmatpush.bf16.msra.mxu0 %v2753
        %3775 = vmatmul.bf16.gmra.mxu0 %v1023
        %v3776 = vpop.f32.mrf.mxu0
        %v3777 = vadd.f32 %v3764, %v3776
        %v3778 = vpop.f32.mrf.mxu0
        %3779 = vdwg.mxu0
        %3780 = vmatpush.bf16.msra.mxu0 %v2783
        %3781 = vmatpush.bf16.msra.mxu0 %v2781
        %3782 = vmatpush.bf16.msra.mxu0 %v2779
        %3783 = vmatpush.bf16.msra.mxu0 %v2777
        %3784 = vmatpush.bf16.msra.mxu0 %v2775
        %3785 = vmatpush.bf16.msra.mxu0 %v2773
        %3786 = vmatpush.bf16.msra.mxu0 %v2771
        %3787 = vmatpush.bf16.msra.mxu0 %v2769
        %3788 = vmatmul.bf16.gmra.mxu0 %v1024
        %v3789 = vpop.f32.mrf.mxu0
        %v3790 = vadd.f32 %v3777, %v3789
        %v3791 = vpop.f32.mrf.mxu0
        %3792 = vdwg.mxu0
        %3793 = vmatpush.bf16.msra.mxu0 %v2799
        %3794 = vmatpush.bf16.msra.mxu0 %v2797
        %3795 = vmatpush.bf16.msra.mxu0 %v2795
        %3796 = vmatpush.bf16.msra.mxu0 %v2793
        %3797 = vmatpush.bf16.msra.mxu0 %v2791
        %3798 = vmatpush.bf16.msra.mxu0 %v2789
        %3799 = vmatpush.bf16.msra.mxu0 %v2787
        %3800 = vmatpush.bf16.msra.mxu0 %v2785
        %3801 = vmatmul.bf16.gmra.mxu0 %v1025
        %v3802 = vpop.f32.mrf.mxu0
        %v3803 = vadd.f32 %v3790, %v3802
        %v3804 = vpop.f32.mrf.mxu0
        %3805 = vdwg.mxu0
        %3806 = vmatpush.bf16.msra.mxu0 %v2815
        %3807 = vmatpush.bf16.msra.mxu0 %v2813
        %3808 = vmatpush.bf16.msra.mxu0 %v2811
        %3809 = vmatpush.bf16.msra.mxu0 %v2809
        %3810 = vmatpush.bf16.msra.mxu0 %v2807
        %3811 = vmatpush.bf16.msra.mxu0 %v2805
        %3812 = vmatpush.bf16.msra.mxu0 %v2803
        %3813 = vmatpush.bf16.msra.mxu0 %v2801
        %3814 = vmatmul.bf16.gmra.mxu0 %v1026
        %v3815 = vpop.f32.mrf.mxu0
        %v3816 = vadd.f32 %v3803, %v3815
        %v3817 = vpop.f32.mrf.mxu0
        %3818 = vdwg.mxu0
        %3819 = vmatpush.bf16.msra.mxu0 %v2831
        %3820 = vmatpush.bf16.msra.mxu0 %v2829
        %3821 = vmatpush.bf16.msra.mxu0 %v2827
        %3822 = vmatpush.bf16.msra.mxu0 %v2825
        %3823 = vmatpush.bf16.msra.mxu0 %v2823
        %3824 = vmatpush.bf16.msra.mxu0 %v2821
        %3825 = vmatpush.bf16.msra.mxu0 %v2819
        %3826 = vmatpush.bf16.msra.mxu0 %v2817
        %3827 = vmatmul.bf16.gmra.mxu0 %v1027
        %v3828 = vpop.f32.mrf.mxu0
        %v3829 = vadd.f32 %v3816, %v3828
        %v3830 = vpop.f32.mrf.mxu0
        %3831 = vdwg.mxu0
        %3832 = vmatpush.bf16.msra.mxu0 %v2847
        %3833 = vmatpush.bf16.msra.mxu0 %v2845
        %3834 = vmatpush.bf16.msra.mxu0 %v2843
        %3835 = vmatpush.bf16.msra.mxu0 %v2841
        %3836 = vmatpush.bf16.msra.mxu0 %v2839
        %3837 = vmatpush.bf16.msra.mxu0 %v2837
        %3838 = vmatpush.bf16.msra.mxu0 %v2835
        %3839 = vmatpush.bf16.msra.mxu0 %v2833
        %3840 = vmatmul.bf16.gmra.mxu0 %v1028
        %v3841 = vpop.f32.mrf.mxu0
        %v3842 = vadd.f32 %v3829, %v3841
        %v3843 = vpop.f32.mrf.mxu0
        %3844 = vdwg.mxu0
        %3845 = vmatpush.bf16.msra.mxu0 %v2863
        %3846 = vmatpush.bf16.msra.mxu0 %v2861
        %3847 = vmatpush.bf16.msra.mxu0 %v2859
        %3848 = vmatpush.bf16.msra.mxu0 %v2857
        %3849 = vmatpush.bf16.msra.mxu0 %v2855
        %3850 = vmatpush.bf16.msra.mxu0 %v2853
        %3851 = vmatpush.bf16.msra.mxu0 %v2851
        %3852 = vmatpush.bf16.msra.mxu0 %v2849
        %3853 = vmatmul.bf16.gmra.mxu0 %v1029
        %v3854 = vpop.f32.mrf.mxu0
        %v3855 = vadd.f32 %v3842, %v3854
        %v3856 = vpop.f32.mrf.mxu0
        %3857 = vdwg.mxu0
        %3858 = vmatpush.bf16.msra.mxu0 %v2879
        %3859 = vmatpush.bf16.msra.mxu0 %v2877
        %3860 = vmatpush.bf16.msra.mxu0 %v2875
        %3861 = vmatpush.bf16.msra.mxu0 %v2873
        %3862 = vmatpush.bf16.msra.mxu0 %v2871
        %3863 = vmatpush.bf16.msra.mxu0 %v2869
        %3864 = vmatpush.bf16.msra.mxu0 %v2867
        %3865 = vmatpush.bf16.msra.mxu0 %v2865
        %3866 = vmatmul.bf16.gmra.mxu0 %v1030
        %v3867 = vpop.f32.mrf.mxu0
        %v3868 = vadd.f32 %v3855, %v3867
        %v3869 = vpop.f32.mrf.mxu0
        %3870 = vdwg.mxu0
        %3871 = vmatpush.bf16.msra.mxu0 %v2895
        %3872 = vmatpush.bf16.msra.mxu0 %v2893
        %3873 = vmatpush.bf16.msra.mxu0 %v2891
        %3874 = vmatpush.bf16.msra.mxu0 %v2889
        %3875 = vmatpush.bf16.msra.mxu0 %v2887
        %3876 = vmatpush.bf16.msra.mxu0 %v2885
        %3877 = vmatpush.bf16.msra.mxu0 %v2883
        %3878 = vmatpush.bf16.msra.mxu0 %v2881
        %3879 = vmatmul.bf16.gmra.mxu0 %v1033
        %v3880 = vpop.f32.mrf.mxu0
        %v3881 = vadd.f32 %v3868, %v3880
        %v3882 = vpop.f32.mrf.mxu0
        %3883 = vdwg.mxu0
        %3884 = vmatpush.bf16.msra.mxu0 %v2911
        %3885 = vmatpush.bf16.msra.mxu0 %v2909
        %3886 = vmatpush.bf16.msra.mxu0 %v2907
        %3887 = vmatpush.bf16.msra.mxu0 %v2905
        %3888 = vmatpush.bf16.msra.mxu0 %v2903
        %3889 = vmatpush.bf16.msra.mxu0 %v2901
        %3890 = vmatpush.bf16.msra.mxu0 %v2899
        %3891 = vmatpush.bf16.msra.mxu0 %v2897
        %3892 = vmatmul.bf16.gmra.mxu0 %v1034
        %v3893 = vpop.f32.mrf.mxu0
        %v3894 = vadd.f32 %v3881, %v3893
        %v3895 = vpop.f32.mrf.mxu0
        %3896 = vdwg.mxu0
        %3897 = vmatpush.bf16.msra.mxu0 %v2927
        %3898 = vmatpush.bf16.msra.mxu0 %v2925
        %3899 = vmatpush.bf16.msra.mxu0 %v2923
        %3900 = vmatpush.bf16.msra.mxu0 %v2921
        %3901 = vmatpush.bf16.msra.mxu0 %v2919
        %3902 = vmatpush.bf16.msra.mxu0 %v2917
        %3903 = vmatpush.bf16.msra.mxu0 %v2915
        %3904 = vmatpush.bf16.msra.mxu0 %v2913
        %3905 = vmatmul.bf16.gmra.mxu0 %v1035
        %v3906 = vpop.f32.mrf.mxu0
        %v3907 = vadd.f32 %v3894, %v3906
        %v3908 = vpop.f32.mrf.mxu0
        %3909 = vdwg.mxu0
        %3910 = vmatpush.bf16.msra.mxu0 %v2943
        %3911 = vmatpush.bf16.msra.mxu0 %v2941
        %3912 = vmatpush.bf16.msra.mxu0 %v2939
        %3913 = vmatpush.bf16.msra.mxu0 %v2937
        %3914 = vmatpush.bf16.msra.mxu0 %v2935
        %3915 = vmatpush.bf16.msra.mxu0 %v2933
        %3916 = vmatpush.bf16.msra.mxu0 %v2931
        %3917 = vmatpush.bf16.msra.mxu0 %v2929
        %3918 = vmatmul.bf16.gmra.mxu0 %v1036
        %v3919 = vpop.f32.mrf.mxu0
        %v3920 = vadd.f32 %v3907, %v3919
        %v3921 = vpop.f32.mrf.mxu0
        %3922 = vdwg.mxu0
        %3923 = vmatpush.bf16.msra.mxu0 %v2959
        %3924 = vmatpush.bf16.msra.mxu0 %v2957
        %3925 = vmatpush.bf16.msra.mxu0 %v2955
        %3926 = vmatpush.bf16.msra.mxu0 %v2953
        %3927 = vmatpush.bf16.msra.mxu0 %v2951
        %3928 = vmatpush.bf16.msra.mxu0 %v2949
        %3929 = vmatpush.bf16.msra.mxu0 %v2947
        %3930 = vmatpush.bf16.msra.mxu0 %v2945
        %3931 = vmatmul.bf16.gmra.mxu0 %v1037
        %v3932 = vpop.f32.mrf.mxu0
        %v3933 = vadd.f32 %v3920, %v3932
        %v3934 = vpop.f32.mrf.mxu0
        %3935 = vdwg.mxu0
        %3936 = vmatpush.bf16.msra.mxu0 %v2975
        %3937 = vmatpush.bf16.msra.mxu0 %v2973
        %3938 = vmatpush.bf16.msra.mxu0 %v2971
        %3939 = vmatpush.bf16.msra.mxu0 %v2969
        %3940 = vmatpush.bf16.msra.mxu0 %v2967
        %3941 = vmatpush.bf16.msra.mxu0 %v2965
        %3942 = vmatpush.bf16.msra.mxu0 %v2963
        %3943 = vmatpush.bf16.msra.mxu0 %v2961
        %3944 = vmatmul.bf16.gmra.mxu0 %v1038
        %v3945 = vpop.f32.mrf.mxu0
        %v3946 = vadd.f32 %v3933, %v3945
        %v3947 = vpop.f32.mrf.mxu0
        %3948 = vdwg.mxu0
        %3949 = vmatpush.bf16.msra.mxu0 %v2991
        %3950 = vmatpush.bf16.msra.mxu0 %v2989
        %3951 = vmatpush.bf16.msra.mxu0 %v2987
        %3952 = vmatpush.bf16.msra.mxu0 %v2985
        %3953 = vmatpush.bf16.msra.mxu0 %v2983
        %3954 = vmatpush.bf16.msra.mxu0 %v2981
        %3955 = vmatpush.bf16.msra.mxu0 %v2979
        %3956 = vmatpush.bf16.msra.mxu0 %v2977
        %3957 = vmatmul.bf16.gmra.mxu0 %v1039
        %v3958 = vpop.f32.mrf.mxu0
        %v3959 = vadd.f32 %v3946, %v3958
        %v3960 = vpop.f32.mrf.mxu0
        %3961 = vdwg.mxu0
        %3962 = vmatpush.bf16.msra.mxu0 %v3007
        %3963 = vmatpush.bf16.msra.mxu0 %v3005
        %3964 = vmatpush.bf16.msra.mxu0 %v3003
        %3965 = vmatpush.bf16.msra.mxu0 %v3001
        %3966 = vmatpush.bf16.msra.mxu0 %v2999
        %3967 = vmatpush.bf16.msra.mxu0 %v2997
        %3968 = vmatpush.bf16.msra.mxu0 %v2995
        %3969 = vmatpush.bf16.msra.mxu0 %v2993
        %3970 = vmatmul.bf16.gmra.mxu0 %v1040
        %v3971 = vpop.f32.mrf.mxu0
        %v3972 = vadd.f32 %v3959, %v3971
        %v3973 = vpop.f32.mrf.mxu0
        %3974 = vdwg.mxu0
        %3975 = vmatpush.bf16.msra.mxu0 %v3023
        %3976 = vmatpush.bf16.msra.mxu0 %v3021
        %3977 = vmatpush.bf16.msra.mxu0 %v3019
        %3978 = vmatpush.bf16.msra.mxu0 %v3017
        %3979 = vmatpush.bf16.msra.mxu0 %v3015
        %3980 = vmatpush.bf16.msra.mxu0 %v3013
        %3981 = vmatpush.bf16.msra.mxu0 %v3011
        %3982 = vmatpush.bf16.msra.mxu0 %v3009
        %3983 = vmatmul.bf16.gmra.mxu0 %v1043
        %v3984 = vpop.f32.mrf.mxu0
        %v3985 = vadd.f32 %v3972, %v3984
        %v3986 = vpop.f32.mrf.mxu0
        %3987 = vdwg.mxu0
        %3988 = vmatpush.bf16.msra.mxu0 %v3039
        %3989 = vmatpush.bf16.msra.mxu0 %v3037
        %3990 = vmatpush.bf16.msra.mxu0 %v3035
        %3991 = vmatpush.bf16.msra.mxu0 %v3033
        %3992 = vmatpush.bf16.msra.mxu0 %v3031
        %3993 = vmatpush.bf16.msra.mxu0 %v3029
        %3994 = vmatpush.bf16.msra.mxu0 %v3027
        %3995 = vmatpush.bf16.msra.mxu0 %v3025
        %3996 = vmatmul.bf16.gmra.mxu0 %v1044
        %v3997 = vpop.f32.mrf.mxu0
        %v3998 = vadd.f32 %v3985, %v3997
        %v3999 = vpop.f32.mrf.mxu0
        %4000 = vdwg.mxu0
        %4001 = vmatpush.bf16.msra.mxu0 %v3055
        %4002 = vmatpush.bf16.msra.mxu0 %v3053
        %4003 = vmatpush.bf16.msra.mxu0 %v3051
        %4004 = vmatpush.bf16.msra.mxu0 %v3049
        %4005 = vmatpush.bf16.msra.mxu0 %v3047
        %4006 = vmatpush.bf16.msra.mxu0 %v3045
        %4007 = vmatpush.bf16.msra.mxu0 %v3043
        %4008 = vmatpush.bf16.msra.mxu0 %v3041
        %4009 = vmatmul.bf16.gmra.mxu0 %v1045
        %v4010 = vpop.f32.mrf.mxu0
        %v4011 = vadd.f32 %v3998, %v4010
        %v4012 = vpop.f32.mrf.mxu0
        %4013 = vdwg.mxu0
        %4014 = vmatpush.bf16.msra.mxu0 %v3071
        %4015 = vmatpush.bf16.msra.mxu0 %v3069
        %4016 = vmatpush.bf16.msra.mxu0 %v3067
        %4017 = vmatpush.bf16.msra.mxu0 %v3065
        %4018 = vmatpush.bf16.msra.mxu0 %v3063
        %4019 = vmatpush.bf16.msra.mxu0 %v3061
        %4020 = vmatpush.bf16.msra.mxu0 %v3059
        %4021 = vmatpush.bf16.msra.mxu0 %v3057
        %4022 = vmatmul.bf16.gmra.mxu0 %v1046
        %v4023 = vpop.f32.mrf.mxu0
        %v4024 = vadd.f32 %v4011, %v4023
        %v4025 = vpop.f32.mrf.mxu0
        %4026 = vdwg.mxu0
        %4027 = vmatpush.bf16.msra.mxu0 %v3087
        %4028 = vmatpush.bf16.msra.mxu0 %v3085
        %4029 = vmatpush.bf16.msra.mxu0 %v3083
        %4030 = vmatpush.bf16.msra.mxu0 %v3081
        %4031 = vmatpush.bf16.msra.mxu0 %v3079
        %4032 = vmatpush.bf16.msra.mxu0 %v3077
        %4033 = vmatpush.bf16.msra.mxu0 %v3075
        %4034 = vmatpush.bf16.msra.mxu0 %v3073
        %4035 = vmatmul.bf16.gmra.mxu0 %v1047
        %v4036 = vpop.f32.mrf.mxu0
        %v4037 = vadd.f32 %v4024, %v4036
        %v4038 = vpop.f32.mrf.mxu0
        %4039 = vdwg.mxu0
        %4040 = vmatpush.bf16.msra.mxu0 %v3103
        %4041 = vmatpush.bf16.msra.mxu0 %v3101
        %4042 = vmatpush.bf16.msra.mxu0 %v3099
        %4043 = vmatpush.bf16.msra.mxu0 %v3097
        %4044 = vmatpush.bf16.msra.mxu0 %v3095
        %4045 = vmatpush.bf16.msra.mxu0 %v3093
        %4046 = vmatpush.bf16.msra.mxu0 %v3091
        %4047 = vmatpush.bf16.msra.mxu0 %v3089
        %4048 = vmatmul.bf16.gmra.mxu0 %v1048
        %v4049 = vpop.f32.mrf.mxu0
        %v4050 = vadd.f32 %v4037, %v4049
        %v4051 = vpop.f32.mrf.mxu0
        %4052 = vdwg.mxu0
        %4053 = vmatpush.bf16.msra.mxu0 %v3119
        %4054 = vmatpush.bf16.msra.mxu0 %v3117
        %4055 = vmatpush.bf16.msra.mxu0 %v3115
        %4056 = vmatpush.bf16.msra.mxu0 %v3113
        %4057 = vmatpush.bf16.msra.mxu0 %v3111
        %4058 = vmatpush.bf16.msra.mxu0 %v3109
        %4059 = vmatpush.bf16.msra.mxu0 %v3107
        %4060 = vmatpush.bf16.msra.mxu0 %v3105
        %4061 = vmatmul.bf16.gmra.mxu0 %v1049
        %v4062 = vpop.f32.mrf.mxu0
        %v4063 = vadd.f32 %v4050, %v4062
        %v4064 = vpop.f32.mrf.mxu0
        %4065 = vdwg.mxu0
        %4066 = vmatpush.bf16.msra.mxu0 %v3135
        %4067 = vmatpush.bf16.msra.mxu0 %v3133
        %4068 = vmatpush.bf16.msra.mxu0 %v3131
        %4069 = vmatpush.bf16.msra.mxu0 %v3129
        %4070 = vmatpush.bf16.msra.mxu0 %v3127
        %4071 = vmatpush.bf16.msra.mxu0 %v3125
        %4072 = vmatpush.bf16.msra.mxu0 %v3123
        %4073 = vmatpush.bf16.msra.mxu0 %v3121
        %4074 = vmatmul.bf16.gmra.mxu0 %v1050
        %v4075 = vpop.f32.mrf.mxu0
        %v4076 = vadd.f32 %v4063, %v4075
        %v4077 = vpop.f32.mrf.mxu0
        %4078 = vdwg.mxu0
        %4079 = vmatpush.bf16.msra.mxu0 0
        %4080 = vmatpush.bf16.msra.mxu0 0
        %4081 = vmatpush.bf16.msra.mxu0 0
        %4082 = vmatpush.bf16.msra.mxu0 0
        %4083 = vmatpush.bf16.msra.mxu0 0
        %4084 = vmatpush.bf16.msra.mxu0 0
        %4085 = vmatpush.bf16.msra.mxu0 0
        %4086 = vmatpush.bf16.msra.mxu0 %v3658
        %4087 = vmatmul.bf16.gmra.mxu0 %v3652
        %v4088 = vpop.f32.mrf.mxu0
        %v4089 = vadd.f32 %v4076, %v4088
        %v4090 = vpop.f32.mrf.mxu0
        %4091 = vdwg.mxu0
        %4092 = vmatpush.bf16.msra.mxu0 %v2640
        %4093 = vmatpush.bf16.msra.mxu0 %v2638
        %4094 = vmatpush.bf16.msra.mxu0 %v2636
        %4095 = vmatpush.bf16.msra.mxu0 %v2634
        %4096 = vmatpush.bf16.msra.mxu0 %v2632
        %4097 = vmatpush.bf16.msra.mxu0 %v2630
        %4098 = vmatpush.bf16.msra.mxu0 %v2628
        %4099 = vmatpush.bf16.msra.mxu0 %v2626
        %4100 = vmatmul.bf16.gmra.mxu0 %v1013
        %v4101 = vpop.f32.mrf.mxu0
        %v4102 = vadd.f32 %v1008, %v4101
        %v4103 = vpop.f32.mrf.mxu0
        %4104 = vdwg.mxu0
        %4105 = vmatpush.bf16.msra.mxu0 %v2656
        %4106 = vmatpush.bf16.msra.mxu0 %v2654
        %4107 = vmatpush.bf16.msra.mxu0 %v2652
        %4108 = vmatpush.bf16.msra.mxu0 %v2650
        %4109 = vmatpush.bf16.msra.mxu0 %v2648
        %4110 = vmatpush.bf16.msra.mxu0 %v2646
        %4111 = vmatpush.bf16.msra.mxu0 %v2644
        %4112 = vmatpush.bf16.msra.mxu0 %v2642
        %4113 = vmatmul.bf16.gmra.mxu0 %v1014
        %v4114 = vpop.f32.mrf.mxu0
        %v4115 = vadd.f32 %v4102, %v4114
        %v4116 = vpop.f32.mrf.mxu0
        %4117 = vdwg.mxu0
        %4118 = vmatpush.bf16.msra.mxu0 %v2672
        %4119 = vmatpush.bf16.msra.mxu0 %v2670
        %4120 = vmatpush.bf16.msra.mxu0 %v2668
        %4121 = vmatpush.bf16.msra.mxu0 %v2666
        %4122 = vmatpush.bf16.msra.mxu0 %v2664
        %4123 = vmatpush.bf16.msra.mxu0 %v2662
        %4124 = vmatpush.bf16.msra.mxu0 %v2660
        %4125 = vmatpush.bf16.msra.mxu0 %v2658
        %4126 = vmatmul.bf16.gmra.mxu0 %v1015
        %v4127 = vpop.f32.mrf.mxu0
        %v4128 = vadd.f32 %v4115, %v4127
        %v4129 = vpop.f32.mrf.mxu0
        %4130 = vdwg.mxu0
        %4131 = vmatpush.bf16.msra.mxu0 %v2688
        %4132 = vmatpush.bf16.msra.mxu0 %v2686
        %4133 = vmatpush.bf16.msra.mxu0 %v2684
        %4134 = vmatpush.bf16.msra.mxu0 %v2682
        %4135 = vmatpush.bf16.msra.mxu0 %v2680
        %4136 = vmatpush.bf16.msra.mxu0 %v2678
        %4137 = vmatpush.bf16.msra.mxu0 %v2676
        %4138 = vmatpush.bf16.msra.mxu0 %v2674
        %4139 = vmatmul.bf16.gmra.mxu0 %v1016
        %v4140 = vpop.f32.mrf.mxu0
        %v4141 = vadd.f32 %v4128, %v4140
        %v4142 = vpop.f32.mrf.mxu0
        %4143 = vdwg.mxu0
        %4144 = vmatpush.bf16.msra.mxu0 %v2704
        %4145 = vmatpush.bf16.msra.mxu0 %v2702
        %4146 = vmatpush.bf16.msra.mxu0 %v2700
        %4147 = vmatpush.bf16.msra.mxu0 %v2698
        %4148 = vmatpush.bf16.msra.mxu0 %v2696
        %4149 = vmatpush.bf16.msra.mxu0 %v2694
        %4150 = vmatpush.bf16.msra.mxu0 %v2692
        %4151 = vmatpush.bf16.msra.mxu0 %v2690
        %4152 = vmatmul.bf16.gmra.mxu0 %v1017
        %v4153 = vpop.f32.mrf.mxu0
        %v4154 = vadd.f32 %v4141, %v4153
        %v4155 = vpop.f32.mrf.mxu0
        %4156 = vdwg.mxu0
        %4157 = vmatpush.bf16.msra.mxu0 %v2720
        %4158 = vmatpush.bf16.msra.mxu0 %v2718
        %4159 = vmatpush.bf16.msra.mxu0 %v2716
        %4160 = vmatpush.bf16.msra.mxu0 %v2714
        %4161 = vmatpush.bf16.msra.mxu0 %v2712
        %4162 = vmatpush.bf16.msra.mxu0 %v2710
        %4163 = vmatpush.bf16.msra.mxu0 %v2708
        %4164 = vmatpush.bf16.msra.mxu0 %v2706
        %4165 = vmatmul.bf16.gmra.mxu0 %v1018
        %v4166 = vpop.f32.mrf.mxu0
        %v4167 = vadd.f32 %v4154, %v4166
        %v4168 = vpop.f32.mrf.mxu0
        %4169 = vdwg.mxu0
        %4170 = vmatpush.bf16.msra.mxu0 %v2736
        %4171 = vmatpush.bf16.msra.mxu0 %v2734
        %4172 = vmatpush.bf16.msra.mxu0 %v2732
        %4173 = vmatpush.bf16.msra.mxu0 %v2730
        %4174 = vmatpush.bf16.msra.mxu0 %v2728
        %4175 = vmatpush.bf16.msra.mxu0 %v2726
        %4176 = vmatpush.bf16.msra.mxu0 %v2724
        %4177 = vmatpush.bf16.msra.mxu0 %v2722
        %4178 = vmatmul.bf16.gmra.mxu0 %v1019
        %v4179 = vpop.f32.mrf.mxu0
        %v4180 = vadd.f32 %v4167, %v4179
        %v4181 = vpop.f32.mrf.mxu0
        %4182 = vdwg.mxu0
        %4183 = vmatpush.bf16.msra.mxu0 %v2752
        %4184 = vmatpush.bf16.msra.mxu0 %v2750
        %4185 = vmatpush.bf16.msra.mxu0 %v2748
        %4186 = vmatpush.bf16.msra.mxu0 %v2746
        %4187 = vmatpush.bf16.msra.mxu0 %v2744
        %4188 = vmatpush.bf16.msra.mxu0 %v2742
        %4189 = vmatpush.bf16.msra.mxu0 %v2740
        %4190 = vmatpush.bf16.msra.mxu0 %v2738
        %4191 = vmatmul.bf16.gmra.mxu0 %v1020
        %v4192 = vpop.f32.mrf.mxu0
        %v4193 = vadd.f32 %v4180, %v4192
        %v4194 = vpop.f32.mrf.mxu0
        %4195 = vdwg.mxu0
        %4196 = vmatpush.bf16.msra.mxu0 %v2768
        %4197 = vmatpush.bf16.msra.mxu0 %v2766
        %4198 = vmatpush.bf16.msra.mxu0 %v2764
        %4199 = vmatpush.bf16.msra.mxu0 %v2762
        %4200 = vmatpush.bf16.msra.mxu0 %v2760
        %4201 = vmatpush.bf16.msra.mxu0 %v2758
        %4202 = vmatpush.bf16.msra.mxu0 %v2756
        %4203 = vmatpush.bf16.msra.mxu0 %v2754
        %4204 = vmatmul.bf16.gmra.mxu0 %v1023
        %v4205 = vpop.f32.mrf.mxu0
        %v4206 = vadd.f32 %v4193, %v4205
        %v4207 = vpop.f32.mrf.mxu0
        %4208 = vdwg.mxu0
        %4209 = vmatpush.bf16.msra.mxu0 %v2784
        %4210 = vmatpush.bf16.msra.mxu0 %v2782
        %4211 = vmatpush.bf16.msra.mxu0 %v2780
        %4212 = vmatpush.bf16.msra.mxu0 %v2778
        %4213 = vmatpush.bf16.msra.mxu0 %v2776
        %4214 = vmatpush.bf16.msra.mxu0 %v2774
        %4215 = vmatpush.bf16.msra.mxu0 %v2772
        %4216 = vmatpush.bf16.msra.mxu0 %v2770
        %4217 = vmatmul.bf16.gmra.mxu0 %v1024
        %v4218 = vpop.f32.mrf.mxu0
        %v4219 = vadd.f32 %v4206, %v4218
        %v4220 = vpop.f32.mrf.mxu0
        %4221 = vdwg.mxu0
        %4222 = vmatpush.bf16.msra.mxu0 %v2800
        %4223 = vmatpush.bf16.msra.mxu0 %v2798
        %4224 = vmatpush.bf16.msra.mxu0 %v2796
        %4225 = vmatpush.bf16.msra.mxu0 %v2794
        %4226 = vmatpush.bf16.msra.mxu0 %v2792
        %4227 = vmatpush.bf16.msra.mxu0 %v2790
        %4228 = vmatpush.bf16.msra.mxu0 %v2788
        %4229 = vmatpush.bf16.msra.mxu0 %v2786
        %4230 = vmatmul.bf16.gmra.mxu0 %v1025
        %v4231 = vpop.f32.mrf.mxu0
        %v4232 = vadd.f32 %v4219, %v4231
        %v4233 = vpop.f32.mrf.mxu0
        %4234 = vdwg.mxu0
        %4235 = vmatpush.bf16.msra.mxu0 %v2816
        %4236 = vmatpush.bf16.msra.mxu0 %v2814
        %4237 = vmatpush.bf16.msra.mxu0 %v2812
        %4238 = vmatpush.bf16.msra.mxu0 %v2810
        %4239 = vmatpush.bf16.msra.mxu0 %v2808
        %4240 = vmatpush.bf16.msra.mxu0 %v2806
        %4241 = vmatpush.bf16.msra.mxu0 %v2804
        %4242 = vmatpush.bf16.msra.mxu0 %v2802
        %4243 = vmatmul.bf16.gmra.mxu0 %v1026
        %v4244 = vpop.f32.mrf.mxu0
        %v4245 = vadd.f32 %v4232, %v4244
        %v4246 = vpop.f32.mrf.mxu0
        %4247 = vdwg.mxu0
        %4248 = vmatpush.bf16.msra.mxu0 %v2832
        %4249 = vmatpush.bf16.msra.mxu0 %v2830
        %4250 = vmatpush.bf16.msra.mxu0 %v2828
        %4251 = vmatpush.bf16.msra.mxu0 %v2826
        %4252 = vmatpush.bf16.msra.mxu0 %v2824
        %4253 = vmatpush.bf16.msra.mxu0 %v2822
        %4254 = vmatpush.bf16.msra.mxu0 %v2820
        %4255 = vmatpush.bf16.msra.mxu0 %v2818
        %4256 = vmatmul.bf16.gmra.mxu0 %v1027
        %v4257 = vpop.f32.mrf.mxu0
        %v4258 = vadd.f32 %v4245, %v4257
        %v4259 = vpop.f32.mrf.mxu0
        %4260 = vdwg.mxu0
        %4261 = vmatpush.bf16.msra.mxu0 %v2848
        %4262 = vmatpush.bf16.msra.mxu0 %v2846
        %4263 = vmatpush.bf16.msra.mxu0 %v2844
        %4264 = vmatpush.bf16.msra.mxu0 %v2842
        %4265 = vmatpush.bf16.msra.mxu0 %v2840
        %4266 = vmatpush.bf16.msra.mxu0 %v2838
        %4267 = vmatpush.bf16.msra.mxu0 %v2836
        %4268 = vmatpush.bf16.msra.mxu0 %v2834
        %4269 = vmatmul.bf16.gmra.mxu0 %v1028
        %v4270 = vpop.f32.mrf.mxu0
        %v4271 = vadd.f32 %v4258, %v4270
        %v4272 = vpop.f32.mrf.mxu0
        %4273 = vdwg.mxu0
        %4274 = vmatpush.bf16.msra.mxu0 %v2864
        %4275 = vmatpush.bf16.msra.mxu0 %v2862
        %4276 = vmatpush.bf16.msra.mxu0 %v2860
        %4277 = vmatpush.bf16.msra.mxu0 %v2858
        %4278 = vmatpush.bf16.msra.mxu0 %v2856
        %4279 = vmatpush.bf16.msra.mxu0 %v2854
        %4280 = vmatpush.bf16.msra.mxu0 %v2852
        %4281 = vmatpush.bf16.msra.mxu0 %v2850
        %4282 = vmatmul.bf16.gmra.mxu0 %v1029
        %v4283 = vpop.f32.mrf.mxu0
        %v4284 = vadd.f32 %v4271, %v4283
        %v4285 = vpop.f32.mrf.mxu0
        %4286 = vdwg.mxu0
        %4287 = vmatpush.bf16.msra.mxu0 %v2880
        %4288 = vmatpush.bf16.msra.mxu0 %v2878
        %4289 = vmatpush.bf16.msra.mxu0 %v2876
        %4290 = vmatpush.bf16.msra.mxu0 %v2874
        %4291 = vmatpush.bf16.msra.mxu0 %v2872
        %4292 = vmatpush.bf16.msra.mxu0 %v2870
        %4293 = vmatpush.bf16.msra.mxu0 %v2868
        %4294 = vmatpush.bf16.msra.mxu0 %v2866
        %4295 = vmatmul.bf16.gmra.mxu0 %v1030
        %v4296 = vpop.f32.mrf.mxu0
        %v4297 = vadd.f32 %v4284, %v4296
        %v4298 = vpop.f32.mrf.mxu0
        %4299 = vdwg.mxu0
        %4300 = vmatpush.bf16.msra.mxu0 %v2896
        %4301 = vmatpush.bf16.msra.mxu0 %v2894
        %4302 = vmatpush.bf16.msra.mxu0 %v2892
        %4303 = vmatpush.bf16.msra.mxu0 %v2890
        %4304 = vmatpush.bf16.msra.mxu0 %v2888
        %4305 = vmatpush.bf16.msra.mxu0 %v2886
        %4306 = vmatpush.bf16.msra.mxu0 %v2884
        %4307 = vmatpush.bf16.msra.mxu0 %v2882
        %4308 = vmatmul.bf16.gmra.mxu0 %v1033
        %v4309 = vpop.f32.mrf.mxu0
        %v4310 = vadd.f32 %v4297, %v4309
        %v4311 = vpop.f32.mrf.mxu0
        %4312 = vdwg.mxu0
        %4313 = vmatpush.bf16.msra.mxu0 %v2912
        %4314 = vmatpush.bf16.msra.mxu0 %v2910
        %4315 = vmatpush.bf16.msra.mxu0 %v2908
        %4316 = vmatpush.bf16.msra.mxu0 %v2906
        %4317 = vmatpush.bf16.msra.mxu0 %v2904
        %4318 = vmatpush.bf16.msra.mxu0 %v2902
        %4319 = vmatpush.bf16.msra.mxu0 %v2900
        %4320 = vmatpush.bf16.msra.mxu0 %v2898
        %4321 = vmatmul.bf16.gmra.mxu0 %v1034
        %v4322 = vpop.f32.mrf.mxu0
        %v4323 = vadd.f32 %v4310, %v4322
        %v4324 = vpop.f32.mrf.mxu0
        %4325 = vdwg.mxu0
        %4326 = vmatpush.bf16.msra.mxu0 %v2928
        %4327 = vmatpush.bf16.msra.mxu0 %v2926
        %4328 = vmatpush.bf16.msra.mxu0 %v2924
        %4329 = vmatpush.bf16.msra.mxu0 %v2922
        %4330 = vmatpush.bf16.msra.mxu0 %v2920
        %4331 = vmatpush.bf16.msra.mxu0 %v2918
        %4332 = vmatpush.bf16.msra.mxu0 %v2916
        %4333 = vmatpush.bf16.msra.mxu0 %v2914
        %4334 = vmatmul.bf16.gmra.mxu0 %v1035
        %v4335 = vpop.f32.mrf.mxu0
        %v4336 = vadd.f32 %v4323, %v4335
        %v4337 = vpop.f32.mrf.mxu0
        %4338 = vdwg.mxu0
        %4339 = vmatpush.bf16.msra.mxu0 %v2944
        %4340 = vmatpush.bf16.msra.mxu0 %v2942
        %4341 = vmatpush.bf16.msra.mxu0 %v2940
        %4342 = vmatpush.bf16.msra.mxu0 %v2938
        %4343 = vmatpush.bf16.msra.mxu0 %v2936
        %4344 = vmatpush.bf16.msra.mxu0 %v2934
        %4345 = vmatpush.bf16.msra.mxu0 %v2932
        %4346 = vmatpush.bf16.msra.mxu0 %v2930
        %4347 = vmatmul.bf16.gmra.mxu0 %v1036
        %v4348 = vpop.f32.mrf.mxu0
        %v4349 = vadd.f32 %v4336, %v4348
        %v4350 = vpop.f32.mrf.mxu0
        %4351 = vdwg.mxu0
        %4352 = vmatpush.bf16.msra.mxu0 %v2960
        %4353 = vmatpush.bf16.msra.mxu0 %v2958
        %4354 = vmatpush.bf16.msra.mxu0 %v2956
        %4355 = vmatpush.bf16.msra.mxu0 %v2954
        %4356 = vmatpush.bf16.msra.mxu0 %v2952
        %4357 = vmatpush.bf16.msra.mxu0 %v2950
        %4358 = vmatpush.bf16.msra.mxu0 %v2948
        %4359 = vmatpush.bf16.msra.mxu0 %v2946
        %4360 = vmatmul.bf16.gmra.mxu0 %v1037
        %v4361 = vpop.f32.mrf.mxu0
        %v4362 = vadd.f32 %v4349, %v4361
        %v4363 = vpop.f32.mrf.mxu0
        %4364 = vdwg.mxu0
        %4365 = vmatpush.bf16.msra.mxu0 %v2976
        %4366 = vmatpush.bf16.msra.mxu0 %v2974
        %4367 = vmatpush.bf16.msra.mxu0 %v2972
        %4368 = vmatpush.bf16.msra.mxu0 %v2970
        %4369 = vmatpush.bf16.msra.mxu0 %v2968
        %4370 = vmatpush.bf16.msra.mxu0 %v2966
        %4371 = vmatpush.bf16.msra.mxu0 %v2964
        %4372 = vmatpush.bf16.msra.mxu0 %v2962
        %4373 = vmatmul.bf16.gmra.mxu0 %v1038
        %v4374 = vpop.f32.mrf.mxu0
        %v4375 = vadd.f32 %v4362, %v4374
        %v4376 = vpop.f32.mrf.mxu0
        %4377 = vdwg.mxu0
        %4378 = vmatpush.bf16.msra.mxu0 %v2992
        %4379 = vmatpush.bf16.msra.mxu0 %v2990
        %4380 = vmatpush.bf16.msra.mxu0 %v2988
        %4381 = vmatpush.bf16.msra.mxu0 %v2986
        %4382 = vmatpush.bf16.msra.mxu0 %v2984
        %4383 = vmatpush.bf16.msra.mxu0 %v2982
        %4384 = vmatpush.bf16.msra.mxu0 %v2980
        %4385 = vmatpush.bf16.msra.mxu0 %v2978
        %4386 = vmatmul.bf16.gmra.mxu0 %v1039
        %v4387 = vpop.f32.mrf.mxu0
        %v4388 = vadd.f32 %v4375, %v4387
        %v4389 = vpop.f32.mrf.mxu0
        %4390 = vdwg.mxu0
        %4391 = vmatpush.bf16.msra.mxu0 %v3008
        %4392 = vmatpush.bf16.msra.mxu0 %v3006
        %4393 = vmatpush.bf16.msra.mxu0 %v3004
        %4394 = vmatpush.bf16.msra.mxu0 %v3002
        %4395 = vmatpush.bf16.msra.mxu0 %v3000
        %4396 = vmatpush.bf16.msra.mxu0 %v2998
        %4397 = vmatpush.bf16.msra.mxu0 %v2996
        %4398 = vmatpush.bf16.msra.mxu0 %v2994
        %4399 = vmatmul.bf16.gmra.mxu0 %v1040
        %v4400 = vpop.f32.mrf.mxu0
        %v4401 = vadd.f32 %v4388, %v4400
        %v4402 = vpop.f32.mrf.mxu0
        %4403 = vdwg.mxu0
        %4404 = vmatpush.bf16.msra.mxu0 %v3024
        %4405 = vmatpush.bf16.msra.mxu0 %v3022
        %4406 = vmatpush.bf16.msra.mxu0 %v3020
        %4407 = vmatpush.bf16.msra.mxu0 %v3018
        %4408 = vmatpush.bf16.msra.mxu0 %v3016
        %4409 = vmatpush.bf16.msra.mxu0 %v3014
        %4410 = vmatpush.bf16.msra.mxu0 %v3012
        %4411 = vmatpush.bf16.msra.mxu0 %v3010
        %4412 = vmatmul.bf16.gmra.mxu0 %v1043
        %v4413 = vpop.f32.mrf.mxu0
        %v4414 = vadd.f32 %v4401, %v4413
        %v4415 = vpop.f32.mrf.mxu0
        %4416 = vdwg.mxu0
        %4417 = vmatpush.bf16.msra.mxu0 %v3040
        %4418 = vmatpush.bf16.msra.mxu0 %v3038
        %4419 = vmatpush.bf16.msra.mxu0 %v3036
        %4420 = vmatpush.bf16.msra.mxu0 %v3034
        %4421 = vmatpush.bf16.msra.mxu0 %v3032
        %4422 = vmatpush.bf16.msra.mxu0 %v3030
        %4423 = vmatpush.bf16.msra.mxu0 %v3028
        %4424 = vmatpush.bf16.msra.mxu0 %v3026
        %4425 = vmatmul.bf16.gmra.mxu0 %v1044
        %v4426 = vpop.f32.mrf.mxu0
        %v4427 = vadd.f32 %v4414, %v4426
        %v4428 = vpop.f32.mrf.mxu0
        %4429 = vdwg.mxu0
        %4430 = vmatpush.bf16.msra.mxu0 %v3056
        %4431 = vmatpush.bf16.msra.mxu0 %v3054
        %4432 = vmatpush.bf16.msra.mxu0 %v3052
        %4433 = vmatpush.bf16.msra.mxu0 %v3050
        %4434 = vmatpush.bf16.msra.mxu0 %v3048
        %4435 = vmatpush.bf16.msra.mxu0 %v3046
        %4436 = vmatpush.bf16.msra.mxu0 %v3044
        %4437 = vmatpush.bf16.msra.mxu0 %v3042
        %4438 = vmatmul.bf16.gmra.mxu0 %v1045
        %v4439 = vpop.f32.mrf.mxu0
        %v4440 = vadd.f32 %v4427, %v4439
        %v4441 = vpop.f32.mrf.mxu0
        %4442 = vdwg.mxu0
        %4443 = vmatpush.bf16.msra.mxu0 %v3072
        %4444 = vmatpush.bf16.msra.mxu0 %v3070
        %4445 = vmatpush.bf16.msra.mxu0 %v3068
        %4446 = vmatpush.bf16.msra.mxu0 %v3066
        %4447 = vmatpush.bf16.msra.mxu0 %v3064
        %4448 = vmatpush.bf16.msra.mxu0 %v3062
        %4449 = vmatpush.bf16.msra.mxu0 %v3060
        %4450 = vmatpush.bf16.msra.mxu0 %v3058
        %4451 = vmatmul.bf16.gmra.mxu0 %v1046
        %v4452 = vpop.f32.mrf.mxu0
        %v4453 = vadd.f32 %v4440, %v4452
        %v4454 = vpop.f32.mrf.mxu0
        %4455 = vdwg.mxu0
        %4456 = vmatpush.bf16.msra.mxu0 %v3088
        %4457 = vmatpush.bf16.msra.mxu0 %v3086
        %4458 = vmatpush.bf16.msra.mxu0 %v3084
        %4459 = vmatpush.bf16.msra.mxu0 %v3082
        %4460 = vmatpush.bf16.msra.mxu0 %v3080
        %4461 = vmatpush.bf16.msra.mxu0 %v3078
        %4462 = vmatpush.bf16.msra.mxu0 %v3076
        %4463 = vmatpush.bf16.msra.mxu0 %v3074
        %4464 = vmatmul.bf16.gmra.mxu0 %v1047
        %v4465 = vpop.f32.mrf.mxu0
        %v4466 = vadd.f32 %v4453, %v4465
        %v4467 = vpop.f32.mrf.mxu0
        %4468 = vdwg.mxu0
        %4469 = vmatpush.bf16.msra.mxu0 %v3104
        %4470 = vmatpush.bf16.msra.mxu0 %v3102
        %4471 = vmatpush.bf16.msra.mxu0 %v3100
        %4472 = vmatpush.bf16.msra.mxu0 %v3098
        %4473 = vmatpush.bf16.msra.mxu0 %v3096
        %4474 = vmatpush.bf16.msra.mxu0 %v3094
        %4475 = vmatpush.bf16.msra.mxu0 %v3092
        %4476 = vmatpush.bf16.msra.mxu0 %v3090
        %4477 = vmatmul.bf16.gmra.mxu0 %v1048
        %v4478 = vpop.f32.mrf.mxu0
        %v4479 = vadd.f32 %v4466, %v4478
        %v4480 = vpop.f32.mrf.mxu0
        %4481 = vdwg.mxu0
        %4482 = vmatpush.bf16.msra.mxu0 %v3120
        %4483 = vmatpush.bf16.msra.mxu0 %v3118
        %4484 = vmatpush.bf16.msra.mxu0 %v3116
        %4485 = vmatpush.bf16.msra.mxu0 %v3114
        %4486 = vmatpush.bf16.msra.mxu0 %v3112
        %4487 = vmatpush.bf16.msra.mxu0 %v3110
        %4488 = vmatpush.bf16.msra.mxu0 %v3108
        %4489 = vmatpush.bf16.msra.mxu0 %v3106
        %4490 = vmatmul.bf16.gmra.mxu0 %v1049
        %v4491 = vpop.f32.mrf.mxu0
        %v4492 = vadd.f32 %v4479, %v4491
        %v4493 = vpop.f32.mrf.mxu0
        %4494 = vdwg.mxu0
        %4495 = vmatpush.bf16.msra.mxu0 %v3136
        %4496 = vmatpush.bf16.msra.mxu0 %v3134
        %4497 = vmatpush.bf16.msra.mxu0 %v3132
        %4498 = vmatpush.bf16.msra.mxu0 %v3130
        %4499 = vmatpush.bf16.msra.mxu0 %v3128
        %4500 = vmatpush.bf16.msra.mxu0 %v3126
        %4501 = vmatpush.bf16.msra.mxu0 %v3124
        %4502 = vmatpush.bf16.msra.mxu0 %v3122
        %4503 = vmatmul.bf16.gmra.mxu0 %v1050
        %v4504 = vpop.f32.mrf.mxu0
        %v4505 = vadd.f32 %v4492, %v4504
        %v4506 = vpop.f32.mrf.mxu0
        %4507 = vdwg.mxu0
        %4508 = vmatpush.bf16.msra.mxu0 0
        %4509 = vmatpush.bf16.msra.mxu0 0
        %4510 = vmatpush.bf16.msra.mxu0 0
        %4511 = vmatpush.bf16.msra.mxu0 0
        %4512 = vmatpush.bf16.msra.mxu0 0
        %4513 = vmatpush.bf16.msra.mxu0 0
        %4514 = vmatpush.bf16.msra.mxu0 0
        %4515 = vmatpush.bf16.msra.mxu0 %v3661
        %4516 = vmatmul.bf16.gmra.mxu0 %v3652
        %v4517 = vpop.f32.mrf.mxu0
        %v4518 = vadd.f32 %v4505, %v4517
        %v4519 = vpop.f32.mrf.mxu0
        %4520 = vdwg.mxu0
        %v4521 = vmax.f32 %v4089, 0.0
        %v4522 = vmax.f32 %v4518, 0.0
        %v4523 = vpack.c.bf16 %v4521, %v4521
        %v4524 = vpack.c.bf16 %v4522, %v4522
        %v4525 = vld [vmem:[#allocation2] sm:$0xf]
        %v4526 = vld [vmem:[%s422] sm:$0xff]
        %v4527 = vld [vmem:[%s422 + $0x8] sm:$0xff]
        %v4528 = vld [vmem:[%s422 + $0x10] sm:$0xff]
        %v4529 = vld [vmem:[%s422 + $0x18] sm:$0xff]
        %v4530 = vld [vmem:[%s422 + $0x20] sm:$0xff]
        %v4531 = vld [vmem:[%s422 + $0x28] sm:$0xff]
        %v4532 = vld [vmem:[%s422 + $0x30] sm:$0xff]
        %v4533 = vld [vmem:[%s422 + $0x38] sm:$0xff]
        %v4534 = vld [vmem:[%s422 + $0x40] sm:$0xff]
        %v4535 = vld [vmem:[%s422 + $0x48] sm:$0xff]
        %v4536 = vld [vmem:[%s422 + $0x50] sm:$0xff]
        %v4537 = vld [vmem:[%s422 + $0x58] sm:$0xff]
        %v4538 = vld [vmem:[%s422 + $0x60] sm:$0xff]
        %v4539 = vld [vmem:[%s422 + $0x68] sm:$0xff]
        %v4540 = vld [vmem:[%s422 + $0x70] sm:$0xff]
        %v4541 = vld [vmem:[%s422 + $0x78] sm:$0xff]
        %v4542 = vld [vmem:[%s422 + $0x80] sm:$0xff]
        %v4543 = vld [vmem:[%s422 + $0x88] sm:$0xff]
        %v4544 = vld [vmem:[%s422 + $0x90] sm:$0xff]
        %v4545 = vld [vmem:[%s422 + $0x98] sm:$0xff]
        %v4546 = vld [vmem:[%s422 + $0xa0] sm:$0xff]
        %v4547 = vld [vmem:[%s422 + $0xa8] sm:$0xff]
        %v4548 = vld [vmem:[%s422 + $0xb0] sm:$0xff]
        %v4549 = vld [vmem:[%s422 + $0xb8] sm:$0xff]
        %v4550 = vld [vmem:[%s422 + $0xc0] sm:$0xff]
        %v4551 = vld [vmem:[%s422 + $0xc8] sm:$0xff]
        %v4552 = vld [vmem:[%s422 + $0xd0] sm:$0xff]
        %v4553 = vld [vmem:[%s422 + $0xd8] sm:$0xff]
        %v4554 = vld [vmem:[%s422 + $0xe0] sm:$0xff]
        %v4555 = vld [vmem:[%s422 + $0xe8] sm:$0xff]
        %v4556 = vld [vmem:[%s422 + $0xf0] sm:$0xff]
        %v4557 = vld [vmem:[%s422 + $0xf8] sm:$0xff]
        %v4590 = vunpack.c.l.b16 %v4526
        %v4591 = vunpack.c.h.b16 %v4526
        %v4592 = vunpack.c.l.b16 %v4527
        %v4593 = vunpack.c.h.b16 %v4527
        %v4594 = vunpack.c.l.b16 %v4528
        %v4595 = vunpack.c.h.b16 %v4528
        %v4596 = vunpack.c.l.b16 %v4529
        %v4597 = vunpack.c.h.b16 %v4529
        %v4598 = vunpack.c.l.b16 %v4530
        %v4599 = vunpack.c.h.b16 %v4530
        %v4600 = vunpack.c.l.b16 %v4531
        %v4601 = vunpack.c.h.b16 %v4531
        %v4602 = vunpack.c.l.b16 %v4532
        %v4603 = vunpack.c.h.b16 %v4532
        %v4604 = vunpack.c.l.b16 %v4533
        %v4605 = vunpack.c.h.b16 %v4533
        %v4606 = vunpack.c.l.b16 %v4534
        %v4607 = vunpack.c.h.b16 %v4534
        %v4608 = vunpack.c.l.b16 %v4535
        %v4609 = vunpack.c.h.b16 %v4535
        %v4610 = vunpack.c.l.b16 %v4536
        %v4611 = vunpack.c.h.b16 %v4536
        %v4612 = vunpack.c.l.b16 %v4537
        %v4613 = vunpack.c.h.b16 %v4537
        %v4614 = vunpack.c.l.b16 %v4538
        %v4615 = vunpack.c.h.b16 %v4538
        %v4616 = vunpack.c.l.b16 %v4539
        %v4617 = vunpack.c.h.b16 %v4539
        %v4618 = vunpack.c.l.b16 %v4540
        %v4619 = vunpack.c.h.b16 %v4540
        %v4620 = vunpack.c.l.b16 %v4541
        %v4621 = vunpack.c.h.b16 %v4541
        %v4622 = vunpack.c.l.b16 %v4542
        %v4623 = vunpack.c.h.b16 %v4542
        %v4624 = vunpack.c.l.b16 %v4543
        %v4625 = vunpack.c.h.b16 %v4543
        %v4626 = vunpack.c.l.b16 %v4544
        %v4627 = vunpack.c.h.b16 %v4544
        %v4628 = vunpack.c.l.b16 %v4545
        %v4629 = vunpack.c.h.b16 %v4545
        %v4630 = vunpack.c.l.b16 %v4546
        %v4631 = vunpack.c.h.b16 %v4546
        %v4632 = vunpack.c.l.b16 %v4547
        %v4633 = vunpack.c.h.b16 %v4547
        %v4634 = vunpack.c.l.b16 %v4548
        %v4635 = vunpack.c.h.b16 %v4548
        %v4636 = vunpack.c.l.b16 %v4549
        %v4637 = vunpack.c.h.b16 %v4549
        %v4638 = vunpack.c.l.b16 %v4550
        %v4639 = vunpack.c.h.b16 %v4550
        %v4640 = vunpack.c.l.b16 %v4551
        %v4641 = vunpack.c.h.b16 %v4551
        %v4642 = vunpack.c.l.b16 %v4552
        %v4643 = vunpack.c.h.b16 %v4552
        %v4644 = vunpack.c.l.b16 %v4553
        %v4645 = vunpack.c.h.b16 %v4553
        %v4646 = vunpack.c.l.b16 %v4554
        %v4647 = vunpack.c.h.b16 %v4554
        %v4648 = vunpack.c.l.b16 %v4555
        %v4649 = vunpack.c.h.b16 %v4555
        %v4650 = vunpack.c.l.b16 %v4556
        %v4651 = vunpack.c.h.b16 %v4556
        %v4652 = vunpack.c.l.b16 %v4557
        %v4653 = vunpack.c.h.b16 %v4557
        %v4654 = vpack.c.b16 %v4592, %v4590
        %v4655 = vpack.c.b16 %v4593, %v4591
        %v4656 = vpack.c.b16 %v4596, %v4594
        %v4657 = vpack.c.b16 %v4597, %v4595
        %v4658 = vpack.c.b16 %v4600, %v4598
        %v4659 = vpack.c.b16 %v4601, %v4599
        %v4660 = vpack.c.b16 %v4604, %v4602
        %v4661 = vpack.c.b16 %v4605, %v4603
        %v4662 = vpack.c.b16 %v4608, %v4606
        %v4663 = vpack.c.b16 %v4609, %v4607
        %v4664 = vpack.c.b16 %v4612, %v4610
        %v4665 = vpack.c.b16 %v4613, %v4611
        %v4666 = vpack.c.b16 %v4616, %v4614
        %v4667 = vpack.c.b16 %v4617, %v4615
        %v4668 = vpack.c.b16 %v4620, %v4618
        %v4669 = vpack.c.b16 %v4621, %v4619
        %v4670 = vpack.c.b16 %v4624, %v4622
        %v4671 = vpack.c.b16 %v4625, %v4623
        %v4672 = vpack.c.b16 %v4628, %v4626
        %v4673 = vpack.c.b16 %v4629, %v4627
        %v4674 = vpack.c.b16 %v4632, %v4630
        %v4675 = vpack.c.b16 %v4633, %v4631
        %v4676 = vpack.c.b16 %v4636, %v4634
        %v4677 = vpack.c.b16 %v4637, %v4635
        %v4678 = vpack.c.b16 %v4640, %v4638
        %v4679 = vpack.c.b16 %v4641, %v4639
        %v4680 = vpack.c.b16 %v4644, %v4642
        %v4681 = vpack.c.b16 %v4645, %v4643
        %v4682 = vpack.c.b16 %v4648, %v4646
        %v4683 = vpack.c.b16 %v4649, %v4647
        %v4684 = vpack.c.b16 %v4652, %v4650
        %v4685 = vpack.c.b16 %v4653, %v4651
        %4718 = vmatpush.bf16.msra.mxu0 %v4668
        %4719 = vmatpush.bf16.msra.mxu0 %v4666
        %4720 = vmatpush.bf16.msra.mxu0 %v4664
        %4721 = vmatpush.bf16.msra.mxu0 %v4662
        %4722 = vmatpush.bf16.msra.mxu0 %v4660
        %4723 = vmatpush.bf16.msra.mxu0 %v4658
        %4724 = vmatpush.bf16.msra.mxu0 %v4656
        %4725 = vmatpush.bf16.msra.mxu0 %v4654
        %4726 = vmatmul.bf16.gmra.mxu0 %v4523
        %v4727 = vpop.f32.mrf.mxu0
        %v4728 = vadd.f32 0.0, %v4727
        %v4729 = vpop.f32.mrf.mxu0
        %4730 = vdwg.mxu0
        %4731 = vmatpush.bf16.msra.mxu0 %v4684
        %4732 = vmatpush.bf16.msra.mxu0 %v4682
        %4733 = vmatpush.bf16.msra.mxu0 %v4680
        %4734 = vmatpush.bf16.msra.mxu0 %v4678
        %4735 = vmatpush.bf16.msra.mxu0 %v4676
        %4736 = vmatpush.bf16.msra.mxu0 %v4674
        %4737 = vmatpush.bf16.msra.mxu0 %v4672
        %4738 = vmatpush.bf16.msra.mxu0 %v4670
        %4739 = vmatmul.bf16.gmra.mxu0 %v4524
        %v4740 = vpop.f32.mrf.mxu0
        %v4741 = vadd.f32 %v4728, %v4740
        %v4742 = vpop.f32.mrf.mxu0
        %4743 = vdwg.mxu0
        %4744 = vmatpush.bf16.msra.mxu0 %v4669
        %4745 = vmatpush.bf16.msra.mxu0 %v4667
        %4746 = vmatpush.bf16.msra.mxu0 %v4665
        %4747 = vmatpush.bf16.msra.mxu0 %v4663
        %4748 = vmatpush.bf16.msra.mxu0 %v4661
        %4749 = vmatpush.bf16.msra.mxu0 %v4659
        %4750 = vmatpush.bf16.msra.mxu0 %v4657
        %4751 = vmatpush.bf16.msra.mxu0 %v4655
        %4752 = vmatmul.bf16.gmra.mxu0 %v4523
        %v4753 = vpop.f32.mrf.mxu0
        %v4754 = vadd.f32 0.0, %v4753
        %v4755 = vpop.f32.mrf.mxu0
        %4756 = vdwg.mxu0
        %4757 = vmatpush.bf16.msra.mxu0 %v4685
        %4758 = vmatpush.bf16.msra.mxu0 %v4683
        %4759 = vmatpush.bf16.msra.mxu0 %v4681
        %4760 = vmatpush.bf16.msra.mxu0 %v4679
        %4761 = vmatpush.bf16.msra.mxu0 %v4677
        %4762 = vmatpush.bf16.msra.mxu0 %v4675
        %4763 = vmatpush.bf16.msra.mxu0 %v4673
        %4764 = vmatpush.bf16.msra.mxu0 %v4671
        %4765 = vmatmul.bf16.gmra.mxu0 %v4524
        %v4766 = vpop.f32.mrf.mxu0
        %v4767 = vadd.f32 %v4754, %v4766
        %v4768 = vpop.f32.mrf.mxu0
        %4769 = vdwg.mxu0
        %v4772 = vrot.slane %v4767, 6
        %vm4773 = vcmask 1041408
        %v4774 = vsel %vm4773, %v4741, %v4772
        %v4776 = vadd.f32 %v4525, %v4774
        %4777 = vst [vmem:[#allocation2] sm:$0xf] %v4776
        %p4778 = scmp.eq.s32.totalorder %s29, 3
        // Predicated region
        $region89: #{tpu_custom_call.1} parent=55 // pred_check
          %p4779 = pneg %p4778
        $region90: #{tpu_custom_call.1} parent=55 // pred_check_branch
          %4781 = sbr.rel (%p4779) target = $region92
        $region91: #{tpu_custom_call.1} parent=55 // pred_region
          %v4782 = vld [vmem:[#allocation2] sm:$0xf]
          %v4783 = vld [vmem:[#allocation11] sm:$0x3]
          %v4785 = vperm.slane %v4783, 0
          %v4786 = vperm.slane %v4783, 1
          %v4787 = vrot.slane %v4786, 6
          %v4788 = vsel %vm4773, %v4785, %v4787
          %v4790 = vadd.f32 %v4782, %v4788
          %v4791 = vmax.f32 %v4790, 0.0
          %4793 = vst [vmem:[#allocation1] ss:$4 sm:$0xff] %v4791
          %v4794 = vld.sshfl [vmem:[#allocation1] sm:$0xff pattern:$0x73625140]
          %v4795 = vld.sshfl [vmem:[#allocation1 + $0x8] sm:$0xff pattern:$0x73625140]
          %v4798 = vpack.c.bf16 %v4794, %v4794
          %v4799 = vpack.c.bf16 %v4795, %v4795
          %v4800 = vld [vmem:[%s5] sm:$0xf]
          %v4801 = vld [vmem:[%s5 + $0x4] sm:$0xf]
          %v4802 = vld [vmem:[%s5 + $0x8] sm:$0xf]
          %v4803 = vld [vmem:[%s5 + $0xc] sm:$0xf]
          %v4804 = vld [vmem:[%s5 + $0x10] sm:$0xf]
          %v4805 = vld [vmem:[%s5 + $0x14] sm:$0xf]
          %v4806 = vld [vmem:[%s5 + $0x18] sm:$0xf]
          %v4807 = vld [vmem:[%s5 + $0x1c] sm:$0xf]
          %v4808 = vld [vmem:[%s5 + $0x20] sm:$0xf]
          %v4809 = vld [vmem:[%s5 + $0x24] sm:$0xf]
          %v4810 = vld [vmem:[%s5 + $0x28] sm:$0xf]
          %v4811 = vld [vmem:[%s5 + $0x2c] sm:$0xf]
          %v4812 = vld [vmem:[%s5 + $0x30] sm:$0xf]
          %v4813 = vld [vmem:[%s5 + $0x34] sm:$0xf]
          %v4814 = vld [vmem:[%s5 + $0x38] sm:$0xf]
          %v4815 = vld [vmem:[%s5 + $0x3c] sm:$0xf]
          %v4816 = vld [vmem:[%s5 + $0x40] sm:$0xf]
          %v4817 = vld [vmem:[%s5 + $0x44] sm:$0xf]
          %v4818 = vld [vmem:[%s5 + $0x48] sm:$0xf]
          %v4819 = vld [vmem:[%s5 + $0x4c] sm:$0xf]
          %v4820 = vld [vmem:[%s5 + $0x50] sm:$0xf]
          %v4821 = vld [vmem:[%s5 + $0x54] sm:$0xf]
          %v4822 = vld [vmem:[%s5 + $0x58] sm:$0xf]
          %v4823 = vld [vmem:[%s5 + $0x5c] sm:$0xf]
          %v4824 = vld [vmem:[%s5 + $0x60] sm:$0xf]
          %v4825 = vld [vmem:[%s5 + $0x64] sm:$0xf]
          %v4826 = vld [vmem:[%s5 + $0x68] sm:$0xf]
          %v4827 = vld [vmem:[%s5 + $0x6c] sm:$0xf]
          %v4828 = vld [vmem:[%s5 + $0x70] sm:$0xf]
          %v4829 = vld [vmem:[%s5 + $0x74] sm:$0xf]
          %v4830 = vld [vmem:[%s5 + $0x78] sm:$0xf]
          %v4831 = vld [vmem:[%s5 + $0x7c] sm:$0xf]
          %v4832 = vld [vmem:[#allocation12] sm:$0x1]
          %v4834 = vperm.slane %v4832, 0
          %v4868 = vunpack.c.l.b16 %v4800
          %v4869 = vunpack.c.l.b16 %v4801
          %v4870 = vunpack.c.l.b16 %v4802
          %v4871 = vunpack.c.l.b16 %v4803
          %v4872 = vunpack.c.l.b16 %v4804
          %v4873 = vunpack.c.l.b16 %v4805
          %v4874 = vunpack.c.l.b16 %v4806
          %v4875 = vunpack.c.l.b16 %v4807
          %v4876 = vunpack.c.l.b16 %v4808
          %v4877 = vunpack.c.l.b16 %v4809
          %v4878 = vunpack.c.l.b16 %v4810
          %v4879 = vunpack.c.l.b16 %v4811
          %v4880 = vunpack.c.l.b16 %v4812
          %v4881 = vunpack.c.l.b16 %v4813
          %v4882 = vunpack.c.l.b16 %v4814
          %v4883 = vunpack.c.l.b16 %v4815
          %v4884 = vunpack.c.l.b16 %v4816
          %v4885 = vunpack.c.l.b16 %v4817
          %v4886 = vunpack.c.l.b16 %v4818
          %v4887 = vunpack.c.l.b16 %v4819
          %v4888 = vunpack.c.l.b16 %v4820
          %v4889 = vunpack.c.l.b16 %v4821
          %v4890 = vunpack.c.l.b16 %v4822
          %v4891 = vunpack.c.l.b16 %v4823
          %v4892 = vunpack.c.l.b16 %v4824
          %v4893 = vunpack.c.l.b16 %v4825
          %v4894 = vunpack.c.l.b16 %v4826
          %v4895 = vunpack.c.l.b16 %v4827
          %v4896 = vunpack.c.l.b16 %v4828
          %v4897 = vunpack.c.l.b16 %v4829
          %v4898 = vunpack.c.l.b16 %v4830
          %v4899 = vunpack.c.l.b16 %v4831
          %v4900 = vpack.c.b16 %v4869, %v4868
          %v4901 = vpack.c.b16 %v4871, %v4870
          %v4902 = vpack.c.b16 %v4873, %v4872
          %v4903 = vpack.c.b16 %v4875, %v4874
          %v4904 = vpack.c.b16 %v4877, %v4876
          %v4905 = vpack.c.b16 %v4879, %v4878
          %v4906 = vpack.c.b16 %v4881, %v4880
          %v4907 = vpack.c.b16 %v4883, %v4882
          %v4908 = vpack.c.b16 %v4885, %v4884
          %v4909 = vpack.c.b16 %v4887, %v4886
          %v4910 = vpack.c.b16 %v4889, %v4888
          %v4911 = vpack.c.b16 %v4891, %v4890
          %v4912 = vpack.c.b16 %v4893, %v4892
          %v4913 = vpack.c.b16 %v4895, %v4894
          %v4914 = vpack.c.b16 %v4897, %v4896
          %v4915 = vpack.c.b16 %v4899, %v4898
          %4932 = vmatpush.bf16.msra.mxu0 %v4907
          %4933 = vmatpush.bf16.msra.mxu0 %v4906
          %4934 = vmatpush.bf16.msra.mxu0 %v4905
          %4935 = vmatpush.bf16.msra.mxu0 %v4904
          %4936 = vmatpush.bf16.msra.mxu0 %v4903
          %4937 = vmatpush.bf16.msra.mxu0 %v4902
          %4938 = vmatpush.bf16.msra.mxu0 %v4901
          %4939 = vmatpush.bf16.msra.mxu0 %v4900
          %4940 = vmatmul.bf16.gmra.mxu0 %v4798
          %v4941 = vpop.f32.mrf.mxu0
          %v4942 = vadd.f32 %v4834, %v4941
          %v4943 = vpop.f32.mrf.mxu0
          %4944 = vdwg.mxu0
          %4945 = vmatpush.bf16.msra.mxu0 %v4915
          %4946 = vmatpush.bf16.msra.mxu0 %v4914
          %4947 = vmatpush.bf16.msra.mxu0 %v4913
          %4948 = vmatpush.bf16.msra.mxu0 %v4912
          %4949 = vmatpush.bf16.msra.mxu0 %v4911
          %4950 = vmatpush.bf16.msra.mxu0 %v4910
          %4951 = vmatpush.bf16.msra.mxu0 %v4909
          %4952 = vmatpush.bf16.msra.mxu0 %v4908
          %4953 = vmatmul.bf16.gmra.mxu0 %v4799
          %v4954 = vpop.f32.mrf.mxu0
          %v4955 = vadd.f32 %v4942, %v4954
          %v4956 = vpop.f32.mrf.mxu0
          %4957 = vdwg.mxu0
          %v4958 = vmax.f32 %v4955, 0.0
          %v4959 = vpack.c.bf16 %v4958, %v4958
          %v4960 = vld [vmem:[%s7] sm:$0xf]
          %v4961 = vld [vmem:[%s7 + $0x4] sm:$0xf]
          %v4962 = vld [vmem:[%s7 + $0x8] sm:$0xf]
          %v4963 = vld [vmem:[%s7 + $0xc] sm:$0xf]
          %v4964 = vld [vmem:[%s7 + $0x10] sm:$0xf]
          %v4965 = vld [vmem:[%s7 + $0x14] sm:$0xf]
          %v4966 = vld [vmem:[%s7 + $0x18] sm:$0xf]
          %v4967 = vld [vmem:[%s7 + $0x1c] sm:$0xf]
          %v4968 = vld [vmem:[#allocation14] sm:$0x1]
          %v4970 = vperm.slane %v4968, 0
          %v4980 = vunpack.c.l.b16 %v4960
          %v4981 = vunpack.c.l.b16 %v4961
          %v4982 = vunpack.c.l.b16 %v4962
          %v4983 = vunpack.c.l.b16 %v4963
          %v4984 = vunpack.c.l.b16 %v4964
          %v4985 = vunpack.c.l.b16 %v4965
          %v4986 = vunpack.c.l.b16 %v4966
          %v4987 = vunpack.c.l.b16 %v4967
          %v4988 = vpack.c.b16 %v4981, %v4980
          %v4989 = vpack.c.b16 %v4983, %v4982
          %v4990 = vpack.c.b16 %v4985, %v4984
          %v4991 = vpack.c.b16 %v4987, %v4986
          %vm4996 = vcmask 523264
          %v4998 = vsel %vm4996, %v4959, 0
          %5000 = vmatpush.bf16.msra.mxu0 0
          %5001 = vmatpush.bf16.msra.mxu0 0
          %5002 = vmatpush.bf16.msra.mxu0 0
          %5003 = vmatpush.bf16.msra.mxu0 0
          %5004 = vmatpush.bf16.msra.mxu0 %v4991
          %5005 = vmatpush.bf16.msra.mxu0 %v4990
          %5006 = vmatpush.bf16.msra.mxu0 %v4989
          %5007 = vmatpush.bf16.msra.mxu0 %v4988
          %5008 = vmatmul.bf16.gmra.mxu0 %v4998
          %v5009 = vpop.f32.mrf.mxu0
          %v5010 = vadd.f32 %v4970, %v5009
          %v5011 = vpop.f32.mrf.mxu0
          %5012 = vdwg.mxu0
          %vm5013 = vcmask 17408
          %v5014 = vsel %vm5013, %v5010, -inf
          %5015 = vmax.xlane.f32.xlu0 %v5014
          %v5016 = vpop.xlane.xlu0 %5015
          %v5017 = vsub.f32 %v5010, %v5016
          %v5018 = vmul.f32 %v5017, 1.442695
          %v5019 = vpow.pop %v5018
          %v5020 = vsel %vm5013, %v5019, 0.0
          %5021 = vadd.xlane.f32.xlu0 %v5020
          %v5022 = vpop.xlane.xlu0 %5021
          %v5023 = vrcp.pop %v5022
          %v5024 = vmul.f32 %v5022, %v5023
          %v5025 = vsub.f32 1.0, %v5024
          %v5026 = vmul.f32 %v5023, %v5025
          %v5027 = vadd.f32 %v5023, %v5026
          %vm5028 = vweird.f32 %v5022
          %vm5029 = vweird.f32 %v5023
          %vm5030 = vmor %vm5028, %vm5029
          %v5031 = vsel %vm5030, %v5023, %v5027
          %v5032 = vand.u32 2147483647, %v5022
          %vm5033 = vcmp.eq.f32.partialorder %v5032, 8.507059e+37
          %v5034 = vand.u32 %v5022, 2147483648
          %v5035 = vor.u32 1.1754944e-38, %v5034
          %v5036 = vsel %vm5033, %v5035, %v5031
          %v5037 = vmul.f32 %v5019, %v5036
          %5038 = vst.msk [vmem:[#allocation15] sm:$0x3] %vm5013, %v5037
        $region92: #{tpu_custom_call.1} parent=55 // pred_fallthru
          _
        // Predicated region
        $region93: #{tpu_custom_call.1} parent=55 // pred_check
          %p5039 = pneg %p246
        $region94: #{tpu_custom_call.1} parent=55 // pred_check_branch
          %5041 = sbr.rel (%p5039) target = $region96
        $region95: #{tpu_custom_call.1} parent=55 // pred_region
          %5043 = vsyncadd [#allocation5], 0
          %s5045 = sshll.u32 [#allocation15], 4
          %s5046 = int_to_ptr.vmem [resolvable:$true] %s5045
          %s5047 = sshll.u32 %s9, 4
          %s5048 = int_to_ptr.hbm [resolvable:$true] %s5047
          %5050 = dma.vmem_to_hbm [thread:$0]  %s5046, 32, %s5048, [#allocation5]
        $region96: #{tpu_custom_call.1} parent=55 // pred_fallthru
          _
        // Predicated region
        $region97: #{tpu_custom_call.1} parent=55 // pred_check
          %p5051 = pneg %p246
        $region98: #{tpu_custom_call.1} parent=55 // pred_check_branch
          %5053 = sbr.rel (%p5051) target = $region100
        $region99: #{tpu_custom_call.1} parent=55 // pred_region
          %5055 = dma.done [#allocation5], 32
        $region100: #{tpu_custom_call.1} parent=55 // pred_fallthru
          _
      $region56: #{tpu_custom_call.1} parent=5 // pred_fallthru
        _
      %p5056 = scmp.le.s32.totalorder 2, %s24
      // Predicated region
      $region101: #{tpu_custom_call.1} parent=5 // pred_check
        %p5057 = pneg %p5056
      $region102: #{tpu_custom_call.1} parent=5 // pred_check_branch
        %5059 = sbr.rel (%p5057) target = $region104
      $region103: #{tpu_custom_call.1} parent=5 // pred_region
        %s5060 = ssub.s32 %s24, 2
      $region104: #{tpu_custom_call.1} parent=5 // pred_fallthru
        _
    $region6: #{tpu_custom_call.1} parent=1 // loop_footer
      %s28 = sadd.s32 1, %s24
    $region7: #{tpu_custom_call.1} parent=1 // loop_footer_branch
      %23 = sbr.rel target = $region3
    $region8: #{tpu_custom_call.1} parent=1 // loop_exit
      _
    %5061 = vsyncpa [#allocation4], 1
    %s5062 = scalar_lea.sflag [#allocation4], 1
    %5063 = vsyncpa %s5062, 1
    %5064 = vsyncpa [#allocation7], 1
    %s5065 = scalar_lea.sflag [#allocation7], 1
    %5066 = vsyncpa %s5065, 1
    %5067 = vsyncpa [#allocation10], 1
    %s5068 = scalar_lea.sflag [#allocation10], 1
    %5069 = vsyncpa %s5068, 1
    %5070 = vsyncpa [#allocation13], 1
    %5071 = vsyncpa [#allocation5], 1
    %s5072 = scalar_lea.sflag [#allocation5], 1
    %5073 = vsyncpa %s5072, 1

</llo_original>
